<compile_context>
chip_gen: v7x
topology: tpu7x:2x2x1
jax: 0.10.0
libtpu: 0.0.40
codegen_flags: <defaults>
</compile_context>

<pallas_src>
import functools

import numpy as np

import jax
import jax.numpy as jnp
from jax import lax
from jax.experimental import pallas as pl
from jax.experimental.pallas import tpu as pltpu


def _round_up(x, m):
    return (x + m - 1) // m * m


# ---------------------------------------------------------------------------
# Bilinear resize (align_corners=True): out = A_h @ X @ A_w^T, batched over all
# N*C planes inside a single grid step (two batched MXU matmuls).
# ---------------------------------------------------------------------------
def _interp_matrix(out_size, in_size):
    """(out_size, in_size) row-interpolation matrix, bilinear align_corners=True.

    Built with numpy so it becomes a jit-time constant (no device scatter ops).
    """
    if out_size == 1:
        pos = np.zeros((1,), np.float32)
    else:
        pos = np.arange(out_size, dtype=np.float32) * (
            (in_size - 1) / (out_size - 1))
    lo = np.clip(np.floor(pos).astype(np.int64), 0, in_size - 1)
    hi = np.minimum(lo + 1, in_size - 1)
    frac = (pos - lo).astype(np.float32)
    rows = np.arange(out_size)
    A = np.zeros((out_size, in_size), np.float32)
    A[rows, lo] += 1.0 - frac
    A[rows, hi] += frac
    return A


def _resize_kernel(x_ref, ahb_ref, awtb_ref, o_ref):
    # x: (NC, H, W), awtb: (NC, W, ow), ahb: (NC, oh, H)  ->  o: (NC, oh, ow)
    t = lax.dot_general(
        x_ref[...], awtb_ref[...],
        dimension_numbers=(((2,), (1,)), ((0,), (0,))),
        preferred_element_type=jnp.float32)                     # (NC, H, ow)
    o_ref[...] = lax.dot_general(
        ahb_ref[...], t,
        dimension_numbers=(((2,), (1,)), ((0,), (0,))),
        preferred_element_type=jnp.float32)                     # (NC, oh, ow)


def bilinear_resize(x, out_h, out_w):
    """x: (N, C, H, W) f32 -> (N, C, out_h, out_w), bilinear align_corners=True."""
    N, C, H, W = x.shape
    NC = N * C
    ah = jnp.asarray(_interp_matrix(out_h, H))                  # (oh, H)
    awt = jnp.asarray(_interp_matrix(out_w, W).T)               # (W, ow)
    ah_b = jnp.broadcast_to(ah[None], (NC, out_h, H))
    awt_b = jnp.broadcast_to(awt[None], (NC, W, out_w))
    xf = x.reshape(NC, H, W).astype(jnp.float32)

    flops = 2 * NC * (H * W * out_w + out_h * H * out_w)
    bytes_accessed = 4 * (NC * H * W + NC * out_h * H
                          + NC * W * out_w + NC * out_h * out_w)
    out = pl.pallas_call(
        _resize_kernel,
        out_shape=jax.ShapeDtypeStruct((NC, out_h, out_w), jnp.float32),
        grid=(1,),
        in_specs=[
            pl.BlockSpec((NC, H, W), lambda i: (0, 0, 0)),
            pl.BlockSpec((NC, out_h, H), lambda i: (0, 0, 0)),
            pl.BlockSpec((NC, W, out_w), lambda i: (0, 0, 0)),
        ],
        out_specs=pl.BlockSpec((NC, out_h, out_w), lambda i: (0, 0, 0)),
        compiler_params=pltpu.CompilerParams(
            dimension_semantics=("arbitrary",)),
        cost_estimate=pl.CostEstimate(
            flops=flops, transcendentals=0, bytes_accessed=bytes_accessed),
    )(xf, ah_b, awt_b)
    return out.reshape(N, C, out_h, out_w)


# ---------------------------------------------------------------------------
# Backbone stand-in: 3x3 conv (pad=1) + ReLU + 1x1 conv -> num_classes, fused
# into one Pallas kernel (two MXU matmuls) over R = N*H*W rows at once.
# ---------------------------------------------------------------------------
def _im2col_3x3(x):
    """x: (N, Cin, H, W) -> (N*H*W, Cin*9), zero padding=1 (XLA glue, fused under jit)."""
    N, Cin, H, W = x.shape
    xp = jnp.pad(x, ((0, 0), (0, 0), (1, 1), (1, 1)))
    cols = []
    for dy in range(3):
        for dx in range(3):
            cols.append(xp[:, :, dy:dy + H, dx:dx + W])
    col = jnp.stack(cols, axis=2)                   # (N, Cin, 9, H, W)
    col = col.reshape(N, Cin * 9, H * W)
    return col.transpose(0, 2, 1).reshape(N * H * W, Cin * 9)


def _backbone_kernel(col_ref, w3_ref, b3_ref, w1t_ref, b1t_ref, o_ref):
    # col: (rows, K) bf16 ; w3: (K, hidden) bf16 ; b3: (1, hidden) f32
    # w1t: (nc, hidden) bf16 ; b1t: (nc, 1) f32 ; o: (nc, rows) f32 (lane-dense)
    h = jnp.dot(col_ref[...], w3_ref[...],
                preferred_element_type=jnp.float32)             # (rows, hidden)
    h = jnp.maximum(h + b3_ref[...], 0.0)                       # f32 epilogue (v5e-safe)
    out = lax.dot_general(                                      # (nc, rows) = W1^T "@" h^T
        w1t_ref[...], h.astype(jnp.bfloat16),
        dimension_numbers=(((1,), (1,)), ((), ())),
        preferred_element_type=jnp.float32)
    o_ref[...] = out + b1t_ref[...]


def backbone(x, params, num_classes):
    """x: (N, Cin, H, W) -> (N, num_classes, H, W) (spatial-preserving seg head)."""
    w3, b3, w1t, b1t = params
    N, Cin, H, W = x.shape
    K = Cin * 9
    hidden = w3.shape[1]
    R = N * H * W

    col = _im2col_3x3(x.astype(jnp.float32)).astype(jnp.bfloat16)   # (R, K)
    # TODO(synk): for production-scale patch_size, build the im2col inside the
    # kernel from a padded NHWC tile (9 shifted VMEM views) to avoid the 9x HBM
    # slab; at these small shapes the XLA-fused im2col is negligible.

    # Row tiling: one block for small R, 1024-row blocks otherwise so the block
    # stays VMEM-safe on v7x (64 MiB) and the grid can be split across cores.
    if R <= 2048:
        row_tile = _round_up(R, 8)
    else:
        row_tile = 1024
    R_pad = _round_up(R, row_tile)
    if R_pad != R:
        col = jnp.pad(col, ((0, R_pad - R), (0, 0)))
    grid = (R_pad // row_tile,)

    flops = 2 * R_pad * hidden * (K + num_classes)
    bytes_accessed = (R_pad * K * 2 + K * hidden * 2 + hidden * 4
                      + num_classes * hidden * 2 + num_classes * 4
                      + num_classes * R_pad * 4)
    out = pl.pallas_call(
        _backbone_kernel,
        out_shape=jax.ShapeDtypeStruct((num_classes, R_pad), jnp.float32),
        grid=grid,
        in_specs=[
            pl.BlockSpec((row_tile, K), lambda i: (i, 0)),
            pl.BlockSpec((K, hidden), lambda i: (0, 0)),
            pl.BlockSpec((1, hidden), lambda i: (0, 0)),
            pl.BlockSpec((num_classes, hidden), lambda i: (0, 0)),
            pl.BlockSpec((num_classes, 1), lambda i: (0, 0)),
        ],
        out_specs=pl.BlockSpec((num_classes, row_tile), lambda i: (0, i)),
        compiler_params=pltpu.CompilerParams(
            dimension_semantics=("parallel",)),
        cost_estimate=pl.CostEstimate(
            flops=flops, transcendentals=0, bytes_accessed=bytes_accessed),
    )(col, w3, b3, w1t, b1t)

    out = out[:, :R]                                            # (nc, N*H*W)
    return out.reshape(num_classes, N, H, W).transpose(1, 0, 2, 3)


# ---------------------------------------------------------------------------
# SingleSubTreeSeg forward
# ---------------------------------------------------------------------------
def single_sub_tree_seg_forward(image, params, *, patch_size, num_classes):
    B, C, H0, W0 = image.shape
    pH = pW = patch_size
    h2, w2 = H0 // 2, W0 // 2

    # NOTE: the reference computes a whole-image stage-0 prediction that never
    # reaches the output (dead code) -> dropped.
    # NOTE: the reference loop always takes chunk 0 of the batch, so every
    # batch entry of the output is identical -> compute once, broadcast to B.
    single_image = image[0:1]
    # rearrange '1 c (p1 h) (p2 w) -> (p1 p2) c h w', p1=2, p2=2
    sub_images = (single_image.reshape(1, C, 2, h2, 2, w2)
                  .transpose(0, 2, 4, 1, 3, 5)
                  .reshape(4, C, h2, w2))
    sub_images = bilinear_resize(sub_images, pH, pW)            # (4, C, pH, pW)
    sub_predict = backbone(sub_images, params, num_classes)     # (4, nc, pH, pW)
    # rearrange '(p1 p2) c h w -> 1 c (p1 h) (p2 w)'
    sub_predict = (sub_predict.reshape(2, 2, num_classes, pH, pW)
                   .transpose(2, 0, 3, 1, 4)
                   .reshape(1, num_classes, 2 * pH, 2 * pW))
    sub_predict = bilinear_resize(sub_predict, H0, W0)          # (1, nc, H0, W0)
    return jnp.broadcast_to(sub_predict, (B, num_classes, H0, W0))


# ---------------------------------------------------------------------------
# Deterministic parameter init (synthetic backbone weights)
# ---------------------------------------------------------------------------
def init_params(key, in_channels, hidden, num_classes):
    k1, k2, k3, k4 = jax.random.split(key, 4)
    K = in_channels * 9
    w3 = (0.1 * jax.random.normal(k1, (K, hidden), jnp.float32)).astype(jnp.bfloat16)
    b3 = 0.1 * jax.random.normal(k2, (1, hidden), jnp.float32)
    w1t = (0.1 * jax.random.normal(k3, (num_classes, hidden), jnp.float32)).astype(jnp.bfloat16)
    b1t = 0.1 * jax.random.normal(k4, (num_classes, 1), jnp.float32)
    return (w3, b3, w1t, b1t)


if __name__ == "__main__":
    # Small shapes consistent with the module's forward (NCHW input).
    B, C, H0, W0 = 2, 3, 16, 16
    patch_size = 12
    num_classes = 7
    hidden = 8

    key = jax.random.PRNGKey(0)
    k_img, k_par = jax.random.split(key)
    image = jax.random.normal(k_img, (B, C, H0, W0), jnp.float32)
    params = init_params(k_par, C, hidden, num_classes)

    fwd = jax.jit(functools.partial(single_sub_tree_seg_forward,
                                    patch_size=patch_size,
                                    num_classes=num_classes))
    out = jax.block_until_ready(fwd(image, params))
    assert out.shape == (B, num_classes, H0, W0), out.shape
    assert bool(jnp.all(jnp.isfinite(out)))
    print("KERNEL_OK")
</pallas_src>

<mosaic_0001>
module attributes {stable_mosaic.version = 11 : i64} {
  func.func @_resize_kernel(%arg0: i32, %arg1: memref<12x8x8xf32, #tpu.memory_space<vmem>>, %arg2: memref<12x12x8xf32, #tpu.memory_space<vmem>>, %arg3: memref<12x8x12xf32, #tpu.memory_space<vmem>>, %arg4: memref<12x12x12xf32, #tpu.memory_space<vmem>>) attributes {dimension_semantics = [#tpu.dimension_semantics<arbitrary>], iteration_bounds = array<i64: 1>, scalar_prefetch = 0 : i64, scratch_operands = 0 : i64, tpu.core_type = #tpu.core_type<tc>, window_params = [{pipeline_mode = #tpu.pipeline_mode<synchronous>, transform_indices = @transform_0, window_bounds = array<i64: 12, 8, 8>}, {pipeline_mode = #tpu.pipeline_mode<synchronous>, transform_indices = @transform_1, window_bounds = array<i64: 12, 12, 8>}, {pipeline_mode = #tpu.pipeline_mode<synchronous>, transform_indices = @transform_2, window_bounds = array<i64: 12, 8, 12>}, {pipeline_mode = #tpu.pipeline_mode<synchronous>, transform_indices = @transform_3, window_bounds = array<i64: 12, 12, 12>}]} {
    %c0 = arith.constant 0 : index
    %c0_0 = arith.constant 0 : index
    %c0_1 = arith.constant 0 : index
    %0 = vector.load %arg1[%c0, %c0_0, %c0_1] : memref<12x8x8xf32, #tpu.memory_space<vmem>>, vector<12x8x8xf32>
    %c0_2 = arith.constant 0 : index
    %c0_3 = arith.constant 0 : index
    %c0_4 = arith.constant 0 : index
    %1 = vector.load %arg3[%c0_2, %c0_3, %c0_4] : memref<12x8x12xf32, #tpu.memory_space<vmem>>, vector<12x8x12xf32>
    %cst = arith.constant dense<0.000000e+00> : vector<12x8x12xf32>
    %2 = tpu.matmul %0, %1, %cst {dimension_numbers = #tpu.dot_dimension_numbers<[2], [1], [1], [2], [0, 0, 0, 1, 1, 2], [0], [0]>} : vector<12x8x8xf32>, vector<12x8x12xf32>, vector<12x8x12xf32> -> vector<12x8x12xf32>
    %c0_5 = arith.constant 0 : index
    %c0_6 = arith.constant 0 : index
    %c0_7 = arith.constant 0 : index
    %3 = vector.load %arg2[%c0_5, %c0_6, %c0_7] : memref<12x12x8xf32, #tpu.memory_space<vmem>>, vector<12x12x8xf32>
    %cst_8 = arith.constant dense<0.000000e+00> : vector<12x12x12xf32>
    %4 = tpu.matmul %3, %2, %cst_8 {dimension_numbers = #tpu.dot_dimension_numbers<[2], [1], [1], [2], [0, 0, 0, 1, 1, 2], [0], [0]>} : vector<12x12x8xf32>, vector<12x8x12xf32>, vector<12x12x12xf32> -> vector<12x12x12xf32>
    %c0_9 = arith.constant 0 : index
    %c0_10 = arith.constant 0 : index
    %c0_11 = arith.constant 0 : index
    %5 = vector.load %arg4[%c0_9, %c0_10, %c0_11] : memref<12x12x12xf32, #tpu.memory_space<vmem>>, vector<12x12x12xf32>
    tpu.vector_store %arg4[%c0_9, %c0_10, %c0_11], %4 {strides = array<i32>} : memref<12x12x12xf32, #tpu.memory_space<vmem>>, vector<12x12x12xf32>,
    return
  }
  func.func @transform_0(%arg0: i32) -> (i32, i32, i32) {
    %c0_i32 = arith.constant 0 : i32
    %c0_i32_0 = arith.constant 0 : i32
    %c0_i32_1 = arith.constant 0 : i32
    %c0_i32_2 = arith.constant 0 : i32
    return %c0_i32, %c0_i32_0, %c0_i32_1 : i32, i32, i32
  }
  func.func @transform_1(%arg0: i32) -> (i32, i32, i32) {
    %c0_i32 = arith.constant 0 : i32
    %c0_i32_0 = arith.constant 0 : i32
    %c0_i32_1 = arith.constant 0 : i32
    %c0_i32_2 = arith.constant 0 : i32
    return %c0_i32, %c0_i32_0, %c0_i32_1 : i32, i32, i32
  }
  func.func @transform_2(%arg0: i32) -> (i32, i32, i32) {
    %c0_i32 = arith.constant 0 : i32
    %c0_i32_0 = arith.constant 0 : i32
    %c0_i32_1 = arith.constant 0 : i32
    %c0_i32_2 = arith.constant 0 : i32
    return %c0_i32, %c0_i32_0, %c0_i32_1 : i32, i32, i32
  }
  func.func @transform_3(%arg0: i32) -> (i32, i32, i32) {
    %c0_i32 = arith.constant 0 : i32
    %c0_i32_0 = arith.constant 0 : i32
    %c0_i32_1 = arith.constant 0 : i32
    %c0_i32_2 = arith.constant 0 : i32
    return %c0_i32, %c0_i32_0, %c0_i32_1 : i32, i32, i32
  }
}

module attributes {stable_mosaic.version = 11 : i64} {
  func.func @_backbone_kernel(%arg0: i32, %arg1: memref<576x27xbf16, #tpu.memory_space<vmem>>, %arg2: memref<27x8xbf16, #tpu.memory_space<vmem>>, %arg3: memref<1x8xf32, #tpu.memory_space<vmem>>, %arg4: memref<7x8xbf16, #tpu.memory_space<vmem>>, %arg5: memref<7x1xf32, #tpu.memory_space<vmem>>, %arg6: memref<7x576xf32, #tpu.memory_space<vmem>>) attributes {dimension_semantics = [#tpu.dimension_semantics<parallel>], iteration_bounds = array<i64: 1>, scalar_prefetch = 0 : i64, scratch_operands = 0 : i64, tpu.core_type = #tpu.core_type<tc>, window_params = [{transform_indices = @transform_0, window_bounds = array<i64: 576, 27>}, {pipeline_mode = #tpu.pipeline_mode<synchronous>, transform_indices = @transform_1, window_bounds = array<i64: 27, 8>}, {pipeline_mode = #tpu.pipeline_mode<synchronous>, transform_indices = @transform_2, window_bounds = array<i64: 1, 8>}, {pipeline_mode = #tpu.pipeline_mode<synchronous>, transform_indices = @transform_3, window_bounds = array<i64: 7, 8>}, {pipeline_mode = #tpu.pipeline_mode<synchronous>, transform_indices = @transform_4, window_bounds = array<i64: 7, 1>}, {transform_indices = @transform_5, window_bounds = array<i64: 7, 576>}]} {
    %c0 = arith.constant 0 : index
    %c0_0 = arith.constant 0 : index
    %0 = vector.load %arg1[%c0, %c0_0] : memref<576x27xbf16, #tpu.memory_space<vmem>>, vector<576x27xbf16>
    %c0_1 = arith.constant 0 : index
    %c0_2 = arith.constant 0 : index
    %1 = vector.load %arg2[%c0_1, %c0_2] : memref<27x8xbf16, #tpu.memory_space<vmem>>, vector<27x8xbf16>
    %cst = arith.constant dense<0.000000e+00> : vector<576x8xf32>
    %2 = tpu.matmul %0, %1, %cst {dimension_numbers = #tpu.dot_dimension_numbers<[1], [0], [0], [1], [0, 0, 1, 1], [], []>} : vector<576x27xbf16>, vector<27x8xbf16>, vector<576x8xf32> -> vector<576x8xf32>
    %c0_3 = arith.constant 0 : index
    %c0_4 = arith.constant 0 : index
    %3 = vector.load %arg3[%c0_3, %c0_4] : memref<1x8xf32, #tpu.memory_space<vmem>>, vector<1x8xf32>
    %4 = vector.broadcast %3 : vector<1x8xf32> to vector<576x8xf32>
    %5 = arith.addf %2, %4 : vector<576x8xf32>
    %cst_5 = arith.constant 0.000000e+00 : f32
    %6 = vector.broadcast %cst_5 : f32 to vector<576x8xf32>
    %7 = arith.maximumf %5, %6 : vector<576x8xf32>
    %c0_6 = arith.constant 0 : index
    %c0_7 = arith.constant 0 : index
    %8 = vector.load %arg4[%c0_6, %c0_7] : memref<7x8xbf16, #tpu.memory_space<vmem>>, vector<7x8xbf16>
    %9 = arith.truncf %7 : vector<576x8xf32> to vector<576x8xbf16>
    %cst_8 = arith.constant dense<0.000000e+00> : vector<7x576xf32>
    %10 = tpu.matmul %8, %9, %cst_8 {dimension_numbers = #tpu.dot_dimension_numbers<[1], [1], [0], [0], [0, 0, 1, 0], [], []>} : vector<7x8xbf16>, vector<576x8xbf16>, vector<7x576xf32> -> vector<7x576xf32>
    %c0_9 = arith.constant 0 : index
    %c0_10 = arith.constant 0 : index
    %11 = vector.load %arg5[%c0_9, %c0_10] : memref<7x1xf32, #tpu.memory_space<vmem>>, vector<7x1xf32>
    %12 = vector.broadcast %11 : vector<7x1xf32> to vector<7x576xf32>
    %13 = arith.addf %10, %12 : vector<7x576xf32>
    %c0_11 = arith.constant 0 : index
    %c0_12 = arith.constant 0 : index
    %14 = vector.load %arg6[%c0_11, %c0_12] : memref<7x576xf32, #tpu.memory_space<vmem>>, vector<7x576xf32>
    tpu.vector_store %arg6[%c0_11, %c0_12], %13 {strides = array<i32>} : memref<7x576xf32, #tpu.memory_space<vmem>>, vector<7x576xf32>,
    return
  }
  func.func @transform_0(%arg0: i32) -> (i32, i32) {
    %c0_i32 = arith.constant 0 : i32
    %c0_i32_0 = arith.constant 0 : i32
    return %arg0, %c0_i32 : i32, i32
  }
  func.func @transform_1(%arg0: i32) -> (i32, i32) {
    %c0_i32 = arith.constant 0 : i32
    %c0_i32_0 = arith.constant 0 : i32
    %c0_i32_1 = arith.constant 0 : i32
    return %c0_i32, %c0_i32_0 : i32, i32
  }
  func.func @transform_2(%arg0: i32) -> (i32, i32) {
    %c0_i32 = arith.constant 0 : i32
    %c0_i32_0 = arith.constant 0 : i32
    %c0_i32_1 = arith.constant 0 : i32
    return %c0_i32, %c0_i32_0 : i32, i32
  }
  func.func @transform_3(%arg0: i32) -> (i32, i32) {
    %c0_i32 = arith.constant 0 : i32
    %c0_i32_0 = arith.constant 0 : i32
    %c0_i32_1 = arith.constant 0 : i32
    return %c0_i32, %c0_i32_0 : i32, i32
  }
  func.func @transform_4(%arg0: i32) -> (i32, i32) {
    %c0_i32 = arith.constant 0 : i32
    %c0_i32_0 = arith.constant 0 : i32
    %c0_i32_1 = arith.constant 0 : i32
    return %c0_i32, %c0_i32_0 : i32, i32
  }
  func.func @transform_5(%arg0: i32) -> (i32, i32) {
    %c0_i32 = arith.constant 0 : i32
    %c0_i32_0 = arith.constant 0 : i32
    return %c0_i32, %arg0 : i32, i32
  }
}

module attributes {stable_mosaic.version = 11 : i64} {
  func.func @_resize_kernel(%arg0: i32, %arg1: memref<7x24x24xf32, #tpu.memory_space<vmem>>, %arg2: memref<7x16x24xf32, #tpu.memory_space<vmem>>, %arg3: memref<7x24x16xf32, #tpu.memory_space<vmem>>, %arg4: memref<7x16x16xf32, #tpu.memory_space<vmem>>) attributes {dimension_semantics = [#tpu.dimension_semantics<arbitrary>], iteration_bounds = array<i64: 1>, scalar_prefetch = 0 : i64, scratch_operands = 0 : i64, tpu.core_type = #tpu.core_type<tc>, window_params = [{pipeline_mode = #tpu.pipeline_mode<synchronous>, transform_indices = @transform_0, window_bounds = array<i64: 7, 24, 24>}, {pipeline_mode = #tpu.pipeline_mode<synchronous>, transform_indices = @transform_1, window_bounds = array<i64: 7, 16, 24>}, {pipeline_mode = #tpu.pipeline_mode<synchronous>, transform_indices = @transform_2, window_bounds = array<i64: 7, 24, 16>}, {pipeline_mode = #tpu.pipeline_mode<synchronous>, transform_indices = @transform_3, window_bounds = array<i64: 7, 16, 16>}]} {
    %c0 = arith.constant 0 : index
    %c0_0 = arith.constant 0 : index
    %c0_1 = arith.constant 0 : index
    %0 = vector.load %arg1[%c0, %c0_0, %c0_1] : memref<7x24x24xf32, #tpu.memory_space<vmem>>, vector<7x24x24xf32>
    %c0_2 = arith.constant 0 : index
    %c0_3 = arith.constant 0 : index
    %c0_4 = arith.constant 0 : index
    %1 = vector.load %arg3[%c0_2, %c0_3, %c0_4] : memref<7x24x16xf32, #tpu.memory_space<vmem>>, vector<7x24x16xf32>
    %cst = arith.constant dense<0.000000e+00> : vector<7x24x16xf32>
    %2 = tpu.matmul %0, %1, %cst {dimension_numbers = #tpu.dot_dimension_numbers<[2], [1], [1], [2], [0, 0, 0, 1, 1, 2], [0], [0]>} : vector<7x24x24xf32>, vector<7x24x16xf32>, vector<7x24x16xf32> -> vector<7x24x16xf32>
    %c0_5 = arith.constant 0 : index
    %c0_6 = arith.constant 0 : index
    %c0_7 = arith.constant 0 : index
    %3 = vector.load %arg2[%c0_5, %c0_6, %c0_7] : memref<7x16x24xf32, #tpu.memory_space<vmem>>, vector<7x16x24xf32>
    %cst_8 = arith.constant dense<0.000000e+00> : vector<7x16x16xf32>
    %4 = tpu.matmul %3, %2, %cst_8 {dimension_numbers = #tpu.dot_dimension_numbers<[2], [1], [1], [2], [0, 0, 0, 1, 1, 2], [0], [0]>} : vector<7x16x24xf32>, vector<7x24x16xf32>, vector<7x16x16xf32> -> vector<7x16x16xf32>
    %c0_9 = arith.constant 0 : index
    %c0_10 = arith.constant 0 : index
    %c0_11 = arith.constant 0 : index
    %5 = vector.load %arg4[%c0_9, %c0_10, %c0_11] : memref<7x16x16xf32, #tpu.memory_space<vmem>>, vector<7x16x16xf32>
    tpu.vector_store %arg4[%c0_9, %c0_10, %c0_11], %4 {strides = array<i32>} : memref<7x16x16xf32, #tpu.memory_space<vmem>>, vector<7x16x16xf32>,
    return
  }
  func.func @transform_0(%arg0: i32) -> (i32, i32, i32) {
    %c0_i32 = arith.constant 0 : i32
    %c0_i32_0 = arith.constant 0 : i32
    %c0_i32_1 = arith.constant 0 : i32
    %c0_i32_2 = arith.constant 0 : i32
    return %c0_i32, %c0_i32_0, %c0_i32_1 : i32, i32, i32
  }
  func.func @transform_1(%arg0: i32) -> (i32, i32, i32) {
    %c0_i32 = arith.constant 0 : i32
    %c0_i32_0 = arith.constant 0 : i32
    %c0_i32_1 = arith.constant 0 : i32
    %c0_i32_2 = arith.constant 0 : i32
    return %c0_i32, %c0_i32_0, %c0_i32_1 : i32, i32, i32
  }
  func.func @transform_2(%arg0: i32) -> (i32, i32, i32) {
    %c0_i32 = arith.constant 0 : i32
    %c0_i32_0 = arith.constant 0 : i32
    %c0_i32_1 = arith.constant 0 : i32
    %c0_i32_2 = arith.constant 0 : i32
    return %c0_i32, %c0_i32_0, %c0_i32_1 : i32, i32, i32
  }
  func.func @transform_3(%arg0: i32) -> (i32, i32, i32) {
    %c0_i32 = arith.constant 0 : i32
    %c0_i32_0 = arith.constant 0 : i32
    %c0_i32_1 = arith.constant 0 : i32
    %c0_i32_2 = arith.constant 0 : i32
    return %c0_i32, %c0_i32_0, %c0_i32_1 : i32, i32, i32
  }
}

</mosaic_0001>

<llo_original>
// kernel: single_sub_tree_seg_forward.3
$region0: #{single_sub_tree_seg_forward.3}
  #allocation0 [shape = 'u32[]', space=smem, size = 0x4, offset = 0x4, fixed_abs, tag = 'smem constant byte address 0x4 - core index']
  #allocation1 [shape = 'u32[144,128]{1,0:T(1,128)}', space=vmem, size = 0x12000, scoped, tag = 'internal scratch']
  %s0 = inlined_call_operand.vmem [shape: f32[12,8,8], index: 0, kind: input, shape index: {}]
  %s1 = inlined_call_operand.vmem [shape: f32[12,12,8], index: 1, kind: input, shape index: {}]
  %s2 = inlined_call_operand.vmem [shape: f32[12,8,12], index: 2, kind: input, shape index: {}]
  %s3 = inlined_call_operand.vmem [shape: f32[12,12,12], index: 3, kind: output, shape index: {}]
  %s4 = sld [smem:[#allocation0]]
  $region22: #{single_sub_tree_seg_forward.3} parent=0
    _
  %s6 = ssub.s32 1, %s4
  %s7 = scalar_select 0, %s6, %s4
  // Predicated region
  $region2: #{single_sub_tree_seg_forward.3} parent=0 // pred_check
    _
  $region3: #{single_sub_tree_seg_forward.3} parent=0 // pred_check_branch
    %9 = sbr.rel (0) target = $region5
  $region4: #{single_sub_tree_seg_forward.3} parent=0 // pred_region
    _
  $region5: #{single_sub_tree_seg_forward.3} parent=0 // pred_fallthru
    _
  // Predicated region
  $region6: #{single_sub_tree_seg_forward.3} parent=0 // pred_check
    _
  $region7: #{single_sub_tree_seg_forward.3} parent=0 // pred_check_branch
    %11 = sbr.rel (0) target = $region9
  $region8: #{single_sub_tree_seg_forward.3} parent=0 // pred_region
    _
  $region9: #{single_sub_tree_seg_forward.3} parent=0 // pred_fallthru
    _
  // Predicated region
  $region10: #{single_sub_tree_seg_forward.3} parent=0 // pred_check
    _
  $region11: #{single_sub_tree_seg_forward.3} parent=0 // pred_check_branch
    %13 = sbr.rel (0) target = $region13
  $region12: #{single_sub_tree_seg_forward.3} parent=0 // pred_region
    _
  $region13: #{single_sub_tree_seg_forward.3} parent=0 // pred_fallthru
    _
  %v14 = vld [vmem:[%s0] sm:$0xff]
  %v15 = vld [vmem:[%s0 + $0x8] sm:$0xff]
  %v16 = vld [vmem:[%s0 + $0x10] sm:$0xff]
  %v17 = vld [vmem:[%s0 + $0x18] sm:$0xff]
  %v18 = vld [vmem:[%s0 + $0x20] sm:$0xff]
  %v19 = vld [vmem:[%s0 + $0x28] sm:$0xff]
  %v20 = vld [vmem:[%s0 + $0x30] sm:$0xff]
  %v21 = vld [vmem:[%s0 + $0x38] sm:$0xff]
  %v22 = vld [vmem:[%s0 + $0x40] sm:$0xff]
  %v23 = vld [vmem:[%s0 + $0x48] sm:$0xff]
  %v24 = vld [vmem:[%s0 + $0x50] sm:$0xff]
  %v25 = vld [vmem:[%s0 + $0x58] sm:$0xff]
  %v26 = vld [vmem:[%s2] sm:$0xff]
  %v27 = vld [vmem:[%s2 + $0x8] sm:$0xff]
  %v28 = vld [vmem:[%s2 + $0x10] sm:$0xff]
  %v29 = vld [vmem:[%s2 + $0x18] sm:$0xff]
  %v30 = vld [vmem:[%s2 + $0x20] sm:$0xff]
  %v31 = vld [vmem:[%s2 + $0x28] sm:$0xff]
  %v32 = vld [vmem:[%s2 + $0x30] sm:$0xff]
  %v33 = vld [vmem:[%s2 + $0x38] sm:$0xff]
  %v34 = vld [vmem:[%s2 + $0x40] sm:$0xff]
  %v35 = vld [vmem:[%s2 + $0x48] sm:$0xff]
  %v36 = vld [vmem:[%s2 + $0x50] sm:$0xff]
  %v37 = vld [vmem:[%s2 + $0x58] sm:$0xff]
  %vm38 = vcmask 64512
  %v40 = vsel %vm38, %v14, 0
  %42 = vmatprep.subr.mxu0 0.0
  %43 = vmatpush1.msra.mxu0 %v26
  %44 = vmatprep.subr.mxu0 0.0
  %45 = vmatpush1.msra.mxu0 0.0
  %46 = vmatprep.subr.mxu0 0.0
  %47 = vmatpush1.msra.mxu0 0.0
  %48 = vmatprep.subr.mxu0 0.0
  %49 = vmatpush1.msra.mxu0 0.0
  %50 = vmatprep.subr.mxu0 0.0
  %51 = vmatpush1.msra.mxu0 0.0
  %52 = vmatprep.subr.mxu0 0.0
  %53 = vmatpush1.msra.mxu0 0.0
  %54 = vmatprep.subr.mxu0 0.0
  %55 = vmatpush1.msra.mxu0 0.0
  %56 = vmatprep.subr.mxu0 0.0
  %57 = vmatpush1.msra.mxu0 0.0
  %58 = vmatprep.subr.mxu0 0.0
  %59 = vmatpush1.msra.mxu0 0.0
  %60 = vmatprep.subr.mxu0 0.0
  %61 = vmatpush1.msra.mxu0 0.0
  %62 = vmatprep.subr.mxu0 0.0
  %63 = vmatpush1.msra.mxu0 0.0
  %64 = vmatprep.subr.mxu0 0.0
  %65 = vmatpush1.msra.mxu0 0.0
  %66 = vmatprep.subr.mxu0 0.0
  %67 = vmatpush1.msra.mxu0 0.0
  %68 = vmatprep.subr.mxu0 0.0
  %69 = vmatpush1.msra.mxu0 0.0
  %70 = vmatprep.subr.mxu0 0.0
  %71 = vmatpush1.msra.mxu0 0.0
  %72 = vmatprep.subr.mxu0 0.0
  %73 = vmatpush1.msra.mxu0 0.0
  %74 = vmatprep.subr.mxu0 0.0
  %75 = vmatpush1.msra.mxu0 0.0
  %76 = vmatprep.subr.mxu0 0.0
  %77 = vmatpush1.msra.mxu0 0.0
  %78 = vmatprep.subr.mxu0 0.0
  %79 = vmatpush1.msra.mxu0 0.0
  %80 = vmatprep.subr.mxu0 0.0
  %81 = vmatpush1.msra.mxu0 0.0
  %82 = vmatprep.subr.mxu0 0.0
  %83 = vmatpush1.msra.mxu0 0.0
  %84 = vmatprep.subr.mxu0 0.0
  %85 = vmatpush1.msra.mxu0 0.0
  %86 = vmatprep.subr.mxu0 0.0
  %87 = vmatpush1.msra.mxu0 0.0
  %88 = vmatprep.subr.mxu0 0.0
  %89 = vmatpush1.msra.mxu0 0.0
  %90 = vmatprep.subr.mxu0 0.0
  %91 = vmatpush1.msra.mxu0 0.0
  %92 = vmatprep.subr.mxu0 0.0
  %93 = vmatpush1.msra.mxu0 0.0
  %94 = vmatprep.subr.mxu0 0.0
  %95 = vmatpush1.msra.mxu0 0.0
  %96 = vmatprep.subr.mxu0 0.0
  %97 = vmatpush1.msra.mxu0 0.0
  %98 = vmatprep.subr.mxu0 0.0
  %99 = vmatpush1.msra.mxu0 0.0
  %100 = vmatprep.subr.mxu0 0.0
  %101 = vmatpush1.msra.mxu0 0.0
  %102 = vmatprep.subr.mxu0 0.0
  %103 = vmatpush1.msra.mxu0 0.0
  %104 = vmatprep.subr.mxu0 0.0
  %105 = vmatpush1.msra.mxu0 0.0
  %106 = vmatprep.mubr.f32.mxu0 0.0
  %107 = vmatmul.mubr.f32.gmra.mrb[0].mxu0 %v40
  %v108 = vpop.f32.mrb[0].mxu0
  %v109 = vadd.f32 0.0, %v108
  %v110 = vpop.f32.mrb[0].mxu0
  %111 = vdwg.mxu0
  %v113 = vsel %vm38, %v15, 0
  %115 = vmatprep.subr.mxu0 0.0
  %116 = vmatpush1.msra.mxu0 %v27
  %117 = vmatprep.subr.mxu0 0.0
  %118 = vmatpush1.msra.mxu0 0.0
  %119 = vmatprep.subr.mxu0 0.0
  %120 = vmatpush1.msra.mxu0 0.0
  %121 = vmatprep.subr.mxu0 0.0
  %122 = vmatpush1.msra.mxu0 0.0
  %123 = vmatprep.subr.mxu0 0.0
  %124 = vmatpush1.msra.mxu0 0.0
  %125 = vmatprep.subr.mxu0 0.0
  %126 = vmatpush1.msra.mxu0 0.0
  %127 = vmatprep.subr.mxu0 0.0
  %128 = vmatpush1.msra.mxu0 0.0
  %129 = vmatprep.subr.mxu0 0.0
  %130 = vmatpush1.msra.mxu0 0.0
  %131 = vmatprep.subr.mxu0 0.0
  %132 = vmatpush1.msra.mxu0 0.0
  %133 = vmatprep.subr.mxu0 0.0
  %134 = vmatpush1.msra.mxu0 0.0
  %135 = vmatprep.subr.mxu0 0.0
  %136 = vmatpush1.msra.mxu0 0.0
  %137 = vmatprep.subr.mxu0 0.0
  %138 = vmatpush1.msra.mxu0 0.0
  %139 = vmatprep.subr.mxu0 0.0
  %140 = vmatpush1.msra.mxu0 0.0
  %141 = vmatprep.subr.mxu0 0.0
  %142 = vmatpush1.msra.mxu0 0.0
  %143 = vmatprep.subr.mxu0 0.0
  %144 = vmatpush1.msra.mxu0 0.0
  %145 = vmatprep.subr.mxu0 0.0
  %146 = vmatpush1.msra.mxu0 0.0
  %147 = vmatprep.subr.mxu0 0.0
  %148 = vmatpush1.msra.mxu0 0.0
  %149 = vmatprep.subr.mxu0 0.0
  %150 = vmatpush1.msra.mxu0 0.0
  %151 = vmatprep.subr.mxu0 0.0
  %152 = vmatpush1.msra.mxu0 0.0
  %153 = vmatprep.subr.mxu0 0.0
  %154 = vmatpush1.msra.mxu0 0.0
  %155 = vmatprep.subr.mxu0 0.0
  %156 = vmatpush1.msra.mxu0 0.0
  %157 = vmatprep.subr.mxu0 0.0
  %158 = vmatpush1.msra.mxu0 0.0
  %159 = vmatprep.subr.mxu0 0.0
  %160 = vmatpush1.msra.mxu0 0.0
  %161 = vmatprep.subr.mxu0 0.0
  %162 = vmatpush1.msra.mxu0 0.0
  %163 = vmatprep.subr.mxu0 0.0
  %164 = vmatpush1.msra.mxu0 0.0
  %165 = vmatprep.subr.mxu0 0.0
  %166 = vmatpush1.msra.mxu0 0.0
  %167 = vmatprep.subr.mxu0 0.0
  %168 = vmatpush1.msra.mxu0 0.0
  %169 = vmatprep.subr.mxu0 0.0
  %170 = vmatpush1.msra.mxu0 0.0
  %171 = vmatprep.subr.mxu0 0.0
  %172 = vmatpush1.msra.mxu0 0.0
  %173 = vmatprep.subr.mxu0 0.0
  %174 = vmatpush1.msra.mxu0 0.0
  %175 = vmatprep.subr.mxu0 0.0
  %176 = vmatpush1.msra.mxu0 0.0
  %177 = vmatprep.subr.mxu0 0.0
  %178 = vmatpush1.msra.mxu0 0.0
  %179 = vmatprep.mubr.f32.mxu0 0.0
  %180 = vmatmul.mubr.f32.gmra.mrb[0].mxu0 %v113
  %v181 = vpop.f32.mrb[0].mxu0
  %v182 = vadd.f32 0.0, %v181
  %v183 = vpop.f32.mrb[0].mxu0
  %184 = vdwg.mxu0
  %v186 = vsel %vm38, %v16, 0
  %188 = vmatprep.subr.mxu0 0.0
  %189 = vmatpush1.msra.mxu0 %v28
  %190 = vmatprep.subr.mxu0 0.0
  %191 = vmatpush1.msra.mxu0 0.0
  %192 = vmatprep.subr.mxu0 0.0
  %193 = vmatpush1.msra.mxu0 0.0
  %194 = vmatprep.subr.mxu0 0.0
  %195 = vmatpush1.msra.mxu0 0.0
  %196 = vmatprep.subr.mxu0 0.0
  %197 = vmatpush1.msra.mxu0 0.0
  %198 = vmatprep.subr.mxu0 0.0
  %199 = vmatpush1.msra.mxu0 0.0
  %200 = vmatprep.subr.mxu0 0.0
  %201 = vmatpush1.msra.mxu0 0.0
  %202 = vmatprep.subr.mxu0 0.0
  %203 = vmatpush1.msra.mxu0 0.0
  %204 = vmatprep.subr.mxu0 0.0
  %205 = vmatpush1.msra.mxu0 0.0
  %206 = vmatprep.subr.mxu0 0.0
  %207 = vmatpush1.msra.mxu0 0.0
  %208 = vmatprep.subr.mxu0 0.0
  %209 = vmatpush1.msra.mxu0 0.0
  %210 = vmatprep.subr.mxu0 0.0
  %211 = vmatpush1.msra.mxu0 0.0
  %212 = vmatprep.subr.mxu0 0.0
  %213 = vmatpush1.msra.mxu0 0.0
  %214 = vmatprep.subr.mxu0 0.0
  %215 = vmatpush1.msra.mxu0 0.0
  %216 = vmatprep.subr.mxu0 0.0
  %217 = vmatpush1.msra.mxu0 0.0
  %218 = vmatprep.subr.mxu0 0.0
  %219 = vmatpush1.msra.mxu0 0.0
  %220 = vmatprep.subr.mxu0 0.0
  %221 = vmatpush1.msra.mxu0 0.0
  %222 = vmatprep.subr.mxu0 0.0
  %223 = vmatpush1.msra.mxu0 0.0
  %224 = vmatprep.subr.mxu0 0.0
  %225 = vmatpush1.msra.mxu0 0.0
  %226 = vmatprep.subr.mxu0 0.0
  %227 = vmatpush1.msra.mxu0 0.0
  %228 = vmatprep.subr.mxu0 0.0
  %229 = vmatpush1.msra.mxu0 0.0
  %230 = vmatprep.subr.mxu0 0.0
  %231 = vmatpush1.msra.mxu0 0.0
  %232 = vmatprep.subr.mxu0 0.0
  %233 = vmatpush1.msra.mxu0 0.0
  %234 = vmatprep.subr.mxu0 0.0
  %235 = vmatpush1.msra.mxu0 0.0
  %236 = vmatprep.subr.mxu0 0.0
  %237 = vmatpush1.msra.mxu0 0.0
  %238 = vmatprep.subr.mxu0 0.0
  %239 = vmatpush1.msra.mxu0 0.0
  %240 = vmatprep.subr.mxu0 0.0
  %241 = vmatpush1.msra.mxu0 0.0
  %242 = vmatprep.subr.mxu0 0.0
  %243 = vmatpush1.msra.mxu0 0.0
  %244 = vmatprep.subr.mxu0 0.0
  %245 = vmatpush1.msra.mxu0 0.0
  %246 = vmatprep.subr.mxu0 0.0
  %247 = vmatpush1.msra.mxu0 0.0
  %248 = vmatprep.subr.mxu0 0.0
  %249 = vmatpush1.msra.mxu0 0.0
  %250 = vmatprep.subr.mxu0 0.0
  %251 = vmatpush1.msra.mxu0 0.0
  %252 = vmatprep.mubr.f32.mxu0 0.0
  %253 = vmatmul.mubr.f32.gmra.mrb[0].mxu0 %v186
  %v254 = vpop.f32.mrb[0].mxu0
  %v255 = vadd.f32 0.0, %v254
  %v256 = vpop.f32.mrb[0].mxu0
  %257 = vdwg.mxu0
  %v259 = vsel %vm38, %v17, 0
  %261 = vmatprep.subr.mxu0 0.0
  %262 = vmatpush1.msra.mxu0 %v29
  %263 = vmatprep.subr.mxu0 0.0
  %264 = vmatpush1.msra.mxu0 0.0
  %265 = vmatprep.subr.mxu0 0.0
  %266 = vmatpush1.msra.mxu0 0.0
  %267 = vmatprep.subr.mxu0 0.0
  %268 = vmatpush1.msra.mxu0 0.0
  %269 = vmatprep.subr.mxu0 0.0
  %270 = vmatpush1.msra.mxu0 0.0
  %271 = vmatprep.subr.mxu0 0.0
  %272 = vmatpush1.msra.mxu0 0.0
  %273 = vmatprep.subr.mxu0 0.0
  %274 = vmatpush1.msra.mxu0 0.0
  %275 = vmatprep.subr.mxu0 0.0
  %276 = vmatpush1.msra.mxu0 0.0
  %277 = vmatprep.subr.mxu0 0.0
  %278 = vmatpush1.msra.mxu0 0.0
  %279 = vmatprep.subr.mxu0 0.0
  %280 = vmatpush1.msra.mxu0 0.0
  %281 = vmatprep.subr.mxu0 0.0
  %282 = vmatpush1.msra.mxu0 0.0
  %283 = vmatprep.subr.mxu0 0.0
  %284 = vmatpush1.msra.mxu0 0.0
  %285 = vmatprep.subr.mxu0 0.0
  %286 = vmatpush1.msra.mxu0 0.0
  %287 = vmatprep.subr.mxu0 0.0
  %288 = vmatpush1.msra.mxu0 0.0
  %289 = vmatprep.subr.mxu0 0.0
  %290 = vmatpush1.msra.mxu0 0.0
  %291 = vmatprep.subr.mxu0 0.0
  %292 = vmatpush1.msra.mxu0 0.0
  %293 = vmatprep.subr.mxu0 0.0
  %294 = vmatpush1.msra.mxu0 0.0
  %295 = vmatprep.subr.mxu0 0.0
  %296 = vmatpush1.msra.mxu0 0.0
  %297 = vmatprep.subr.mxu0 0.0
  %298 = vmatpush1.msra.mxu0 0.0
  %299 = vmatprep.subr.mxu0 0.0
  %300 = vmatpush1.msra.mxu0 0.0
  %301 = vmatprep.subr.mxu0 0.0
  %302 = vmatpush1.msra.mxu0 0.0
  %303 = vmatprep.subr.mxu0 0.0
  %304 = vmatpush1.msra.mxu0 0.0
  %305 = vmatprep.subr.mxu0 0.0
  %306 = vmatpush1.msra.mxu0 0.0
  %307 = vmatprep.subr.mxu0 0.0
  %308 = vmatpush1.msra.mxu0 0.0
  %309 = vmatprep.subr.mxu0 0.0
  %310 = vmatpush1.msra.mxu0 0.0
  %311 = vmatprep.subr.mxu0 0.0
  %312 = vmatpush1.msra.mxu0 0.0
  %313 = vmatprep.subr.mxu0 0.0
  %314 = vmatpush1.msra.mxu0 0.0
  %315 = vmatprep.subr.mxu0 0.0
  %316 = vmatpush1.msra.mxu0 0.0
  %317 = vmatprep.subr.mxu0 0.0
  %318 = vmatpush1.msra.mxu0 0.0
  %319 = vmatprep.subr.mxu0 0.0
  %320 = vmatpush1.msra.mxu0 0.0
  %321 = vmatprep.subr.mxu0 0.0
  %322 = vmatpush1.msra.mxu0 0.0
  %323 = vmatprep.subr.mxu0 0.0
  %324 = vmatpush1.msra.mxu0 0.0
  %325 = vmatprep.mubr.f32.mxu0 0.0
  %326 = vmatmul.mubr.f32.gmra.mrb[0].mxu0 %v259
  %v327 = vpop.f32.mrb[0].mxu0
  %v328 = vadd.f32 0.0, %v327
  %v329 = vpop.f32.mrb[0].mxu0
  %330 = vdwg.mxu0
  %v332 = vsel %vm38, %v18, 0
  %334 = vmatprep.subr.mxu0 0.0
  %335 = vmatpush1.msra.mxu0 %v30
  %336 = vmatprep.subr.mxu0 0.0
  %337 = vmatpush1.msra.mxu0 0.0
  %338 = vmatprep.subr.mxu0 0.0
  %339 = vmatpush1.msra.mxu0 0.0
  %340 = vmatprep.subr.mxu0 0.0
  %341 = vmatpush1.msra.mxu0 0.0
  %342 = vmatprep.subr.mxu0 0.0
  %343 = vmatpush1.msra.mxu0 0.0
  %344 = vmatprep.subr.mxu0 0.0
  %345 = vmatpush1.msra.mxu0 0.0
  %346 = vmatprep.subr.mxu0 0.0
  %347 = vmatpush1.msra.mxu0 0.0
  %348 = vmatprep.subr.mxu0 0.0
  %349 = vmatpush1.msra.mxu0 0.0
  %350 = vmatprep.subr.mxu0 0.0
  %351 = vmatpush1.msra.mxu0 0.0
  %352 = vmatprep.subr.mxu0 0.0
  %353 = vmatpush1.msra.mxu0 0.0
  %354 = vmatprep.subr.mxu0 0.0
  %355 = vmatpush1.msra.mxu0 0.0
  %356 = vmatprep.subr.mxu0 0.0
  %357 = vmatpush1.msra.mxu0 0.0
  %358 = vmatprep.subr.mxu0 0.0
  %359 = vmatpush1.msra.mxu0 0.0
  %360 = vmatprep.subr.mxu0 0.0
  %361 = vmatpush1.msra.mxu0 0.0
  %362 = vmatprep.subr.mxu0 0.0
  %363 = vmatpush1.msra.mxu0 0.0
  %364 = vmatprep.subr.mxu0 0.0
  %365 = vmatpush1.msra.mxu0 0.0
  %366 = vmatprep.subr.mxu0 0.0
  %367 = vmatpush1.msra.mxu0 0.0
  %368 = vmatprep.subr.mxu0 0.0
  %369 = vmatpush1.msra.mxu0 0.0
  %370 = vmatprep.subr.mxu0 0.0
  %371 = vmatpush1.msra.mxu0 0.0
  %372 = vmatprep.subr.mxu0 0.0
  %373 = vmatpush1.msra.mxu0 0.0
  %374 = vmatprep.subr.mxu0 0.0
  %375 = vmatpush1.msra.mxu0 0.0
  %376 = vmatprep.subr.mxu0 0.0
  %377 = vmatpush1.msra.mxu0 0.0
  %378 = vmatprep.subr.mxu0 0.0
  %379 = vmatpush1.msra.mxu0 0.0
  %380 = vmatprep.subr.mxu0 0.0
  %381 = vmatpush1.msra.mxu0 0.0
  %382 = vmatprep.subr.mxu0 0.0
  %383 = vmatpush1.msra.mxu0 0.0
  %384 = vmatprep.subr.mxu0 0.0
  %385 = vmatpush1.msra.mxu0 0.0
  %386 = vmatprep.subr.mxu0 0.0
  %387 = vmatpush1.msra.mxu0 0.0
  %388 = vmatprep.subr.mxu0 0.0
  %389 = vmatpush1.msra.mxu0 0.0
  %390 = vmatprep.subr.mxu0 0.0
  %391 = vmatpush1.msra.mxu0 0.0
  %392 = vmatprep.subr.mxu0 0.0
  %393 = vmatpush1.msra.mxu0 0.0
  %394 = vmatprep.subr.mxu0 0.0
  %395 = vmatpush1.msra.mxu0 0.0
  %396 = vmatprep.subr.mxu0 0.0
  %397 = vmatpush1.msra.mxu0 0.0
  %398 = vmatprep.mubr.f32.mxu0 0.0
  %399 = vmatmul.mubr.f32.gmra.mrb[0].mxu0 %v332
  %v400 = vpop.f32.mrb[0].mxu0
  %v401 = vadd.f32 0.0, %v400
  %v402 = vpop.f32.mrb[0].mxu0
  %403 = vdwg.mxu0
  %v405 = vsel %vm38, %v19, 0
  %407 = vmatprep.subr.mxu0 0.0
  %408 = vmatpush1.msra.mxu0 %v31
  %409 = vmatprep.subr.mxu0 0.0
  %410 = vmatpush1.msra.mxu0 0.0
  %411 = vmatprep.subr.mxu0 0.0
  %412 = vmatpush1.msra.mxu0 0.0
  %413 = vmatprep.subr.mxu0 0.0
  %414 = vmatpush1.msra.mxu0 0.0
  %415 = vmatprep.subr.mxu0 0.0
  %416 = vmatpush1.msra.mxu0 0.0
  %417 = vmatprep.subr.mxu0 0.0
  %418 = vmatpush1.msra.mxu0 0.0
  %419 = vmatprep.subr.mxu0 0.0
  %420 = vmatpush1.msra.mxu0 0.0
  %421 = vmatprep.subr.mxu0 0.0
  %422 = vmatpush1.msra.mxu0 0.0
  %423 = vmatprep.subr.mxu0 0.0
  %424 = vmatpush1.msra.mxu0 0.0
  %425 = vmatprep.subr.mxu0 0.0
  %426 = vmatpush1.msra.mxu0 0.0
  %427 = vmatprep.subr.mxu0 0.0
  %428 = vmatpush1.msra.mxu0 0.0
  %429 = vmatprep.subr.mxu0 0.0
  %430 = vmatpush1.msra.mxu0 0.0
  %431 = vmatprep.subr.mxu0 0.0
  %432 = vmatpush1.msra.mxu0 0.0
  %433 = vmatprep.subr.mxu0 0.0
  %434 = vmatpush1.msra.mxu0 0.0
  %435 = vmatprep.subr.mxu0 0.0
  %436 = vmatpush1.msra.mxu0 0.0
  %437 = vmatprep.subr.mxu0 0.0
  %438 = vmatpush1.msra.mxu0 0.0
  %439 = vmatprep.subr.mxu0 0.0
  %440 = vmatpush1.msra.mxu0 0.0
  %441 = vmatprep.subr.mxu0 0.0
  %442 = vmatpush1.msra.mxu0 0.0
  %443 = vmatprep.subr.mxu0 0.0
  %444 = vmatpush1.msra.mxu0 0.0
  %445 = vmatprep.subr.mxu0 0.0
  %446 = vmatpush1.msra.mxu0 0.0
  %447 = vmatprep.subr.mxu0 0.0
  %448 = vmatpush1.msra.mxu0 0.0
  %449 = vmatprep.subr.mxu0 0.0
  %450 = vmatpush1.msra.mxu0 0.0
  %451 = vmatprep.subr.mxu0 0.0
  %452 = vmatpush1.msra.mxu0 0.0
  %453 = vmatprep.subr.mxu0 0.0
  %454 = vmatpush1.msra.mxu0 0.0
  %455 = vmatprep.subr.mxu0 0.0
  %456 = vmatpush1.msra.mxu0 0.0
  %457 = vmatprep.subr.mxu0 0.0
  %458 = vmatpush1.msra.mxu0 0.0
  %459 = vmatprep.subr.mxu0 0.0
  %460 = vmatpush1.msra.mxu0 0.0
  %461 = vmatprep.subr.mxu0 0.0
  %462 = vmatpush1.msra.mxu0 0.0
  %463 = vmatprep.subr.mxu0 0.0
  %464 = vmatpush1.msra.mxu0 0.0
  %465 = vmatprep.subr.mxu0 0.0
  %466 = vmatpush1.msra.mxu0 0.0
  %467 = vmatprep.subr.mxu0 0.0
  %468 = vmatpush1.msra.mxu0 0.0
  %469 = vmatprep.subr.mxu0 0.0
  %470 = vmatpush1.msra.mxu0 0.0
  %471 = vmatprep.mubr.f32.mxu0 0.0
  %472 = vmatmul.mubr.f32.gmra.mrb[0].mxu0 %v405
  %v473 = vpop.f32.mrb[0].mxu0
  %v474 = vadd.f32 0.0, %v473
  %v475 = vpop.f32.mrb[0].mxu0
  %476 = vdwg.mxu0
  %v478 = vsel %vm38, %v20, 0
  %480 = vmatprep.subr.mxu0 0.0
  %481 = vmatpush1.msra.mxu0 %v32
  %482 = vmatprep.subr.mxu0 0.0
  %483 = vmatpush1.msra.mxu0 0.0
  %484 = vmatprep.subr.mxu0 0.0
  %485 = vmatpush1.msra.mxu0 0.0
  %486 = vmatprep.subr.mxu0 0.0
  %487 = vmatpush1.msra.mxu0 0.0
  %488 = vmatprep.subr.mxu0 0.0
  %489 = vmatpush1.msra.mxu0 0.0
  %490 = vmatprep.subr.mxu0 0.0
  %491 = vmatpush1.msra.mxu0 0.0
  %492 = vmatprep.subr.mxu0 0.0
  %493 = vmatpush1.msra.mxu0 0.0
  %494 = vmatprep.subr.mxu0 0.0
  %495 = vmatpush1.msra.mxu0 0.0
  %496 = vmatprep.subr.mxu0 0.0
  %497 = vmatpush1.msra.mxu0 0.0
  %498 = vmatprep.subr.mxu0 0.0
  %499 = vmatpush1.msra.mxu0 0.0
  %500 = vmatprep.subr.mxu0 0.0
  %501 = vmatpush1.msra.mxu0 0.0
  %502 = vmatprep.subr.mxu0 0.0
  %503 = vmatpush1.msra.mxu0 0.0
  %504 = vmatprep.subr.mxu0 0.0
  %505 = vmatpush1.msra.mxu0 0.0
  %506 = vmatprep.subr.mxu0 0.0
  %507 = vmatpush1.msra.mxu0 0.0
  %508 = vmatprep.subr.mxu0 0.0
  %509 = vmatpush1.msra.mxu0 0.0
  %510 = vmatprep.subr.mxu0 0.0
  %511 = vmatpush1.msra.mxu0 0.0
  %512 = vmatprep.subr.mxu0 0.0
  %513 = vmatpush1.msra.mxu0 0.0
  %514 = vmatprep.subr.mxu0 0.0
  %515 = vmatpush1.msra.mxu0 0.0
  %516 = vmatprep.subr.mxu0 0.0
  %517 = vmatpush1.msra.mxu0 0.0
  %518 = vmatprep.subr.mxu0 0.0
  %519 = vmatpush1.msra.mxu0 0.0
  %520 = vmatprep.subr.mxu0 0.0
  %521 = vmatpush1.msra.mxu0 0.0
  %522 = vmatprep.subr.mxu0 0.0
  %523 = vmatpush1.msra.mxu0 0.0
  %524 = vmatprep.subr.mxu0 0.0
  %525 = vmatpush1.msra.mxu0 0.0
  %526 = vmatprep.subr.mxu0 0.0
  %527 = vmatpush1.msra.mxu0 0.0
  %528 = vmatprep.subr.mxu0 0.0
  %529 = vmatpush1.msra.mxu0 0.0
  %530 = vmatprep.subr.mxu0 0.0
  %531 = vmatpush1.msra.mxu0 0.0
  %532 = vmatprep.subr.mxu0 0.0
  %533 = vmatpush1.msra.mxu0 0.0
  %534 = vmatprep.subr.mxu0 0.0
  %535 = vmatpush1.msra.mxu0 0.0
  %536 = vmatprep.subr.mxu0 0.0
  %537 = vmatpush1.msra.mxu0 0.0
  %538 = vmatprep.subr.mxu0 0.0
  %539 = vmatpush1.msra.mxu0 0.0
  %540 = vmatprep.subr.mxu0 0.0
  %541 = vmatpush1.msra.mxu0 0.0
  %542 = vmatprep.subr.mxu0 0.0
  %543 = vmatpush1.msra.mxu0 0.0
  %544 = vmatprep.mubr.f32.mxu0 0.0
  %545 = vmatmul.mubr.f32.gmra.mrb[0].mxu0 %v478
  %v546 = vpop.f32.mrb[0].mxu0
  %v547 = vadd.f32 0.0, %v546
  %v548 = vpop.f32.mrb[0].mxu0
  %549 = vdwg.mxu0
  %v551 = vsel %vm38, %v21, 0
  %553 = vmatprep.subr.mxu0 0.0
  %554 = vmatpush1.msra.mxu0 %v33
  %555 = vmatprep.subr.mxu0 0.0
  %556 = vmatpush1.msra.mxu0 0.0
  %557 = vmatprep.subr.mxu0 0.0
  %558 = vmatpush1.msra.mxu0 0.0
  %559 = vmatprep.subr.mxu0 0.0
  %560 = vmatpush1.msra.mxu0 0.0
  %561 = vmatprep.subr.mxu0 0.0
  %562 = vmatpush1.msra.mxu0 0.0
  %563 = vmatprep.subr.mxu0 0.0
  %564 = vmatpush1.msra.mxu0 0.0
  %565 = vmatprep.subr.mxu0 0.0
  %566 = vmatpush1.msra.mxu0 0.0
  %567 = vmatprep.subr.mxu0 0.0
  %568 = vmatpush1.msra.mxu0 0.0
  %569 = vmatprep.subr.mxu0 0.0
  %570 = vmatpush1.msra.mxu0 0.0
  %571 = vmatprep.subr.mxu0 0.0
  %572 = vmatpush1.msra.mxu0 0.0
  %573 = vmatprep.subr.mxu0 0.0
  %574 = vmatpush1.msra.mxu0 0.0
  %575 = vmatprep.subr.mxu0 0.0
  %576 = vmatpush1.msra.mxu0 0.0
  %577 = vmatprep.subr.mxu0 0.0
  %578 = vmatpush1.msra.mxu0 0.0
  %579 = vmatprep.subr.mxu0 0.0
  %580 = vmatpush1.msra.mxu0 0.0
  %581 = vmatprep.subr.mxu0 0.0
  %582 = vmatpush1.msra.mxu0 0.0
  %583 = vmatprep.subr.mxu0 0.0
  %584 = vmatpush1.msra.mxu0 0.0
  %585 = vmatprep.subr.mxu0 0.0
  %586 = vmatpush1.msra.mxu0 0.0
  %587 = vmatprep.subr.mxu0 0.0
  %588 = vmatpush1.msra.mxu0 0.0
  %589 = vmatprep.subr.mxu0 0.0
  %590 = vmatpush1.msra.mxu0 0.0
  %591 = vmatprep.subr.mxu0 0.0
  %592 = vmatpush1.msra.mxu0 0.0
  %593 = vmatprep.subr.mxu0 0.0
  %594 = vmatpush1.msra.mxu0 0.0
  %595 = vmatprep.subr.mxu0 0.0
  %596 = vmatpush1.msra.mxu0 0.0
  %597 = vmatprep.subr.mxu0 0.0
  %598 = vmatpush1.msra.mxu0 0.0
  %599 = vmatprep.subr.mxu0 0.0
  %600 = vmatpush1.msra.mxu0 0.0
  %601 = vmatprep.subr.mxu0 0.0
  %602 = vmatpush1.msra.mxu0 0.0
  %603 = vmatprep.subr.mxu0 0.0
  %604 = vmatpush1.msra.mxu0 0.0
  %605 = vmatprep.subr.mxu0 0.0
  %606 = vmatpush1.msra.mxu0 0.0
  %607 = vmatprep.subr.mxu0 0.0
  %608 = vmatpush1.msra.mxu0 0.0
  %609 = vmatprep.subr.mxu0 0.0
  %610 = vmatpush1.msra.mxu0 0.0
  %611 = vmatprep.subr.mxu0 0.0
  %612 = vmatpush1.msra.mxu0 0.0
  %613 = vmatprep.subr.mxu0 0.0
  %614 = vmatpush1.msra.mxu0 0.0
  %615 = vmatprep.subr.mxu0 0.0
  %616 = vmatpush1.msra.mxu0 0.0
  %617 = vmatprep.mubr.f32.mxu0 0.0
  %618 = vmatmul.mubr.f32.gmra.mrb[0].mxu0 %v551
  %v619 = vpop.f32.mrb[0].mxu0
  %v620 = vadd.f32 0.0, %v619
  %v621 = vpop.f32.mrb[0].mxu0
  %622 = vdwg.mxu0
  %v624 = vsel %vm38, %v22, 0
  %626 = vmatprep.subr.mxu0 0.0
  %627 = vmatpush1.msra.mxu0 %v34
  %628 = vmatprep.subr.mxu0 0.0
  %629 = vmatpush1.msra.mxu0 0.0
  %630 = vmatprep.subr.mxu0 0.0
  %631 = vmatpush1.msra.mxu0 0.0
  %632 = vmatprep.subr.mxu0 0.0
  %633 = vmatpush1.msra.mxu0 0.0
  %634 = vmatprep.subr.mxu0 0.0
  %635 = vmatpush1.msra.mxu0 0.0
  %636 = vmatprep.subr.mxu0 0.0
  %637 = vmatpush1.msra.mxu0 0.0
  %638 = vmatprep.subr.mxu0 0.0
  %639 = vmatpush1.msra.mxu0 0.0
  %640 = vmatprep.subr.mxu0 0.0
  %641 = vmatpush1.msra.mxu0 0.0
  %642 = vmatprep.subr.mxu0 0.0
  %643 = vmatpush1.msra.mxu0 0.0
  %644 = vmatprep.subr.mxu0 0.0
  %645 = vmatpush1.msra.mxu0 0.0
  %646 = vmatprep.subr.mxu0 0.0
  %647 = vmatpush1.msra.mxu0 0.0
  %648 = vmatprep.subr.mxu0 0.0
  %649 = vmatpush1.msra.mxu0 0.0
  %650 = vmatprep.subr.mxu0 0.0
  %651 = vmatpush1.msra.mxu0 0.0
  %652 = vmatprep.subr.mxu0 0.0
  %653 = vmatpush1.msra.mxu0 0.0
  %654 = vmatprep.subr.mxu0 0.0
  %655 = vmatpush1.msra.mxu0 0.0
  %656 = vmatprep.subr.mxu0 0.0
  %657 = vmatpush1.msra.mxu0 0.0
  %658 = vmatprep.subr.mxu0 0.0
  %659 = vmatpush1.msra.mxu0 0.0
  %660 = vmatprep.subr.mxu0 0.0
  %661 = vmatpush1.msra.mxu0 0.0
  %662 = vmatprep.subr.mxu0 0.0
  %663 = vmatpush1.msra.mxu0 0.0
  %664 = vmatprep.subr.mxu0 0.0
  %665 = vmatpush1.msra.mxu0 0.0
  %666 = vmatprep.subr.mxu0 0.0
  %667 = vmatpush1.msra.mxu0 0.0
  %668 = vmatprep.subr.mxu0 0.0
  %669 = vmatpush1.msra.mxu0 0.0
  %670 = vmatprep.subr.mxu0 0.0
  %671 = vmatpush1.msra.mxu0 0.0
  %672 = vmatprep.subr.mxu0 0.0
  %673 = vmatpush1.msra.mxu0 0.0
  %674 = vmatprep.subr.mxu0 0.0
  %675 = vmatpush1.msra.mxu0 0.0
  %676 = vmatprep.subr.mxu0 0.0
  %677 = vmatpush1.msra.mxu0 0.0
  %678 = vmatprep.subr.mxu0 0.0
  %679 = vmatpush1.msra.mxu0 0.0
  %680 = vmatprep.subr.mxu0 0.0
  %681 = vmatpush1.msra.mxu0 0.0
  %682 = vmatprep.subr.mxu0 0.0
  %683 = vmatpush1.msra.mxu0 0.0
  %684 = vmatprep.subr.mxu0 0.0
  %685 = vmatpush1.msra.mxu0 0.0
  %686 = vmatprep.subr.mxu0 0.0
  %687 = vmatpush1.msra.mxu0 0.0
  %688 = vmatprep.subr.mxu0 0.0
  %689 = vmatpush1.msra.mxu0 0.0
  %690 = vmatprep.mubr.f32.mxu0 0.0
  %691 = vmatmul.mubr.f32.gmra.mrb[0].mxu0 %v624
  %v692 = vpop.f32.mrb[0].mxu0
  %v693 = vadd.f32 0.0, %v692
  %v694 = vpop.f32.mrb[0].mxu0
  %695 = vdwg.mxu0
  %v697 = vsel %vm38, %v23, 0
  %699 = vmatprep.subr.mxu0 0.0
  %700 = vmatpush1.msra.mxu0 %v35
  %701 = vmatprep.subr.mxu0 0.0
  %702 = vmatpush1.msra.mxu0 0.0
  %703 = vmatprep.subr.mxu0 0.0
  %704 = vmatpush1.msra.mxu0 0.0
  %705 = vmatprep.subr.mxu0 0.0
  %706 = vmatpush1.msra.mxu0 0.0
  %707 = vmatprep.subr.mxu0 0.0
  %708 = vmatpush1.msra.mxu0 0.0
  %709 = vmatprep.subr.mxu0 0.0
  %710 = vmatpush1.msra.mxu0 0.0
  %711 = vmatprep.subr.mxu0 0.0
  %712 = vmatpush1.msra.mxu0 0.0
  %713 = vmatprep.subr.mxu0 0.0
  %714 = vmatpush1.msra.mxu0 0.0
  %715 = vmatprep.subr.mxu0 0.0
  %716 = vmatpush1.msra.mxu0 0.0
  %717 = vmatprep.subr.mxu0 0.0
  %718 = vmatpush1.msra.mxu0 0.0
  %719 = vmatprep.subr.mxu0 0.0
  %720 = vmatpush1.msra.mxu0 0.0
  %721 = vmatprep.subr.mxu0 0.0
  %722 = vmatpush1.msra.mxu0 0.0
  %723 = vmatprep.subr.mxu0 0.0
  %724 = vmatpush1.msra.mxu0 0.0
  %725 = vmatprep.subr.mxu0 0.0
  %726 = vmatpush1.msra.mxu0 0.0
  %727 = vmatprep.subr.mxu0 0.0
  %728 = vmatpush1.msra.mxu0 0.0
  %729 = vmatprep.subr.mxu0 0.0
  %730 = vmatpush1.msra.mxu0 0.0
  %731 = vmatprep.subr.mxu0 0.0
  %732 = vmatpush1.msra.mxu0 0.0
  %733 = vmatprep.subr.mxu0 0.0
  %734 = vmatpush1.msra.mxu0 0.0
  %735 = vmatprep.subr.mxu0 0.0
  %736 = vmatpush1.msra.mxu0 0.0
  %737 = vmatprep.subr.mxu0 0.0
  %738 = vmatpush1.msra.mxu0 0.0
  %739 = vmatprep.subr.mxu0 0.0
  %740 = vmatpush1.msra.mxu0 0.0
  %741 = vmatprep.subr.mxu0 0.0
  %742 = vmatpush1.msra.mxu0 0.0
  %743 = vmatprep.subr.mxu0 0.0
  %744 = vmatpush1.msra.mxu0 0.0
  %745 = vmatprep.subr.mxu0 0.0
  %746 = vmatpush1.msra.mxu0 0.0
  %747 = vmatprep.subr.mxu0 0.0
  %748 = vmatpush1.msra.mxu0 0.0
  %749 = vmatprep.subr.mxu0 0.0
  %750 = vmatpush1.msra.mxu0 0.0
  %751 = vmatprep.subr.mxu0 0.0
  %752 = vmatpush1.msra.mxu0 0.0
  %753 = vmatprep.subr.mxu0 0.0
  %754 = vmatpush1.msra.mxu0 0.0
  %755 = vmatprep.subr.mxu0 0.0
  %756 = vmatpush1.msra.mxu0 0.0
  %757 = vmatprep.subr.mxu0 0.0
  %758 = vmatpush1.msra.mxu0 0.0
  %759 = vmatprep.subr.mxu0 0.0
  %760 = vmatpush1.msra.mxu0 0.0
  %761 = vmatprep.subr.mxu0 0.0
  %762 = vmatpush1.msra.mxu0 0.0
  %763 = vmatprep.mubr.f32.mxu0 0.0
  %764 = vmatmul.mubr.f32.gmra.mrb[0].mxu0 %v697
  %v765 = vpop.f32.mrb[0].mxu0
  %v766 = vadd.f32 0.0, %v765
  %v767 = vpop.f32.mrb[0].mxu0
  %768 = vdwg.mxu0
  %v770 = vsel %vm38, %v24, 0
  %772 = vmatprep.subr.mxu0 0.0
  %773 = vmatpush1.msra.mxu0 %v36
  %774 = vmatprep.subr.mxu0 0.0
  %775 = vmatpush1.msra.mxu0 0.0
  %776 = vmatprep.subr.mxu0 0.0
  %777 = vmatpush1.msra.mxu0 0.0
  %778 = vmatprep.subr.mxu0 0.0
  %779 = vmatpush1.msra.mxu0 0.0
  %780 = vmatprep.subr.mxu0 0.0
  %781 = vmatpush1.msra.mxu0 0.0
  %782 = vmatprep.subr.mxu0 0.0
  %783 = vmatpush1.msra.mxu0 0.0
  %784 = vmatprep.subr.mxu0 0.0
  %785 = vmatpush1.msra.mxu0 0.0
  %786 = vmatprep.subr.mxu0 0.0
  %787 = vmatpush1.msra.mxu0 0.0
  %788 = vmatprep.subr.mxu0 0.0
  %789 = vmatpush1.msra.mxu0 0.0
  %790 = vmatprep.subr.mxu0 0.0
  %791 = vmatpush1.msra.mxu0 0.0
  %792 = vmatprep.subr.mxu0 0.0
  %793 = vmatpush1.msra.mxu0 0.0
  %794 = vmatprep.subr.mxu0 0.0
  %795 = vmatpush1.msra.mxu0 0.0
  %796 = vmatprep.subr.mxu0 0.0
  %797 = vmatpush1.msra.mxu0 0.0
  %798 = vmatprep.subr.mxu0 0.0
  %799 = vmatpush1.msra.mxu0 0.0
  %800 = vmatprep.subr.mxu0 0.0
  %801 = vmatpush1.msra.mxu0 0.0
  %802 = vmatprep.subr.mxu0 0.0
  %803 = vmatpush1.msra.mxu0 0.0
  %804 = vmatprep.subr.mxu0 0.0
  %805 = vmatpush1.msra.mxu0 0.0
  %806 = vmatprep.subr.mxu0 0.0
  %807 = vmatpush1.msra.mxu0 0.0
  %808 = vmatprep.subr.mxu0 0.0
  %809 = vmatpush1.msra.mxu0 0.0
  %810 = vmatprep.subr.mxu0 0.0
  %811 = vmatpush1.msra.mxu0 0.0
  %812 = vmatprep.subr.mxu0 0.0
  %813 = vmatpush1.msra.mxu0 0.0
  %814 = vmatprep.subr.mxu0 0.0
  %815 = vmatpush1.msra.mxu0 0.0
  %816 = vmatprep.subr.mxu0 0.0
  %817 = vmatpush1.msra.mxu0 0.0
  %818 = vmatprep.subr.mxu0 0.0
  %819 = vmatpush1.msra.mxu0 0.0
  %820 = vmatprep.subr.mxu0 0.0
  %821 = vmatpush1.msra.mxu0 0.0
  %822 = vmatprep.subr.mxu0 0.0
  %823 = vmatpush1.msra.mxu0 0.0
  %824 = vmatprep.subr.mxu0 0.0
  %825 = vmatpush1.msra.mxu0 0.0
  %826 = vmatprep.subr.mxu0 0.0
  %827 = vmatpush1.msra.mxu0 0.0
  %828 = vmatprep.subr.mxu0 0.0
  %829 = vmatpush1.msra.mxu0 0.0
  %830 = vmatprep.subr.mxu0 0.0
  %831 = vmatpush1.msra.mxu0 0.0
  %832 = vmatprep.subr.mxu0 0.0
  %833 = vmatpush1.msra.mxu0 0.0
  %834 = vmatprep.subr.mxu0 0.0
  %835 = vmatpush1.msra.mxu0 0.0
  %836 = vmatprep.mubr.f32.mxu0 0.0
  %837 = vmatmul.mubr.f32.gmra.mrb[0].mxu0 %v770
  %v838 = vpop.f32.mrb[0].mxu0
  %v839 = vadd.f32 0.0, %v838
  %v840 = vpop.f32.mrb[0].mxu0
  %841 = vdwg.mxu0
  %v843 = vsel %vm38, %v25, 0
  %845 = vmatprep.subr.mxu0 0.0
  %846 = vmatpush1.msra.mxu0 %v37
  %847 = vmatprep.subr.mxu0 0.0
  %848 = vmatpush1.msra.mxu0 0.0
  %849 = vmatprep.subr.mxu0 0.0
  %850 = vmatpush1.msra.mxu0 0.0
  %851 = vmatprep.subr.mxu0 0.0
  %852 = vmatpush1.msra.mxu0 0.0
  %853 = vmatprep.subr.mxu0 0.0
  %854 = vmatpush1.msra.mxu0 0.0
  %855 = vmatprep.subr.mxu0 0.0
  %856 = vmatpush1.msra.mxu0 0.0
  %857 = vmatprep.subr.mxu0 0.0
  %858 = vmatpush1.msra.mxu0 0.0
  %859 = vmatprep.subr.mxu0 0.0
  %860 = vmatpush1.msra.mxu0 0.0
  %861 = vmatprep.subr.mxu0 0.0
  %862 = vmatpush1.msra.mxu0 0.0
  %863 = vmatprep.subr.mxu0 0.0
  %864 = vmatpush1.msra.mxu0 0.0
  %865 = vmatprep.subr.mxu0 0.0
  %866 = vmatpush1.msra.mxu0 0.0
  %867 = vmatprep.subr.mxu0 0.0
  %868 = vmatpush1.msra.mxu0 0.0
  %869 = vmatprep.subr.mxu0 0.0
  %870 = vmatpush1.msra.mxu0 0.0
  %871 = vmatprep.subr.mxu0 0.0
  %872 = vmatpush1.msra.mxu0 0.0
  %873 = vmatprep.subr.mxu0 0.0
  %874 = vmatpush1.msra.mxu0 0.0
  %875 = vmatprep.subr.mxu0 0.0
  %876 = vmatpush1.msra.mxu0 0.0
  %877 = vmatprep.subr.mxu0 0.0
  %878 = vmatpush1.msra.mxu0 0.0
  %879 = vmatprep.subr.mxu0 0.0
  %880 = vmatpush1.msra.mxu0 0.0
  %881 = vmatprep.subr.mxu0 0.0
  %882 = vmatpush1.msra.mxu0 0.0
  %883 = vmatprep.subr.mxu0 0.0
  %884 = vmatpush1.msra.mxu0 0.0
  %885 = vmatprep.subr.mxu0 0.0
  %886 = vmatpush1.msra.mxu0 0.0
  %887 = vmatprep.subr.mxu0 0.0
  %888 = vmatpush1.msra.mxu0 0.0
  %889 = vmatprep.subr.mxu0 0.0
  %890 = vmatpush1.msra.mxu0 0.0
  %891 = vmatprep.subr.mxu0 0.0
  %892 = vmatpush1.msra.mxu0 0.0
  %893 = vmatprep.subr.mxu0 0.0
  %894 = vmatpush1.msra.mxu0 0.0
  %895 = vmatprep.subr.mxu0 0.0
  %896 = vmatpush1.msra.mxu0 0.0
  %897 = vmatprep.subr.mxu0 0.0
  %898 = vmatpush1.msra.mxu0 0.0
  %899 = vmatprep.subr.mxu0 0.0
  %900 = vmatpush1.msra.mxu0 0.0
  %901 = vmatprep.subr.mxu0 0.0
  %902 = vmatpush1.msra.mxu0 0.0
  %903 = vmatprep.subr.mxu0 0.0
  %904 = vmatpush1.msra.mxu0 0.0
  %905 = vmatprep.subr.mxu0 0.0
  %906 = vmatpush1.msra.mxu0 0.0
  %907 = vmatprep.subr.mxu0 0.0
  %908 = vmatpush1.msra.mxu0 0.0
  %909 = vmatprep.mubr.f32.mxu0 0.0
  %910 = vmatmul.mubr.f32.gmra.mrb[0].mxu0 %v843
  %v911 = vpop.f32.mrb[0].mxu0
  %v912 = vadd.f32 0.0, %v911
  %v913 = vpop.f32.mrb[0].mxu0
  %914 = vdwg.mxu0
  %v915 = vld [vmem:[%s1] sm:$0xff]
  %v916 = vld [vmem:[%s1 + $0x8] sm:$0xf]
  %v917 = vld [vmem:[%s1 + $0x10] sm:$0xff]
  %v918 = vld [vmem:[%s1 + $0x18] sm:$0xf]
  %v919 = vld [vmem:[%s1 + $0x20] sm:$0xff]
  %v920 = vld [vmem:[%s1 + $0x28] sm:$0xf]
  %v921 = vld [vmem:[%s1 + $0x30] sm:$0xff]
  %v922 = vld [vmem:[%s1 + $0x38] sm:$0xf]
  %v923 = vld [vmem:[%s1 + $0x40] sm:$0xff]
  %v924 = vld [vmem:[%s1 + $0x48] sm:$0xf]
  %v925 = vld [vmem:[%s1 + $0x50] sm:$0xff]
  %v926 = vld [vmem:[%s1 + $0x58] sm:$0xf]
  %v927 = vld [vmem:[%s1 + $0x60] sm:$0xff]
  %v928 = vld [vmem:[%s1 + $0x68] sm:$0xf]
  %v929 = vld [vmem:[%s1 + $0x70] sm:$0xff]
  %v930 = vld [vmem:[%s1 + $0x78] sm:$0xf]
  %v931 = vld [vmem:[%s1 + $0x80] sm:$0xff]
  %v932 = vld [vmem:[%s1 + $0x88] sm:$0xf]
  %v933 = vld [vmem:[%s1 + $0x90] sm:$0xff]
  %v934 = vld [vmem:[%s1 + $0x98] sm:$0xf]
  %v935 = vld [vmem:[%s1 + $0xa0] sm:$0xff]
  %v936 = vld [vmem:[%s1 + $0xa8] sm:$0xf]
  %v937 = vld [vmem:[%s1 + $0xb0] sm:$0xff]
  %v938 = vld [vmem:[%s1 + $0xb8] sm:$0xf]
  %v940 = vsel %vm38, %v915, 0
  %v943 = vsel %vm38, %v916, 0
  %945 = vmatprep.subr.mxu0 0.0
  %946 = vmatpush1.msra.mxu0 %v109
  %947 = vmatprep.subr.mxu0 0.0
  %948 = vmatpush1.msra.mxu0 0.0
  %949 = vmatprep.subr.mxu0 0.0
  %950 = vmatpush1.msra.mxu0 0.0
  %951 = vmatprep.subr.mxu0 0.0
  %952 = vmatpush1.msra.mxu0 0.0
  %953 = vmatprep.subr.mxu0 0.0
  %954 = vmatpush1.msra.mxu0 0.0
  %955 = vmatprep.subr.mxu0 0.0
  %956 = vmatpush1.msra.mxu0 0.0
  %957 = vmatprep.subr.mxu0 0.0
  %958 = vmatpush1.msra.mxu0 0.0
  %959 = vmatprep.subr.mxu0 0.0
  %960 = vmatpush1.msra.mxu0 0.0
  %961 = vmatprep.subr.mxu0 0.0
  %962 = vmatpush1.msra.mxu0 0.0
  %963 = vmatprep.subr.mxu0 0.0
  %964 = vmatpush1.msra.mxu0 0.0
  %965 = vmatprep.subr.mxu0 0.0
  %966 = vmatpush1.msra.mxu0 0.0
  %967 = vmatprep.subr.mxu0 0.0
  %968 = vmatpush1.msra.mxu0 0.0
  %969 = vmatprep.subr.mxu0 0.0
  %970 = vmatpush1.msra.mxu0 0.0
  %971 = vmatprep.subr.mxu0 0.0
  %972 = vmatpush1.msra.mxu0 0.0
  %973 = vmatprep.subr.mxu0 0.0
  %974 = vmatpush1.msra.mxu0 0.0
  %975 = vmatprep.subr.mxu0 0.0
  %976 = vmatpush1.msra.mxu0 0.0
  %977 = vmatprep.subr.mxu0 0.0
  %978 = vmatpush1.msra.mxu0 0.0
  %979 = vmatprep.subr.mxu0 0.0
  %980 = vmatpush1.msra.mxu0 0.0
  %981 = vmatprep.subr.mxu0 0.0
  %982 = vmatpush1.msra.mxu0 0.0
  %983 = vmatprep.subr.mxu0 0.0
  %984 = vmatpush1.msra.mxu0 0.0
  %985 = vmatprep.subr.mxu0 0.0
  %986 = vmatpush1.msra.mxu0 0.0
  %987 = vmatprep.subr.mxu0 0.0
  %988 = vmatpush1.msra.mxu0 0.0
  %989 = vmatprep.subr.mxu0 0.0
  %990 = vmatpush1.msra.mxu0 0.0
  %991 = vmatprep.subr.mxu0 0.0
  %992 = vmatpush1.msra.mxu0 0.0
  %993 = vmatprep.subr.mxu0 0.0
  %994 = vmatpush1.msra.mxu0 0.0
  %995 = vmatprep.subr.mxu0 0.0
  %996 = vmatpush1.msra.mxu0 0.0
  %997 = vmatprep.subr.mxu0 0.0
  %998 = vmatpush1.msra.mxu0 0.0
  %999 = vmatprep.subr.mxu0 0.0
  %1000 = vmatpush1.msra.mxu0 0.0
  %1001 = vmatprep.subr.mxu0 0.0
  %1002 = vmatpush1.msra.mxu0 0.0
  %1003 = vmatprep.subr.mxu0 0.0
  %1004 = vmatpush1.msra.mxu0 0.0
  %1005 = vmatprep.subr.mxu0 0.0
  %1006 = vmatpush1.msra.mxu0 0.0
  %1007 = vmatprep.subr.mxu0 0.0
  %1008 = vmatpush1.msra.mxu0 0.0
  %1009 = vmatprep.mubr.f32.mxu0 0.0
  %1010 = vmatmul.mubr.f32.gmra.mrb[0].mxu0 %v940
  %v1011 = vpop.f32.mrb[0].mxu0
  %v1012 = vadd.f32 0.0, %v1011
  %v1013 = vpop.f32.mrb[0].mxu0
  %1014 = vmatprep.mubr.f32.mxu0 0.0
  %1015 = vmatmul.mubr.f32.gmra.mrb[0].mxu0 %v943
  %v1016 = vpop.f32.mrb[0].mxu0
  %v1017 = vadd.f32 0.0, %v1016
  %v1018 = vpop.f32.mrb[0].mxu0
  %1019 = vdwg.mxu0
  %v1021 = vsel %vm38, %v917, 0
  %v1024 = vsel %vm38, %v918, 0
  %1026 = vmatprep.subr.mxu0 0.0
  %1027 = vmatpush1.msra.mxu0 %v182
  %1028 = vmatprep.subr.mxu0 0.0
  %1029 = vmatpush1.msra.mxu0 0.0
  %1030 = vmatprep.subr.mxu0 0.0
  %1031 = vmatpush1.msra.mxu0 0.0
  %1032 = vmatprep.subr.mxu0 0.0
  %1033 = vmatpush1.msra.mxu0 0.0
  %1034 = vmatprep.subr.mxu0 0.0
  %1035 = vmatpush1.msra.mxu0 0.0
  %1036 = vmatprep.subr.mxu0 0.0
  %1037 = vmatpush1.msra.mxu0 0.0
  %1038 = vmatprep.subr.mxu0 0.0
  %1039 = vmatpush1.msra.mxu0 0.0
  %1040 = vmatprep.subr.mxu0 0.0
  %1041 = vmatpush1.msra.mxu0 0.0
  %1042 = vmatprep.subr.mxu0 0.0
  %1043 = vmatpush1.msra.mxu0 0.0
  %1044 = vmatprep.subr.mxu0 0.0
  %1045 = vmatpush1.msra.mxu0 0.0
  %1046 = vmatprep.subr.mxu0 0.0
  %1047 = vmatpush1.msra.mxu0 0.0
  %1048 = vmatprep.subr.mxu0 0.0
  %1049 = vmatpush1.msra.mxu0 0.0
  %1050 = vmatprep.subr.mxu0 0.0
  %1051 = vmatpush1.msra.mxu0 0.0
  %1052 = vmatprep.subr.mxu0 0.0
  %1053 = vmatpush1.msra.mxu0 0.0
  %1054 = vmatprep.subr.mxu0 0.0
  %1055 = vmatpush1.msra.mxu0 0.0
  %1056 = vmatprep.subr.mxu0 0.0
  %1057 = vmatpush1.msra.mxu0 0.0
  %1058 = vmatprep.subr.mxu0 0.0
  %1059 = vmatpush1.msra.mxu0 0.0
  %1060 = vmatprep.subr.mxu0 0.0
  %1061 = vmatpush1.msra.mxu0 0.0
  %1062 = vmatprep.subr.mxu0 0.0
  %1063 = vmatpush1.msra.mxu0 0.0
  %1064 = vmatprep.subr.mxu0 0.0
  %1065 = vmatpush1.msra.mxu0 0.0
  %1066 = vmatprep.subr.mxu0 0.0
  %1067 = vmatpush1.msra.mxu0 0.0
  %1068 = vmatprep.subr.mxu0 0.0
  %1069 = vmatpush1.msra.mxu0 0.0
  %1070 = vmatprep.subr.mxu0 0.0
  %1071 = vmatpush1.msra.mxu0 0.0
  %1072 = vmatprep.subr.mxu0 0.0
  %1073 = vmatpush1.msra.mxu0 0.0
  %1074 = vmatprep.subr.mxu0 0.0
  %1075 = vmatpush1.msra.mxu0 0.0
  %1076 = vmatprep.subr.mxu0 0.0
  %1077 = vmatpush1.msra.mxu0 0.0
  %1078 = vmatprep.subr.mxu0 0.0
  %1079 = vmatpush1.msra.mxu0 0.0
  %1080 = vmatprep.subr.mxu0 0.0
  %1081 = vmatpush1.msra.mxu0 0.0
  %1082 = vmatprep.subr.mxu0 0.0
  %1083 = vmatpush1.msra.mxu0 0.0
  %1084 = vmatprep.subr.mxu0 0.0
  %1085 = vmatpush1.msra.mxu0 0.0
  %1086 = vmatprep.subr.mxu0 0.0
  %1087 = vmatpush1.msra.mxu0 0.0
  %1088 = vmatprep.subr.mxu0 0.0
  %1089 = vmatpush1.msra.mxu0 0.0
  %1090 = vmatprep.mubr.f32.mxu0 0.0
  %1091 = vmatmul.mubr.f32.gmra.mrb[0].mxu0 %v1021
  %v1092 = vpop.f32.mrb[0].mxu0
  %v1093 = vadd.f32 0.0, %v1092
  %v1094 = vpop.f32.mrb[0].mxu0
  %1095 = vmatprep.mubr.f32.mxu0 0.0
  %1096 = vmatmul.mubr.f32.gmra.mrb[0].mxu0 %v1024
  %v1097 = vpop.f32.mrb[0].mxu0
  %v1098 = vadd.f32 0.0, %v1097
  %v1099 = vpop.f32.mrb[0].mxu0
  %1100 = vdwg.mxu0
  %v1102 = vsel %vm38, %v919, 0
  %v1105 = vsel %vm38, %v920, 0
  %1107 = vmatprep.subr.mxu0 0.0
  %1108 = vmatpush1.msra.mxu0 %v255
  %1109 = vmatprep.subr.mxu0 0.0
  %1110 = vmatpush1.msra.mxu0 0.0
  %1111 = vmatprep.subr.mxu0 0.0
  %1112 = vmatpush1.msra.mxu0 0.0
  %1113 = vmatprep.subr.mxu0 0.0
  %1114 = vmatpush1.msra.mxu0 0.0
  %1115 = vmatprep.subr.mxu0 0.0
  %1116 = vmatpush1.msra.mxu0 0.0
  %1117 = vmatprep.subr.mxu0 0.0
  %1118 = vmatpush1.msra.mxu0 0.0
  %1119 = vmatprep.subr.mxu0 0.0
  %1120 = vmatpush1.msra.mxu0 0.0
  %1121 = vmatprep.subr.mxu0 0.0
  %1122 = vmatpush1.msra.mxu0 0.0
  %1123 = vmatprep.subr.mxu0 0.0
  %1124 = vmatpush1.msra.mxu0 0.0
  %1125 = vmatprep.subr.mxu0 0.0
  %1126 = vmatpush1.msra.mxu0 0.0
  %1127 = vmatprep.subr.mxu0 0.0
  %1128 = vmatpush1.msra.mxu0 0.0
  %1129 = vmatprep.subr.mxu0 0.0
  %1130 = vmatpush1.msra.mxu0 0.0
  %1131 = vmatprep.subr.mxu0 0.0
  %1132 = vmatpush1.msra.mxu0 0.0
  %1133 = vmatprep.subr.mxu0 0.0
  %1134 = vmatpush1.msra.mxu0 0.0
  %1135 = vmatprep.subr.mxu0 0.0
  %1136 = vmatpush1.msra.mxu0 0.0
  %1137 = vmatprep.subr.mxu0 0.0
  %1138 = vmatpush1.msra.mxu0 0.0
  %1139 = vmatprep.subr.mxu0 0.0
  %1140 = vmatpush1.msra.mxu0 0.0
  %1141 = vmatprep.subr.mxu0 0.0
  %1142 = vmatpush1.msra.mxu0 0.0
  %1143 = vmatprep.subr.mxu0 0.0
  %1144 = vmatpush1.msra.mxu0 0.0
  %1145 = vmatprep.subr.mxu0 0.0
  %1146 = vmatpush1.msra.mxu0 0.0
  %1147 = vmatprep.subr.mxu0 0.0
  %1148 = vmatpush1.msra.mxu0 0.0
  %1149 = vmatprep.subr.mxu0 0.0
  %1150 = vmatpush1.msra.mxu0 0.0
  %1151 = vmatprep.subr.mxu0 0.0
  %1152 = vmatpush1.msra.mxu0 0.0
  %1153 = vmatprep.subr.mxu0 0.0
  %1154 = vmatpush1.msra.mxu0 0.0
  %1155 = vmatprep.subr.mxu0 0.0
  %1156 = vmatpush1.msra.mxu0 0.0
  %1157 = vmatprep.subr.mxu0 0.0
  %1158 = vmatpush1.msra.mxu0 0.0
  %1159 = vmatprep.subr.mxu0 0.0
  %1160 = vmatpush1.msra.mxu0 0.0
  %1161 = vmatprep.subr.mxu0 0.0
  %1162 = vmatpush1.msra.mxu0 0.0
  %1163 = vmatprep.subr.mxu0 0.0
  %1164 = vmatpush1.msra.mxu0 0.0
  %1165 = vmatprep.subr.mxu0 0.0
  %1166 = vmatpush1.msra.mxu0 0.0
  %1167 = vmatprep.subr.mxu0 0.0
  %1168 = vmatpush1.msra.mxu0 0.0
  %1169 = vmatprep.subr.mxu0 0.0
  %1170 = vmatpush1.msra.mxu0 0.0
  %1171 = vmatprep.mubr.f32.mxu0 0.0
  %1172 = vmatmul.mubr.f32.gmra.mrb[0].mxu0 %v1102
  %v1173 = vpop.f32.mrb[0].mxu0
  %v1174 = vadd.f32 0.0, %v1173
  %v1175 = vpop.f32.mrb[0].mxu0
  %1176 = vmatprep.mubr.f32.mxu0 0.0
  %1177 = vmatmul.mubr.f32.gmra.mrb[0].mxu0 %v1105
  %v1178 = vpop.f32.mrb[0].mxu0
  %v1179 = vadd.f32 0.0, %v1178
  %v1180 = vpop.f32.mrb[0].mxu0
  %1181 = vdwg.mxu0
  %v1183 = vsel %vm38, %v921, 0
  %v1186 = vsel %vm38, %v922, 0
  %1188 = vmatprep.subr.mxu0 0.0
  %1189 = vmatpush1.msra.mxu0 %v328
  %1190 = vmatprep.subr.mxu0 0.0
  %1191 = vmatpush1.msra.mxu0 0.0
  %1192 = vmatprep.subr.mxu0 0.0
  %1193 = vmatpush1.msra.mxu0 0.0
  %1194 = vmatprep.subr.mxu0 0.0
  %1195 = vmatpush1.msra.mxu0 0.0
  %1196 = vmatprep.subr.mxu0 0.0
  %1197 = vmatpush1.msra.mxu0 0.0
  %1198 = vmatprep.subr.mxu0 0.0
  %1199 = vmatpush1.msra.mxu0 0.0
  %1200 = vmatprep.subr.mxu0 0.0
  %1201 = vmatpush1.msra.mxu0 0.0
  %1202 = vmatprep.subr.mxu0 0.0
  %1203 = vmatpush1.msra.mxu0 0.0
  %1204 = vmatprep.subr.mxu0 0.0
  %1205 = vmatpush1.msra.mxu0 0.0
  %1206 = vmatprep.subr.mxu0 0.0
  %1207 = vmatpush1.msra.mxu0 0.0
  %1208 = vmatprep.subr.mxu0 0.0
  %1209 = vmatpush1.msra.mxu0 0.0
  %1210 = vmatprep.subr.mxu0 0.0
  %1211 = vmatpush1.msra.mxu0 0.0
  %1212 = vmatprep.subr.mxu0 0.0
  %1213 = vmatpush1.msra.mxu0 0.0
  %1214 = vmatprep.subr.mxu0 0.0
  %1215 = vmatpush1.msra.mxu0 0.0
  %1216 = vmatprep.subr.mxu0 0.0
  %1217 = vmatpush1.msra.mxu0 0.0
  %1218 = vmatprep.subr.mxu0 0.0
  %1219 = vmatpush1.msra.mxu0 0.0
  %1220 = vmatprep.subr.mxu0 0.0
  %1221 = vmatpush1.msra.mxu0 0.0
  %1222 = vmatprep.subr.mxu0 0.0
  %1223 = vmatpush1.msra.mxu0 0.0
  %1224 = vmatprep.subr.mxu0 0.0
  %1225 = vmatpush1.msra.mxu0 0.0
  %1226 = vmatprep.subr.mxu0 0.0
  %1227 = vmatpush1.msra.mxu0 0.0
  %1228 = vmatprep.subr.mxu0 0.0
  %1229 = vmatpush1.msra.mxu0 0.0
  %1230 = vmatprep.subr.mxu0 0.0
  %1231 = vmatpush1.msra.mxu0 0.0
  %1232 = vmatprep.subr.mxu0 0.0
  %1233 = vmatpush1.msra.mxu0 0.0
  %1234 = vmatprep.subr.mxu0 0.0
  %1235 = vmatpush1.msra.mxu0 0.0
  %1236 = vmatprep.subr.mxu0 0.0
  %1237 = vmatpush1.msra.mxu0 0.0
  %1238 = vmatprep.subr.mxu0 0.0
  %1239 = vmatpush1.msra.mxu0 0.0
  %1240 = vmatprep.subr.mxu0 0.0
  %1241 = vmatpush1.msra.mxu0 0.0
  %1242 = vmatprep.subr.mxu0 0.0
  %1243 = vmatpush1.msra.mxu0 0.0
  %1244 = vmatprep.subr.mxu0 0.0
  %1245 = vmatpush1.msra.mxu0 0.0
  %1246 = vmatprep.subr.mxu0 0.0
  %1247 = vmatpush1.msra.mxu0 0.0
  %1248 = vmatprep.subr.mxu0 0.0
  %1249 = vmatpush1.msra.mxu0 0.0
  %1250 = vmatprep.subr.mxu0 0.0
  %1251 = vmatpush1.msra.mxu0 0.0
  %1252 = vmatprep.mubr.f32.mxu0 0.0
  %1253 = vmatmul.mubr.f32.gmra.mrb[0].mxu0 %v1183
  %v1254 = vpop.f32.mrb[0].mxu0
  %v1255 = vadd.f32 0.0, %v1254
  %v1256 = vpop.f32.mrb[0].mxu0
  %1257 = vmatprep.mubr.f32.mxu0 0.0
  %1258 = vmatmul.mubr.f32.gmra.mrb[0].mxu0 %v1186
  %v1259 = vpop.f32.mrb[0].mxu0
  %v1260 = vadd.f32 0.0, %v1259
  %v1261 = vpop.f32.mrb[0].mxu0
  %1262 = vdwg.mxu0
  %v1264 = vsel %vm38, %v923, 0
  %v1267 = vsel %vm38, %v924, 0
  %1269 = vmatprep.subr.mxu0 0.0
  %1270 = vmatpush1.msra.mxu0 %v401
  %1271 = vmatprep.subr.mxu0 0.0
  %1272 = vmatpush1.msra.mxu0 0.0
  %1273 = vmatprep.subr.mxu0 0.0
  %1274 = vmatpush1.msra.mxu0 0.0
  %1275 = vmatprep.subr.mxu0 0.0
  %1276 = vmatpush1.msra.mxu0 0.0
  %1277 = vmatprep.subr.mxu0 0.0
  %1278 = vmatpush1.msra.mxu0 0.0
  %1279 = vmatprep.subr.mxu0 0.0
  %1280 = vmatpush1.msra.mxu0 0.0
  %1281 = vmatprep.subr.mxu0 0.0
  %1282 = vmatpush1.msra.mxu0 0.0
  %1283 = vmatprep.subr.mxu0 0.0
  %1284 = vmatpush1.msra.mxu0 0.0
  %1285 = vmatprep.subr.mxu0 0.0
  %1286 = vmatpush1.msra.mxu0 0.0
  %1287 = vmatprep.subr.mxu0 0.0
  %1288 = vmatpush1.msra.mxu0 0.0
  %1289 = vmatprep.subr.mxu0 0.0
  %1290 = vmatpush1.msra.mxu0 0.0
  %1291 = vmatprep.subr.mxu0 0.0
  %1292 = vmatpush1.msra.mxu0 0.0
  %1293 = vmatprep.subr.mxu0 0.0
  %1294 = vmatpush1.msra.mxu0 0.0
  %1295 = vmatprep.subr.mxu0 0.0
  %1296 = vmatpush1.msra.mxu0 0.0
  %1297 = vmatprep.subr.mxu0 0.0
  %1298 = vmatpush1.msra.mxu0 0.0
  %1299 = vmatprep.subr.mxu0 0.0
  %1300 = vmatpush1.msra.mxu0 0.0
  %1301 = vmatprep.subr.mxu0 0.0
  %1302 = vmatpush1.msra.mxu0 0.0
  %1303 = vmatprep.subr.mxu0 0.0
  %1304 = vmatpush1.msra.mxu0 0.0
  %1305 = vmatprep.subr.mxu0 0.0
  %1306 = vmatpush1.msra.mxu0 0.0
  %1307 = vmatprep.subr.mxu0 0.0
  %1308 = vmatpush1.msra.mxu0 0.0
  %1309 = vmatprep.subr.mxu0 0.0
  %1310 = vmatpush1.msra.mxu0 0.0
  %1311 = vmatprep.subr.mxu0 0.0
  %1312 = vmatpush1.msra.mxu0 0.0
  %1313 = vmatprep.subr.mxu0 0.0
  %1314 = vmatpush1.msra.mxu0 0.0
  %1315 = vmatprep.subr.mxu0 0.0
  %1316 = vmatpush1.msra.mxu0 0.0
  %1317 = vmatprep.subr.mxu0 0.0
  %1318 = vmatpush1.msra.mxu0 0.0
  %1319 = vmatprep.subr.mxu0 0.0
  %1320 = vmatpush1.msra.mxu0 0.0
  %1321 = vmatprep.subr.mxu0 0.0
  %1322 = vmatpush1.msra.mxu0 0.0
  %1323 = vmatprep.subr.mxu0 0.0
  %1324 = vmatpush1.msra.mxu0 0.0
  %1325 = vmatprep.subr.mxu0 0.0
  %1326 = vmatpush1.msra.mxu0 0.0
  %1327 = vmatprep.subr.mxu0 0.0
  %1328 = vmatpush1.msra.mxu0 0.0
  %1329 = vmatprep.subr.mxu0 0.0
  %1330 = vmatpush1.msra.mxu0 0.0
  %1331 = vmatprep.subr.mxu0 0.0
  %1332 = vmatpush1.msra.mxu0 0.0
  %1333 = vmatprep.mubr.f32.mxu0 0.0
  %1334 = vmatmul.mubr.f32.gmra.mrb[0].mxu0 %v1264
  %v1335 = vpop.f32.mrb[0].mxu0
  %v1336 = vadd.f32 0.0, %v1335
  %v1337 = vpop.f32.mrb[0].mxu0
  %1338 = vmatprep.mubr.f32.mxu0 0.0
  %1339 = vmatmul.mubr.f32.gmra.mrb[0].mxu0 %v1267
  %v1340 = vpop.f32.mrb[0].mxu0
  %v1341 = vadd.f32 0.0, %v1340
  %v1342 = vpop.f32.mrb[0].mxu0
  %1343 = vdwg.mxu0
  %v1345 = vsel %vm38, %v925, 0
  %v1348 = vsel %vm38, %v926, 0
  %1350 = vmatprep.subr.mxu0 0.0
  %1351 = vmatpush1.msra.mxu0 %v474
  %1352 = vmatprep.subr.mxu0 0.0
  %1353 = vmatpush1.msra.mxu0 0.0
  %1354 = vmatprep.subr.mxu0 0.0
  %1355 = vmatpush1.msra.mxu0 0.0
  %1356 = vmatprep.subr.mxu0 0.0
  %1357 = vmatpush1.msra.mxu0 0.0
  %1358 = vmatprep.subr.mxu0 0.0
  %1359 = vmatpush1.msra.mxu0 0.0
  %1360 = vmatprep.subr.mxu0 0.0
  %1361 = vmatpush1.msra.mxu0 0.0
  %1362 = vmatprep.subr.mxu0 0.0
  %1363 = vmatpush1.msra.mxu0 0.0
  %1364 = vmatprep.subr.mxu0 0.0
  %1365 = vmatpush1.msra.mxu0 0.0
  %1366 = vmatprep.subr.mxu0 0.0
  %1367 = vmatpush1.msra.mxu0 0.0
  %1368 = vmatprep.subr.mxu0 0.0
  %1369 = vmatpush1.msra.mxu0 0.0
  %1370 = vmatprep.subr.mxu0 0.0
  %1371 = vmatpush1.msra.mxu0 0.0
  %1372 = vmatprep.subr.mxu0 0.0
  %1373 = vmatpush1.msra.mxu0 0.0
  %1374 = vmatprep.subr.mxu0 0.0
  %1375 = vmatpush1.msra.mxu0 0.0
  %1376 = vmatprep.subr.mxu0 0.0
  %1377 = vmatpush1.msra.mxu0 0.0
  %1378 = vmatprep.subr.mxu0 0.0
  %1379 = vmatpush1.msra.mxu0 0.0
  %1380 = vmatprep.subr.mxu0 0.0
  %1381 = vmatpush1.msra.mxu0 0.0
  %1382 = vmatprep.subr.mxu0 0.0
  %1383 = vmatpush1.msra.mxu0 0.0
  %1384 = vmatprep.subr.mxu0 0.0
  %1385 = vmatpush1.msra.mxu0 0.0
  %1386 = vmatprep.subr.mxu0 0.0
  %1387 = vmatpush1.msra.mxu0 0.0
  %1388 = vmatprep.subr.mxu0 0.0
  %1389 = vmatpush1.msra.mxu0 0.0
  %1390 = vmatprep.subr.mxu0 0.0
  %1391 = vmatpush1.msra.mxu0 0.0
  %1392 = vmatprep.subr.mxu0 0.0
  %1393 = vmatpush1.msra.mxu0 0.0
  %1394 = vmatprep.subr.mxu0 0.0
  %1395 = vmatpush1.msra.mxu0 0.0
  %1396 = vmatprep.subr.mxu0 0.0
  %1397 = vmatpush1.msra.mxu0 0.0
  %1398 = vmatprep.subr.mxu0 0.0
  %1399 = vmatpush1.msra.mxu0 0.0
  %1400 = vmatprep.subr.mxu0 0.0
  %1401 = vmatpush1.msra.mxu0 0.0
  %1402 = vmatprep.subr.mxu0 0.0
  %1403 = vmatpush1.msra.mxu0 0.0
  %1404 = vmatprep.subr.mxu0 0.0
  %1405 = vmatpush1.msra.mxu0 0.0
  %1406 = vmatprep.subr.mxu0 0.0
  %1407 = vmatpush1.msra.mxu0 0.0
  %1408 = vmatprep.subr.mxu0 0.0
  %1409 = vmatpush1.msra.mxu0 0.0
  %1410 = vmatprep.subr.mxu0 0.0
  %1411 = vmatpush1.msra.mxu0 0.0
  %1412 = vmatprep.subr.mxu0 0.0
  %1413 = vmatpush1.msra.mxu0 0.0
  %1414 = vmatprep.mubr.f32.mxu0 0.0
  %1415 = vmatmul.mubr.f32.gmra.mrb[0].mxu0 %v1345
  %v1416 = vpop.f32.mrb[0].mxu0
  %v1417 = vadd.f32 0.0, %v1416
  %v1418 = vpop.f32.mrb[0].mxu0
  %1419 = vmatprep.mubr.f32.mxu0 0.0
  %1420 = vmatmul.mubr.f32.gmra.mrb[0].mxu0 %v1348
  %v1421 = vpop.f32.mrb[0].mxu0
  %v1422 = vadd.f32 0.0, %v1421
  %v1423 = vpop.f32.mrb[0].mxu0
  %1424 = vdwg.mxu0
  %v1426 = vsel %vm38, %v927, 0
  %v1429 = vsel %vm38, %v928, 0
  %1431 = vmatprep.subr.mxu0 0.0
  %1432 = vmatpush1.msra.mxu0 %v547
  %1433 = vmatprep.subr.mxu0 0.0
  %1434 = vmatpush1.msra.mxu0 0.0
  %1435 = vmatprep.subr.mxu0 0.0
  %1436 = vmatpush1.msra.mxu0 0.0
  %1437 = vmatprep.subr.mxu0 0.0
  %1438 = vmatpush1.msra.mxu0 0.0
  %1439 = vmatprep.subr.mxu0 0.0
  %1440 = vmatpush1.msra.mxu0 0.0
  %1441 = vmatprep.subr.mxu0 0.0
  %1442 = vmatpush1.msra.mxu0 0.0
  %1443 = vmatprep.subr.mxu0 0.0
  %1444 = vmatpush1.msra.mxu0 0.0
  %1445 = vmatprep.subr.mxu0 0.0
  %1446 = vmatpush1.msra.mxu0 0.0
  %1447 = vmatprep.subr.mxu0 0.0
  %1448 = vmatpush1.msra.mxu0 0.0
  %1449 = vmatprep.subr.mxu0 0.0
  %1450 = vmatpush1.msra.mxu0 0.0
  %1451 = vmatprep.subr.mxu0 0.0
  %1452 = vmatpush1.msra.mxu0 0.0
  %1453 = vmatprep.subr.mxu0 0.0
  %1454 = vmatpush1.msra.mxu0 0.0
  %1455 = vmatprep.subr.mxu0 0.0
  %1456 = vmatpush1.msra.mxu0 0.0
  %1457 = vmatprep.subr.mxu0 0.0
  %1458 = vmatpush1.msra.mxu0 0.0
  %1459 = vmatprep.subr.mxu0 0.0
  %1460 = vmatpush1.msra.mxu0 0.0
  %1461 = vmatprep.subr.mxu0 0.0
  %1462 = vmatpush1.msra.mxu0 0.0
  %1463 = vmatprep.subr.mxu0 0.0
  %1464 = vmatpush1.msra.mxu0 0.0
  %1465 = vmatprep.subr.mxu0 0.0
  %1466 = vmatpush1.msra.mxu0 0.0
  %1467 = vmatprep.subr.mxu0 0.0
  %1468 = vmatpush1.msra.mxu0 0.0
  %1469 = vmatprep.subr.mxu0 0.0
  %1470 = vmatpush1.msra.mxu0 0.0
  %1471 = vmatprep.subr.mxu0 0.0
  %1472 = vmatpush1.msra.mxu0 0.0
  %1473 = vmatprep.subr.mxu0 0.0
  %1474 = vmatpush1.msra.mxu0 0.0
  %1475 = vmatprep.subr.mxu0 0.0
  %1476 = vmatpush1.msra.mxu0 0.0
  %1477 = vmatprep.subr.mxu0 0.0
  %1478 = vmatpush1.msra.mxu0 0.0
  %1479 = vmatprep.subr.mxu0 0.0
  %1480 = vmatpush1.msra.mxu0 0.0
  %1481 = vmatprep.subr.mxu0 0.0
  %1482 = vmatpush1.msra.mxu0 0.0
  %1483 = vmatprep.subr.mxu0 0.0
  %1484 = vmatpush1.msra.mxu0 0.0
  %1485 = vmatprep.subr.mxu0 0.0
  %1486 = vmatpush1.msra.mxu0 0.0
  %1487 = vmatprep.subr.mxu0 0.0
  %1488 = vmatpush1.msra.mxu0 0.0
  %1489 = vmatprep.subr.mxu0 0.0
  %1490 = vmatpush1.msra.mxu0 0.0
  %1491 = vmatprep.subr.mxu0 0.0
  %1492 = vmatpush1.msra.mxu0 0.0
  %1493 = vmatprep.subr.mxu0 0.0
  %1494 = vmatpush1.msra.mxu0 0.0
  %1495 = vmatprep.mubr.f32.mxu0 0.0
  %1496 = vmatmul.mubr.f32.gmra.mrb[0].mxu0 %v1426
  %v1497 = vpop.f32.mrb[0].mxu0
  %v1498 = vadd.f32 0.0, %v1497
  %v1499 = vpop.f32.mrb[0].mxu0
  %1500 = vmatprep.mubr.f32.mxu0 0.0
  %1501 = vmatmul.mubr.f32.gmra.mrb[0].mxu0 %v1429
  %v1502 = vpop.f32.mrb[0].mxu0
  %v1503 = vadd.f32 0.0, %v1502
  %v1504 = vpop.f32.mrb[0].mxu0
  %1505 = vdwg.mxu0
  %v1507 = vsel %vm38, %v929, 0
  %v1510 = vsel %vm38, %v930, 0
  %1512 = vmatprep.subr.mxu0 0.0
  %1513 = vmatpush1.msra.mxu0 %v620
  %1514 = vmatprep.subr.mxu0 0.0
  %1515 = vmatpush1.msra.mxu0 0.0
  %1516 = vmatprep.subr.mxu0 0.0
  %1517 = vmatpush1.msra.mxu0 0.0
  %1518 = vmatprep.subr.mxu0 0.0
  %1519 = vmatpush1.msra.mxu0 0.0
  %1520 = vmatprep.subr.mxu0 0.0
  %1521 = vmatpush1.msra.mxu0 0.0
  %1522 = vmatprep.subr.mxu0 0.0
  %1523 = vmatpush1.msra.mxu0 0.0
  %1524 = vmatprep.subr.mxu0 0.0
  %1525 = vmatpush1.msra.mxu0 0.0
  %1526 = vmatprep.subr.mxu0 0.0
  %1527 = vmatpush1.msra.mxu0 0.0
  %1528 = vmatprep.subr.mxu0 0.0
  %1529 = vmatpush1.msra.mxu0 0.0
  %1530 = vmatprep.subr.mxu0 0.0
  %1531 = vmatpush1.msra.mxu0 0.0
  %1532 = vmatprep.subr.mxu0 0.0
  %1533 = vmatpush1.msra.mxu0 0.0
  %1534 = vmatprep.subr.mxu0 0.0
  %1535 = vmatpush1.msra.mxu0 0.0
  %1536 = vmatprep.subr.mxu0 0.0
  %1537 = vmatpush1.msra.mxu0 0.0
  %1538 = vmatprep.subr.mxu0 0.0
  %1539 = vmatpush1.msra.mxu0 0.0
  %1540 = vmatprep.subr.mxu0 0.0
  %1541 = vmatpush1.msra.mxu0 0.0
  %1542 = vmatprep.subr.mxu0 0.0
  %1543 = vmatpush1.msra.mxu0 0.0
  %1544 = vmatprep.subr.mxu0 0.0
  %1545 = vmatpush1.msra.mxu0 0.0
  %1546 = vmatprep.subr.mxu0 0.0
  %1547 = vmatpush1.msra.mxu0 0.0
  %1548 = vmatprep.subr.mxu0 0.0
  %1549 = vmatpush1.msra.mxu0 0.0
  %1550 = vmatprep.subr.mxu0 0.0
  %1551 = vmatpush1.msra.mxu0 0.0
  %1552 = vmatprep.subr.mxu0 0.0
  %1553 = vmatpush1.msra.mxu0 0.0
  %1554 = vmatprep.subr.mxu0 0.0
  %1555 = vmatpush1.msra.mxu0 0.0
  %1556 = vmatprep.subr.mxu0 0.0
  %1557 = vmatpush1.msra.mxu0 0.0
  %1558 = vmatprep.subr.mxu0 0.0
  %1559 = vmatpush1.msra.mxu0 0.0
  %1560 = vmatprep.subr.mxu0 0.0
  %1561 = vmatpush1.msra.mxu0 0.0
  %1562 = vmatprep.subr.mxu0 0.0
  %1563 = vmatpush1.msra.mxu0 0.0
  %1564 = vmatprep.subr.mxu0 0.0
  %1565 = vmatpush1.msra.mxu0 0.0
  %1566 = vmatprep.subr.mxu0 0.0
  %1567 = vmatpush1.msra.mxu0 0.0
  %1568 = vmatprep.subr.mxu0 0.0
  %1569 = vmatpush1.msra.mxu0 0.0
  %1570 = vmatprep.subr.mxu0 0.0
  %1571 = vmatpush1.msra.mxu0 0.0
  %1572 = vmatprep.subr.mxu0 0.0
  %1573 = vmatpush1.msra.mxu0 0.0
  %1574 = vmatprep.subr.mxu0 0.0
  %1575 = vmatpush1.msra.mxu0 0.0
  %1576 = vmatprep.mubr.f32.mxu0 0.0
  %1577 = vmatmul.mubr.f32.gmra.mrb[0].mxu0 %v1507
  %v1578 = vpop.f32.mrb[0].mxu0
  %v1579 = vadd.f32 0.0, %v1578
  %v1580 = vpop.f32.mrb[0].mxu0
  %1581 = vmatprep.mubr.f32.mxu0 0.0
  %1582 = vmatmul.mubr.f32.gmra.mrb[0].mxu0 %v1510
  %v1583 = vpop.f32.mrb[0].mxu0
  %v1584 = vadd.f32 0.0, %v1583
  %v1585 = vpop.f32.mrb[0].mxu0
  %1586 = vdwg.mxu0
  %v1588 = vsel %vm38, %v931, 0
  %v1591 = vsel %vm38, %v932, 0
  %1593 = vmatprep.subr.mxu0 0.0
  %1594 = vmatpush1.msra.mxu0 %v693
  %1595 = vmatprep.subr.mxu0 0.0
  %1596 = vmatpush1.msra.mxu0 0.0
  %1597 = vmatprep.subr.mxu0 0.0
  %1598 = vmatpush1.msra.mxu0 0.0
  %1599 = vmatprep.subr.mxu0 0.0
  %1600 = vmatpush1.msra.mxu0 0.0
  %1601 = vmatprep.subr.mxu0 0.0
  %1602 = vmatpush1.msra.mxu0 0.0
  %1603 = vmatprep.subr.mxu0 0.0
  %1604 = vmatpush1.msra.mxu0 0.0
  %1605 = vmatprep.subr.mxu0 0.0
  %1606 = vmatpush1.msra.mxu0 0.0
  %1607 = vmatprep.subr.mxu0 0.0
  %1608 = vmatpush1.msra.mxu0 0.0
  %1609 = vmatprep.subr.mxu0 0.0
  %1610 = vmatpush1.msra.mxu0 0.0
  %1611 = vmatprep.subr.mxu0 0.0
  %1612 = vmatpush1.msra.mxu0 0.0
  %1613 = vmatprep.subr.mxu0 0.0
  %1614 = vmatpush1.msra.mxu0 0.0
  %1615 = vmatprep.subr.mxu0 0.0
  %1616 = vmatpush1.msra.mxu0 0.0
  %1617 = vmatprep.subr.mxu0 0.0
  %1618 = vmatpush1.msra.mxu0 0.0
  %1619 = vmatprep.subr.mxu0 0.0
  %1620 = vmatpush1.msra.mxu0 0.0
  %1621 = vmatprep.subr.mxu0 0.0
  %1622 = vmatpush1.msra.mxu0 0.0
  %1623 = vmatprep.subr.mxu0 0.0
  %1624 = vmatpush1.msra.mxu0 0.0
  %1625 = vmatprep.subr.mxu0 0.0
  %1626 = vmatpush1.msra.mxu0 0.0
  %1627 = vmatprep.subr.mxu0 0.0
  %1628 = vmatpush1.msra.mxu0 0.0
  %1629 = vmatprep.subr.mxu0 0.0
  %1630 = vmatpush1.msra.mxu0 0.0
  %1631 = vmatprep.subr.mxu0 0.0
  %1632 = vmatpush1.msra.mxu0 0.0
  %1633 = vmatprep.subr.mxu0 0.0
  %1634 = vmatpush1.msra.mxu0 0.0
  %1635 = vmatprep.subr.mxu0 0.0
  %1636 = vmatpush1.msra.mxu0 0.0
  %1637 = vmatprep.subr.mxu0 0.0
  %1638 = vmatpush1.msra.mxu0 0.0
  %1639 = vmatprep.subr.mxu0 0.0
  %1640 = vmatpush1.msra.mxu0 0.0
  %1641 = vmatprep.subr.mxu0 0.0
  %1642 = vmatpush1.msra.mxu0 0.0
  %1643 = vmatprep.subr.mxu0 0.0
  %1644 = vmatpush1.msra.mxu0 0.0
  %1645 = vmatprep.subr.mxu0 0.0
  %1646 = vmatpush1.msra.mxu0 0.0
  %1647 = vmatprep.subr.mxu0 0.0
  %1648 = vmatpush1.msra.mxu0 0.0
  %1649 = vmatprep.subr.mxu0 0.0
  %1650 = vmatpush1.msra.mxu0 0.0
  %1651 = vmatprep.subr.mxu0 0.0
  %1652 = vmatpush1.msra.mxu0 0.0
  %1653 = vmatprep.subr.mxu0 0.0
  %1654 = vmatpush1.msra.mxu0 0.0
  %1655 = vmatprep.subr.mxu0 0.0
  %1656 = vmatpush1.msra.mxu0 0.0
  %1657 = vmatprep.mubr.f32.mxu0 0.0
  %1658 = vmatmul.mubr.f32.gmra.mrb[0].mxu0 %v1588
  %v1659 = vpop.f32.mrb[0].mxu0
  %v1660 = vadd.f32 0.0, %v1659
  %v1661 = vpop.f32.mrb[0].mxu0
  %1662 = vmatprep.mubr.f32.mxu0 0.0
  %1663 = vmatmul.mubr.f32.gmra.mrb[0].mxu0 %v1591
  %v1664 = vpop.f32.mrb[0].mxu0
  %v1665 = vadd.f32 0.0, %v1664
  %v1666 = vpop.f32.mrb[0].mxu0
  %1667 = vdwg.mxu0
  %v1669 = vsel %vm38, %v933, 0
  %v1672 = vsel %vm38, %v934, 0
  %1674 = vmatprep.subr.mxu0 0.0
  %1675 = vmatpush1.msra.mxu0 %v766
  %1676 = vmatprep.subr.mxu0 0.0
  %1677 = vmatpush1.msra.mxu0 0.0
  %1678 = vmatprep.subr.mxu0 0.0
  %1679 = vmatpush1.msra.mxu0 0.0
  %1680 = vmatprep.subr.mxu0 0.0
  %1681 = vmatpush1.msra.mxu0 0.0
  %1682 = vmatprep.subr.mxu0 0.0
  %1683 = vmatpush1.msra.mxu0 0.0
  %1684 = vmatprep.subr.mxu0 0.0
  %1685 = vmatpush1.msra.mxu0 0.0
  %1686 = vmatprep.subr.mxu0 0.0
  %1687 = vmatpush1.msra.mxu0 0.0
  %1688 = vmatprep.subr.mxu0 0.0
  %1689 = vmatpush1.msra.mxu0 0.0
  %1690 = vmatprep.subr.mxu0 0.0
  %1691 = vmatpush1.msra.mxu0 0.0
  %1692 = vmatprep.subr.mxu0 0.0
  %1693 = vmatpush1.msra.mxu0 0.0
  %1694 = vmatprep.subr.mxu0 0.0
  %1695 = vmatpush1.msra.mxu0 0.0
  %1696 = vmatprep.subr.mxu0 0.0
  %1697 = vmatpush1.msra.mxu0 0.0
  %1698 = vmatprep.subr.mxu0 0.0
  %1699 = vmatpush1.msra.mxu0 0.0
  %1700 = vmatprep.subr.mxu0 0.0
  %1701 = vmatpush1.msra.mxu0 0.0
  %1702 = vmatprep.subr.mxu0 0.0
  %1703 = vmatpush1.msra.mxu0 0.0
  %1704 = vmatprep.subr.mxu0 0.0
  %1705 = vmatpush1.msra.mxu0 0.0
  %1706 = vmatprep.subr.mxu0 0.0
  %1707 = vmatpush1.msra.mxu0 0.0
  %1708 = vmatprep.subr.mxu0 0.0
  %1709 = vmatpush1.msra.mxu0 0.0
  %1710 = vmatprep.subr.mxu0 0.0
  %1711 = vmatpush1.msra.mxu0 0.0
  %1712 = vmatprep.subr.mxu0 0.0
  %1713 = vmatpush1.msra.mxu0 0.0
  %1714 = vmatprep.subr.mxu0 0.0
  %1715 = vmatpush1.msra.mxu0 0.0
  %1716 = vmatprep.subr.mxu0 0.0
  %1717 = vmatpush1.msra.mxu0 0.0
  %1718 = vmatprep.subr.mxu0 0.0
  %1719 = vmatpush1.msra.mxu0 0.0
  %1720 = vmatprep.subr.mxu0 0.0
  %1721 = vmatpush1.msra.mxu0 0.0
  %1722 = vmatprep.subr.mxu0 0.0
  %1723 = vmatpush1.msra.mxu0 0.0
  %1724 = vmatprep.subr.mxu0 0.0
  %1725 = vmatpush1.msra.mxu0 0.0
  %1726 = vmatprep.subr.mxu0 0.0
  %1727 = vmatpush1.msra.mxu0 0.0
  %1728 = vmatprep.subr.mxu0 0.0
  %1729 = vmatpush1.msra.mxu0 0.0
  %1730 = vmatprep.subr.mxu0 0.0
  %1731 = vmatpush1.msra.mxu0 0.0
  %1732 = vmatprep.subr.mxu0 0.0
  %1733 = vmatpush1.msra.mxu0 0.0
  %1734 = vmatprep.subr.mxu0 0.0
  %1735 = vmatpush1.msra.mxu0 0.0
  %1736 = vmatprep.subr.mxu0 0.0
  %1737 = vmatpush1.msra.mxu0 0.0
  %1738 = vmatprep.mubr.f32.mxu0 0.0
  %1739 = vmatmul.mubr.f32.gmra.mrb[0].mxu0 %v1669
  %v1740 = vpop.f32.mrb[0].mxu0
  %v1741 = vadd.f32 0.0, %v1740
  %v1742 = vpop.f32.mrb[0].mxu0
  %1743 = vmatprep.mubr.f32.mxu0 0.0
  %1744 = vmatmul.mubr.f32.gmra.mrb[0].mxu0 %v1672
  %v1745 = vpop.f32.mrb[0].mxu0
  %v1746 = vadd.f32 0.0, %v1745
  %v1747 = vpop.f32.mrb[0].mxu0
  %1748 = vdwg.mxu0
  %v1750 = vsel %vm38, %v935, 0
  %v1753 = vsel %vm38, %v936, 0
  %1755 = vmatprep.subr.mxu0 0.0
  %1756 = vmatpush1.msra.mxu0 %v839
  %1757 = vmatprep.subr.mxu0 0.0
  %1758 = vmatpush1.msra.mxu0 0.0
  %1759 = vmatprep.subr.mxu0 0.0
  %1760 = vmatpush1.msra.mxu0 0.0
  %1761 = vmatprep.subr.mxu0 0.0
  %1762 = vmatpush1.msra.mxu0 0.0
  %1763 = vmatprep.subr.mxu0 0.0
  %1764 = vmatpush1.msra.mxu0 0.0
  %1765 = vmatprep.subr.mxu0 0.0
  %1766 = vmatpush1.msra.mxu0 0.0
  %1767 = vmatprep.subr.mxu0 0.0
  %1768 = vmatpush1.msra.mxu0 0.0
  %1769 = vmatprep.subr.mxu0 0.0
  %1770 = vmatpush1.msra.mxu0 0.0
  %1771 = vmatprep.subr.mxu0 0.0
  %1772 = vmatpush1.msra.mxu0 0.0
  %1773 = vmatprep.subr.mxu0 0.0
  %1774 = vmatpush1.msra.mxu0 0.0
  %1775 = vmatprep.subr.mxu0 0.0
  %1776 = vmatpush1.msra.mxu0 0.0
  %1777 = vmatprep.subr.mxu0 0.0
  %1778 = vmatpush1.msra.mxu0 0.0
  %1779 = vmatprep.subr.mxu0 0.0
  %1780 = vmatpush1.msra.mxu0 0.0
  %1781 = vmatprep.subr.mxu0 0.0
  %1782 = vmatpush1.msra.mxu0 0.0
  %1783 = vmatprep.subr.mxu0 0.0
  %1784 = vmatpush1.msra.mxu0 0.0
  %1785 = vmatprep.subr.mxu0 0.0
  %1786 = vmatpush1.msra.mxu0 0.0
  %1787 = vmatprep.subr.mxu0 0.0
  %1788 = vmatpush1.msra.mxu0 0.0
  %1789 = vmatprep.subr.mxu0 0.0
  %1790 = vmatpush1.msra.mxu0 0.0
  %1791 = vmatprep.subr.mxu0 0.0
  %1792 = vmatpush1.msra.mxu0 0.0
  %1793 = vmatprep.subr.mxu0 0.0
  %1794 = vmatpush1.msra.mxu0 0.0
  %1795 = vmatprep.subr.mxu0 0.0
  %1796 = vmatpush1.msra.mxu0 0.0
  %1797 = vmatprep.subr.mxu0 0.0
  %1798 = vmatpush1.msra.mxu0 0.0
  %1799 = vmatprep.subr.mxu0 0.0
  %1800 = vmatpush1.msra.mxu0 0.0
  %1801 = vmatprep.subr.mxu0 0.0
  %1802 = vmatpush1.msra.mxu0 0.0
  %1803 = vmatprep.subr.mxu0 0.0
  %1804 = vmatpush1.msra.mxu0 0.0
  %1805 = vmatprep.subr.mxu0 0.0
  %1806 = vmatpush1.msra.mxu0 0.0
  %1807 = vmatprep.subr.mxu0 0.0
  %1808 = vmatpush1.msra.mxu0 0.0
  %1809 = vmatprep.subr.mxu0 0.0
  %1810 = vmatpush1.msra.mxu0 0.0
  %1811 = vmatprep.subr.mxu0 0.0
  %1812 = vmatpush1.msra.mxu0 0.0
  %1813 = vmatprep.subr.mxu0 0.0
  %1814 = vmatpush1.msra.mxu0 0.0
  %1815 = vmatprep.subr.mxu0 0.0
  %1816 = vmatpush1.msra.mxu0 0.0
  %1817 = vmatprep.subr.mxu0 0.0
  %1818 = vmatpush1.msra.mxu0 0.0
  %1819 = vmatprep.mubr.f32.mxu0 0.0
  %1820 = vmatmul.mubr.f32.gmra.mrb[0].mxu0 %v1750
  %v1821 = vpop.f32.mrb[0].mxu0
  %v1822 = vadd.f32 0.0, %v1821
  %v1823 = vpop.f32.mrb[0].mxu0
  %1824 = vmatprep.mubr.f32.mxu0 0.0
  %1825 = vmatmul.mubr.f32.gmra.mrb[0].mxu0 %v1753
  %v1826 = vpop.f32.mrb[0].mxu0
  %v1827 = vadd.f32 0.0, %v1826
  %v1828 = vpop.f32.mrb[0].mxu0
  %1829 = vdwg.mxu0
  %v1831 = vsel %vm38, %v937, 0
  %v1834 = vsel %vm38, %v938, 0
  %1836 = vmatprep.subr.mxu0 0.0
  %1837 = vmatpush1.msra.mxu0 %v912
  %1838 = vmatprep.subr.mxu0 0.0
  %1839 = vmatpush1.msra.mxu0 0.0
  %1840 = vmatprep.subr.mxu0 0.0
  %1841 = vmatpush1.msra.mxu0 0.0
  %1842 = vmatprep.subr.mxu0 0.0
  %1843 = vmatpush1.msra.mxu0 0.0
  %1844 = vmatprep.subr.mxu0 0.0
  %1845 = vmatpush1.msra.mxu0 0.0
  %1846 = vmatprep.subr.mxu0 0.0
  %1847 = vmatpush1.msra.mxu0 0.0
  %1848 = vmatprep.subr.mxu0 0.0
  %1849 = vmatpush1.msra.mxu0 0.0
  %1850 = vmatprep.subr.mxu0 0.0
  %1851 = vmatpush1.msra.mxu0 0.0
  %1852 = vmatprep.subr.mxu0 0.0
  %1853 = vmatpush1.msra.mxu0 0.0
  %1854 = vmatprep.subr.mxu0 0.0
  %1855 = vmatpush1.msra.mxu0 0.0
  %1856 = vmatprep.subr.mxu0 0.0
  %1857 = vmatpush1.msra.mxu0 0.0
  %1858 = vmatprep.subr.mxu0 0.0
  %1859 = vmatpush1.msra.mxu0 0.0
  %1860 = vmatprep.subr.mxu0 0.0
  %1861 = vmatpush1.msra.mxu0 0.0
  %1862 = vmatprep.subr.mxu0 0.0
  %1863 = vmatpush1.msra.mxu0 0.0
  %1864 = vmatprep.subr.mxu0 0.0
  %1865 = vmatpush1.msra.mxu0 0.0
  %1866 = vmatprep.subr.mxu0 0.0
  %1867 = vmatpush1.msra.mxu0 0.0
  %1868 = vmatprep.subr.mxu0 0.0
  %1869 = vmatpush1.msra.mxu0 0.0
  %1870 = vmatprep.subr.mxu0 0.0
  %1871 = vmatpush1.msra.mxu0 0.0
  %1872 = vmatprep.subr.mxu0 0.0
  %1873 = vmatpush1.msra.mxu0 0.0
  %1874 = vmatprep.subr.mxu0 0.0
  %1875 = vmatpush1.msra.mxu0 0.0
  %1876 = vmatprep.subr.mxu0 0.0
  %1877 = vmatpush1.msra.mxu0 0.0
  %1878 = vmatprep.subr.mxu0 0.0
  %1879 = vmatpush1.msra.mxu0 0.0
  %1880 = vmatprep.subr.mxu0 0.0
  %1881 = vmatpush1.msra.mxu0 0.0
  %1882 = vmatprep.subr.mxu0 0.0
  %1883 = vmatpush1.msra.mxu0 0.0
  %1884 = vmatprep.subr.mxu0 0.0
  %1885 = vmatpush1.msra.mxu0 0.0
  %1886 = vmatprep.subr.mxu0 0.0
  %1887 = vmatpush1.msra.mxu0 0.0
  %1888 = vmatprep.subr.mxu0 0.0
  %1889 = vmatpush1.msra.mxu0 0.0
  %1890 = vmatprep.subr.mxu0 0.0
  %1891 = vmatpush1.msra.mxu0 0.0
  %1892 = vmatprep.subr.mxu0 0.0
  %1893 = vmatpush1.msra.mxu0 0.0
  %1894 = vmatprep.subr.mxu0 0.0
  %1895 = vmatpush1.msra.mxu0 0.0
  %1896 = vmatprep.subr.mxu0 0.0
  %1897 = vmatpush1.msra.mxu0 0.0
  %1898 = vmatprep.subr.mxu0 0.0
  %1899 = vmatpush1.msra.mxu0 0.0
  %1900 = vmatprep.mubr.f32.mxu0 0.0
  %1901 = vmatmul.mubr.f32.gmra.mrb[0].mxu0 %v1831
  %v1902 = vpop.f32.mrb[0].mxu0
  %v1903 = vadd.f32 0.0, %v1902
  %v1904 = vpop.f32.mrb[0].mxu0
  %1905 = vmatprep.mubr.f32.mxu0 0.0
  %1906 = vmatmul.mubr.f32.gmra.mrb[0].mxu0 %v1834
  %v1907 = vpop.f32.mrb[0].mxu0
  %v1908 = vadd.f32 0.0, %v1907
  %v1909 = vpop.f32.mrb[0].mxu0
  %1910 = vdwg.mxu0
  %vm1911 = vcmask 97280
  %1912 = vst.msk [vmem:[%s3] sm:$0xff] %vm1911, %v1012
  %vm1913 = vcmask 93184
  %1914 = vst.msk [vmem:[%s3 + $0x8] sm:$0xf] %vm1913, %v1017
  %1915 = vst.msk [vmem:[%s3 + $0x10] sm:$0xff] %vm1911, %v1093
  %1916 = vst.msk [vmem:[%s3 + $0x18] sm:$0xf] %vm1913, %v1098
  %1917 = vst.msk [vmem:[%s3 + $0x20] sm:$0xff] %vm1911, %v1174
  %1918 = vst.msk [vmem:[%s3 + $0x28] sm:$0xf] %vm1913, %v1179
  %1919 = vst.msk [vmem:[%s3 + $0x30] sm:$0xff] %vm1911, %v1255
  %1920 = vst.msk [vmem:[%s3 + $0x38] sm:$0xf] %vm1913, %v1260
  %1921 = vst.msk [vmem:[%s3 + $0x40] sm:$0xff] %vm1911, %v1336
  %1922 = vst.msk [vmem:[%s3 + $0x48] sm:$0xf] %vm1913, %v1341
  %1923 = vst.msk [vmem:[%s3 + $0x50] sm:$0xff] %vm1911, %v1417
  %1924 = vst.msk [vmem:[%s3 + $0x58] sm:$0xf] %vm1913, %v1422
  %1925 = vst.msk [vmem:[%s3 + $0x60] sm:$0xff] %vm1911, %v1498
  %1926 = vst.msk [vmem:[%s3 + $0x68] sm:$0xf] %vm1913, %v1503
  %1927 = vst.msk [vmem:[%s3 + $0x70] sm:$0xff] %vm1911, %v1579
  %1928 = vst.msk [vmem:[%s3 + $0x78] sm:$0xf] %vm1913, %v1584
  %1929 = vst.msk [vmem:[%s3 + $0x80] sm:$0xff] %vm1911, %v1660
  %1930 = vst.msk [vmem:[%s3 + $0x88] sm:$0xf] %vm1913, %v1665
  %1931 = vst.msk [vmem:[%s3 + $0x90] sm:$0xff] %vm1911, %v1741
  %1932 = vst.msk [vmem:[%s3 + $0x98] sm:$0xf] %vm1913, %v1746
  %1933 = vst.msk [vmem:[%s3 + $0xa0] sm:$0xff] %vm1911, %v1822
  %1934 = vst.msk [vmem:[%s3 + $0xa8] sm:$0xf] %vm1913, %v1827
  %1935 = vst.msk [vmem:[%s3 + $0xb0] sm:$0xff] %vm1911, %v1903
  %1936 = vst.msk [vmem:[%s3 + $0xb8] sm:$0xf] %vm1913, %v1908
  // Predicated region
  $region14: #{single_sub_tree_seg_forward.3} parent=0 // pred_check
    _
  $region15: #{single_sub_tree_seg_forward.3} parent=0 // pred_check_branch
    %1938 = sbr.rel (0) target = $region17
  $region16: #{single_sub_tree_seg_forward.3} parent=0 // pred_region
    _
  $region17: #{single_sub_tree_seg_forward.3} parent=0 // pred_fallthru
    _
  // Predicated region
  $region18: #{single_sub_tree_seg_forward.3} parent=0 // pred_check
    _
  $region19: #{single_sub_tree_seg_forward.3} parent=0 // pred_check_branch
    %1940 = sbr.rel (0) target = $region21
  $region20: #{single_sub_tree_seg_forward.3} parent=0 // pred_region
    _
  $region21: #{single_sub_tree_seg_forward.3} parent=0 // pred_fallthru
    _

// kernel: single_sub_tree_seg_forward.4
$region0: #{single_sub_tree_seg_forward.4}
  #allocation0 [shape = 'u32[]', space=smem, size = 0x4, offset = 0x4, fixed_abs, tag = 'smem constant byte address 0x4 - core index']
  #allocation1 [shape = 'u32[144,128]{1,0:T(1,128)}', space=vmem, size = 0x12000, scoped, tag = 'internal scratch']
  %s0 = inlined_call_operand.vmem [shape: bf16[576,27], index: 0, kind: input, shape index: {}]
  %s1 = inlined_call_operand.vmem [shape: bf16[27,8], index: 1, kind: input, shape index: {}]
  %s2 = inlined_call_operand.vmem [shape: f32[1,8], index: 2, kind: input, shape index: {}]
  %s3 = inlined_call_operand.vmem [shape: bf16[7,8], index: 3, kind: input, shape index: {}]
  %s4 = inlined_call_operand.vmem [shape: f32[7,1], index: 4, kind: input, shape index: {}]
  %s5 = inlined_call_operand.vmem [shape: f32[7,576], index: 5, kind: output, shape index: {}]
  %s6 = sld [smem:[#allocation0]]
  $region30: #{single_sub_tree_seg_forward.4} parent=0
    _
  %s8 = ssub.s32 1, %s6
  %s9 = scalar_select 0, %s8, %s6
  // Predicated region
  $region2: #{single_sub_tree_seg_forward.4} parent=0 // pred_check
    _
  $region3: #{single_sub_tree_seg_forward.4} parent=0 // pred_check_branch
    %11 = sbr.rel (0) target = $region5
  $region4: #{single_sub_tree_seg_forward.4} parent=0 // pred_region
    _
  $region5: #{single_sub_tree_seg_forward.4} parent=0 // pred_fallthru
    _
  // Predicated region
  $region6: #{single_sub_tree_seg_forward.4} parent=0 // pred_check
    _
  $region7: #{single_sub_tree_seg_forward.4} parent=0 // pred_check_branch
    %13 = sbr.rel (0) target = $region9
  $region8: #{single_sub_tree_seg_forward.4} parent=0 // pred_region
    _
  $region9: #{single_sub_tree_seg_forward.4} parent=0 // pred_fallthru
    _
  // Predicated region
  $region10: #{single_sub_tree_seg_forward.4} parent=0 // pred_check
    _
  $region11: #{single_sub_tree_seg_forward.4} parent=0 // pred_check_branch
    %15 = sbr.rel (0) target = $region13
  $region12: #{single_sub_tree_seg_forward.4} parent=0 // pred_region
    _
  $region13: #{single_sub_tree_seg_forward.4} parent=0 // pred_fallthru
    _
  // Predicated region
  $region14: #{single_sub_tree_seg_forward.4} parent=0 // pred_check
    _
  $region15: #{single_sub_tree_seg_forward.4} parent=0 // pred_check_branch
    %17 = sbr.rel (0) target = $region17
  $region16: #{single_sub_tree_seg_forward.4} parent=0 // pred_region
    _
  $region17: #{single_sub_tree_seg_forward.4} parent=0 // pred_fallthru
    _
  // Predicated region
  $region18: #{single_sub_tree_seg_forward.4} parent=0 // pred_check
    _
  $region19: #{single_sub_tree_seg_forward.4} parent=0 // pred_check_branch
    %19 = sbr.rel (0) target = $region21
  $region20: #{single_sub_tree_seg_forward.4} parent=0 // pred_region
    _
  $region21: #{single_sub_tree_seg_forward.4} parent=0 // pred_fallthru
    _
  %v21 = vld [vmem:[%s0] sm:$0xf]
  %v22 = vld [vmem:[%s0 + $0x4] sm:$0xf]
  %v23 = vld [vmem:[%s0 + $0x8] sm:$0xf]
  %v24 = vld [vmem:[%s0 + $0xc] sm:$0xf]
  %v25 = vld [vmem:[%s0 + $0x10] sm:$0xf]
  %v26 = vld [vmem:[%s0 + $0x14] sm:$0xf]
  %v27 = vld [vmem:[%s0 + $0x18] sm:$0xf]
  %v28 = vld [vmem:[%s0 + $0x1c] sm:$0xf]
  %v29 = vld [vmem:[%s0 + $0x20] sm:$0xf]
  %v30 = vld [vmem:[%s0 + $0x24] sm:$0xf]
  %v31 = vld [vmem:[%s0 + $0x28] sm:$0xf]
  %v32 = vld [vmem:[%s0 + $0x2c] sm:$0xf]
  %v33 = vld [vmem:[%s0 + $0x30] sm:$0xf]
  %v34 = vld [vmem:[%s0 + $0x34] sm:$0xf]
  %v35 = vld [vmem:[%s0 + $0x38] sm:$0xf]
  %v36 = vld [vmem:[%s0 + $0x3c] sm:$0xf]
  %v37 = vld [vmem:[%s0 + $0x40] sm:$0xf]
  %v38 = vld [vmem:[%s0 + $0x44] sm:$0xf]
  %v39 = vld [vmem:[%s0 + $0x48] sm:$0xf]
  %v40 = vld [vmem:[%s0 + $0x4c] sm:$0xf]
  %v41 = vld [vmem:[%s0 + $0x50] sm:$0xf]
  %v42 = vld [vmem:[%s0 + $0x54] sm:$0xf]
  %v43 = vld [vmem:[%s0 + $0x58] sm:$0xf]
  %v44 = vld [vmem:[%s0 + $0x5c] sm:$0xf]
  %v45 = vld [vmem:[%s0 + $0x60] sm:$0xf]
  %v46 = vld [vmem:[%s0 + $0x64] sm:$0xf]
  %v47 = vld [vmem:[%s0 + $0x68] sm:$0xf]
  %v48 = vld [vmem:[%s0 + $0x6c] sm:$0xf]
  %v49 = vld [vmem:[%s0 + $0x70] sm:$0xf]
  %v50 = vld [vmem:[%s0 + $0x74] sm:$0xf]
  %v51 = vld [vmem:[%s0 + $0x78] sm:$0xf]
  %v52 = vld [vmem:[%s0 + $0x7c] sm:$0xf]
  %v53 = vld [vmem:[%s0 + $0x80] sm:$0xf]
  %v54 = vld [vmem:[%s0 + $0x84] sm:$0xf]
  %v55 = vld [vmem:[%s0 + $0x88] sm:$0xf]
  %v56 = vld [vmem:[%s0 + $0x8c] sm:$0xf]
  %v57 = vld [vmem:[%s0 + $0x90] sm:$0xf]
  %v58 = vld [vmem:[%s0 + $0x94] sm:$0xf]
  %v59 = vld [vmem:[%s0 + $0x98] sm:$0xf]
  %v60 = vld [vmem:[%s0 + $0x9c] sm:$0xf]
  %v61 = vld [vmem:[%s0 + $0xa0] sm:$0xf]
  %v62 = vld [vmem:[%s0 + $0xa4] sm:$0xf]
  %v63 = vld [vmem:[%s0 + $0xa8] sm:$0xf]
  %v64 = vld [vmem:[%s0 + $0xac] sm:$0xf]
  %v65 = vld [vmem:[%s0 + $0xb0] sm:$0xf]
  %v66 = vld [vmem:[%s0 + $0xb4] sm:$0xf]
  %v67 = vld [vmem:[%s0 + $0xb8] sm:$0xf]
  %v68 = vld [vmem:[%s0 + $0xbc] sm:$0xf]
  %v69 = vld [vmem:[%s0 + $0xc0] sm:$0xf]
  %v70 = vld [vmem:[%s0 + $0xc4] sm:$0xf]
  %v71 = vld [vmem:[%s0 + $0xc8] sm:$0xf]
  %v72 = vld [vmem:[%s0 + $0xcc] sm:$0xf]
  %v73 = vld [vmem:[%s0 + $0xd0] sm:$0xf]
  %v74 = vld [vmem:[%s0 + $0xd4] sm:$0xf]
  %v75 = vld [vmem:[%s0 + $0xd8] sm:$0xf]
  %v76 = vld [vmem:[%s0 + $0xdc] sm:$0xf]
  %v77 = vld [vmem:[%s0 + $0xe0] sm:$0xf]
  %v78 = vld [vmem:[%s0 + $0xe4] sm:$0xf]
  %v79 = vld [vmem:[%s0 + $0xe8] sm:$0xf]
  %v80 = vld [vmem:[%s0 + $0xec] sm:$0xf]
  %v81 = vld [vmem:[%s0 + $0xf0] sm:$0xf]
  %v82 = vld [vmem:[%s0 + $0xf4] sm:$0xf]
  %v83 = vld [vmem:[%s0 + $0xf8] sm:$0xf]
  %v84 = vld [vmem:[%s0 + $0xfc] sm:$0xf]
  %v85 = vld [vmem:[%s0 + $0x100] sm:$0xf]
  %v86 = vld [vmem:[%s0 + $0x104] sm:$0xf]
  %v87 = vld [vmem:[%s0 + $0x108] sm:$0xf]
  %v88 = vld [vmem:[%s0 + $0x10c] sm:$0xf]
  %v89 = vld [vmem:[%s0 + $0x110] sm:$0xf]
  %v90 = vld [vmem:[%s0 + $0x114] sm:$0xf]
  %v91 = vld [vmem:[%s0 + $0x118] sm:$0xf]
  %v92 = vld [vmem:[%s0 + $0x11c] sm:$0xf]
  %v93 = vld [vmem:[%s1] sm:$0xf]
  %v94 = vld [vmem:[%s1 + $0x4] sm:$0xf]
  %v95 = vld [vmem:[%s1 + $0x8] sm:$0xf]
  %v96 = vld [vmem:[%s1 + $0xc] sm:$0x3]
  %v97 = vld [vmem:[%s2] sm:$0x1]
  %v99 = vlaneseq
  %v100 = vshrl.u32 %v99, 7
  %v101 = vsub.s32 0, %v100
  %v102 = vrot.slane %v97, %v101
  %v176 = vunpack.c.l.b16 %v21
  %v177 = vunpack.c.l.b16 %v22
  %v178 = vunpack.c.l.b16 %v23
  %v179 = vunpack.c.l.b16 %v24
  %v180 = vunpack.c.l.b16 %v25
  %v181 = vunpack.c.l.b16 %v26
  %v182 = vunpack.c.l.b16 %v27
  %v183 = vunpack.c.l.b16 %v28
  %v184 = vunpack.c.l.b16 %v29
  %v185 = vunpack.c.l.b16 %v30
  %v186 = vunpack.c.l.b16 %v31
  %v187 = vunpack.c.l.b16 %v32
  %v188 = vunpack.c.l.b16 %v33
  %v189 = vunpack.c.l.b16 %v34
  %v190 = vunpack.c.l.b16 %v35
  %v191 = vunpack.c.l.b16 %v36
  %v192 = vunpack.c.l.b16 %v37
  %v193 = vunpack.c.l.b16 %v38
  %v194 = vunpack.c.l.b16 %v39
  %v195 = vunpack.c.l.b16 %v40
  %v196 = vunpack.c.l.b16 %v41
  %v197 = vunpack.c.l.b16 %v42
  %v198 = vunpack.c.l.b16 %v43
  %v199 = vunpack.c.l.b16 %v44
  %v200 = vunpack.c.l.b16 %v45
  %v201 = vunpack.c.l.b16 %v46
  %v202 = vunpack.c.l.b16 %v47
  %v203 = vunpack.c.l.b16 %v48
  %v204 = vunpack.c.l.b16 %v49
  %v205 = vunpack.c.l.b16 %v50
  %v206 = vunpack.c.l.b16 %v51
  %v207 = vunpack.c.l.b16 %v52
  %v208 = vunpack.c.l.b16 %v53
  %v209 = vunpack.c.l.b16 %v54
  %v210 = vunpack.c.l.b16 %v55
  %v211 = vunpack.c.l.b16 %v56
  %v212 = vunpack.c.l.b16 %v57
  %v213 = vunpack.c.l.b16 %v58
  %v214 = vunpack.c.l.b16 %v59
  %v215 = vunpack.c.l.b16 %v60
  %v216 = vunpack.c.l.b16 %v61
  %v217 = vunpack.c.l.b16 %v62
  %v218 = vunpack.c.l.b16 %v63
  %v219 = vunpack.c.l.b16 %v64
  %v220 = vunpack.c.l.b16 %v65
  %v221 = vunpack.c.l.b16 %v66
  %v222 = vunpack.c.l.b16 %v67
  %v223 = vunpack.c.l.b16 %v68
  %v224 = vunpack.c.l.b16 %v69
  %v225 = vunpack.c.l.b16 %v70
  %v226 = vunpack.c.l.b16 %v71
  %v227 = vunpack.c.l.b16 %v72
  %v228 = vunpack.c.l.b16 %v73
  %v229 = vunpack.c.l.b16 %v74
  %v230 = vunpack.c.l.b16 %v75
  %v231 = vunpack.c.l.b16 %v76
  %v232 = vunpack.c.l.b16 %v77
  %v233 = vunpack.c.l.b16 %v78
  %v234 = vunpack.c.l.b16 %v79
  %v235 = vunpack.c.l.b16 %v80
  %v236 = vunpack.c.l.b16 %v81
  %v237 = vunpack.c.l.b16 %v82
  %v238 = vunpack.c.l.b16 %v83
  %v239 = vunpack.c.l.b16 %v84
  %v240 = vunpack.c.l.b16 %v85
  %v241 = vunpack.c.l.b16 %v86
  %v242 = vunpack.c.l.b16 %v87
  %v243 = vunpack.c.l.b16 %v88
  %v244 = vunpack.c.l.b16 %v89
  %v245 = vunpack.c.l.b16 %v90
  %v246 = vunpack.c.l.b16 %v91
  %v247 = vunpack.c.l.b16 %v92
  %v248 = vpack.c.b16 %v177, %v176
  %v249 = vpack.c.b16 %v179, %v178
  %v250 = vpack.c.b16 %v181, %v180
  %v251 = vpack.c.b16 %v183, %v182
  %v252 = vpack.c.b16 %v185, %v184
  %v253 = vpack.c.b16 %v187, %v186
  %v254 = vpack.c.b16 %v189, %v188
  %v255 = vpack.c.b16 %v191, %v190
  %v256 = vpack.c.b16 %v193, %v192
  %v257 = vpack.c.b16 %v195, %v194
  %v258 = vpack.c.b16 %v197, %v196
  %v259 = vpack.c.b16 %v199, %v198
  %v260 = vpack.c.b16 %v201, %v200
  %v261 = vpack.c.b16 %v203, %v202
  %v262 = vpack.c.b16 %v205, %v204
  %v263 = vpack.c.b16 %v207, %v206
  %v264 = vpack.c.b16 %v209, %v208
  %v265 = vpack.c.b16 %v211, %v210
  %v266 = vpack.c.b16 %v213, %v212
  %v267 = vpack.c.b16 %v215, %v214
  %v268 = vpack.c.b16 %v217, %v216
  %v269 = vpack.c.b16 %v219, %v218
  %v270 = vpack.c.b16 %v221, %v220
  %v271 = vpack.c.b16 %v223, %v222
  %v272 = vpack.c.b16 %v225, %v224
  %v273 = vpack.c.b16 %v227, %v226
  %v274 = vpack.c.b16 %v229, %v228
  %v275 = vpack.c.b16 %v231, %v230
  %v276 = vpack.c.b16 %v233, %v232
  %v277 = vpack.c.b16 %v235, %v234
  %v278 = vpack.c.b16 %v237, %v236
  %v279 = vpack.c.b16 %v239, %v238
  %v280 = vpack.c.b16 %v241, %v240
  %v281 = vpack.c.b16 %v243, %v242
  %v282 = vpack.c.b16 %v245, %v244
  %v283 = vpack.c.b16 %v247, %v246
  %v288 = vunpack.c.l.b16 %v93
  %v289 = vunpack.c.l.b16 %v94
  %v290 = vunpack.c.l.b16 %v95
  %v291 = vunpack.c.l.b16 %v96
  %v292 = vpack.c.b16 %v289, %v288
  %v293 = vpack.c.b16 %v291, %v290
  %vm295 = vcmask 220160
  %v297 = vsel %vm295, %v248, 0
  %v300 = vsel %vm295, %v249, 0
  %v303 = vsel %vm295, %v250, 0
  %v306 = vsel %vm295, %v251, 0
  %v309 = vsel %vm295, %v252, 0
  %v312 = vsel %vm295, %v253, 0
  %v315 = vsel %vm295, %v254, 0
  %v318 = vsel %vm295, %v255, 0
  %v321 = vsel %vm295, %v256, 0
  %v324 = vsel %vm295, %v257, 0
  %v327 = vsel %vm295, %v258, 0
  %v330 = vsel %vm295, %v259, 0
  %v333 = vsel %vm295, %v260, 0
  %v336 = vsel %vm295, %v261, 0
  %v339 = vsel %vm295, %v262, 0
  %v342 = vsel %vm295, %v263, 0
  %v345 = vsel %vm295, %v264, 0
  %v348 = vsel %vm295, %v265, 0
  %v351 = vsel %vm295, %v266, 0
  %v354 = vsel %vm295, %v267, 0
  %v357 = vsel %vm295, %v268, 0
  %v360 = vsel %vm295, %v269, 0
  %v363 = vsel %vm295, %v270, 0
  %v366 = vsel %vm295, %v271, 0
  %v369 = vsel %vm295, %v272, 0
  %v372 = vsel %vm295, %v273, 0
  %v375 = vsel %vm295, %v274, 0
  %v378 = vsel %vm295, %v275, 0
  %v381 = vsel %vm295, %v276, 0
  %v384 = vsel %vm295, %v277, 0
  %v387 = vsel %vm295, %v278, 0
  %v390 = vsel %vm295, %v279, 0
  %v393 = vsel %vm295, %v280, 0
  %v396 = vsel %vm295, %v281, 0
  %v399 = vsel %vm295, %v282, 0
  %v402 = vsel %vm295, %v283, 0
  %vm404 = vcmask 1044480
  %vm405 = vcmask 1045504
  %v406 = vsel %vm404, 4294967295, 65535
  %v407 = vsel %vm405, %v406, 0
  %v409 = vand.u32 %v293, %v407
  %411 = vmatprep.subr.bf16.mxu0 0
  %412 = vmatpush1.bf16.msra.mxu0 %v292
  %413 = vmatprep.subr.bf16.mxu0 0
  %414 = vmatpush1.bf16.msra.mxu0 %v409
  %415 = vmatprep.subr.bf16.mxu0 0
  %416 = vmatpush1.bf16.msra.mxu0 0
  %417 = vmatprep.subr.bf16.mxu0 0
  %418 = vmatpush1.bf16.msra.mxu0 0
  %419 = vmatprep.subr.bf16.mxu0 0
  %420 = vmatpush1.bf16.msra.mxu0 0
  %421 = vmatprep.subr.bf16.mxu0 0
  %422 = vmatpush1.bf16.msra.mxu0 0
  %423 = vmatprep.subr.bf16.mxu0 0
  %424 = vmatpush1.bf16.msra.mxu0 0
  %425 = vmatprep.subr.bf16.mxu0 0
  %426 = vmatpush1.bf16.msra.mxu0 0
  %427 = vmatprep.subr.bf16.mxu0 0
  %428 = vmatpush1.bf16.msra.mxu0 0
  %429 = vmatprep.subr.bf16.mxu0 0
  %430 = vmatpush1.bf16.msra.mxu0 0
  %431 = vmatprep.subr.bf16.mxu0 0
  %432 = vmatpush1.bf16.msra.mxu0 0
  %433 = vmatprep.subr.bf16.mxu0 0
  %434 = vmatpush1.bf16.msra.mxu0 0
  %435 = vmatprep.subr.bf16.mxu0 0
  %436 = vmatpush1.bf16.msra.mxu0 0
  %437 = vmatprep.subr.bf16.mxu0 0
  %438 = vmatpush1.bf16.msra.mxu0 0
  %439 = vmatprep.subr.bf16.mxu0 0
  %440 = vmatpush1.bf16.msra.mxu0 0
  %441 = vmatprep.subr.bf16.mxu0 0
  %442 = vmatpush1.bf16.msra.mxu0 0
  %443 = vmatprep.mubr.bf16.mxu0 0
  %444 = vmatmul.mubr.bf16.gmra.mrb[0].mxu0 %v297
  %v445 = vpop.f32.mrb[0].mxu0
  %v446 = vadd.f32 %v102, %v445
  %v447 = vpop.f32.mrb[0].mxu0
  %v448 = vpop.f32.mrb[0].mxu0
  %v449 = vadd.f32 %v102, %v448
  %v450 = vpop.f32.mrb[0].mxu0
  %451 = vmatprep.mubr.bf16.mxu0 0
  %452 = vmatmul.mubr.bf16.gmra.mrb[0].mxu0 %v300
  %v453 = vpop.f32.mrb[0].mxu0
  %v454 = vadd.f32 %v102, %v453
  %v455 = vpop.f32.mrb[0].mxu0
  %v456 = vpop.f32.mrb[0].mxu0
  %v457 = vadd.f32 %v102, %v456
  %v458 = vpop.f32.mrb[0].mxu0
  %459 = vmatprep.mubr.bf16.mxu0 0
  %460 = vmatmul.mubr.bf16.gmra.mrb[0].mxu0 %v303
  %v461 = vpop.f32.mrb[0].mxu0
  %v462 = vadd.f32 %v102, %v461
  %v463 = vpop.f32.mrb[0].mxu0
  %v464 = vpop.f32.mrb[0].mxu0
  %v465 = vadd.f32 %v102, %v464
  %v466 = vpop.f32.mrb[0].mxu0
  %467 = vmatprep.mubr.bf16.mxu0 0
  %468 = vmatmul.mubr.bf16.gmra.mrb[0].mxu0 %v306
  %v469 = vpop.f32.mrb[0].mxu0
  %v470 = vadd.f32 %v102, %v469
  %v471 = vpop.f32.mrb[0].mxu0
  %v472 = vpop.f32.mrb[0].mxu0
  %v473 = vadd.f32 %v102, %v472
  %v474 = vpop.f32.mrb[0].mxu0
  %475 = vmatprep.mubr.bf16.mxu0 0
  %476 = vmatmul.mubr.bf16.gmra.mrb[0].mxu0 %v309
  %v477 = vpop.f32.mrb[0].mxu0
  %v478 = vadd.f32 %v102, %v477
  %v479 = vpop.f32.mrb[0].mxu0
  %v480 = vpop.f32.mrb[0].mxu0
  %v481 = vadd.f32 %v102, %v480
  %v482 = vpop.f32.mrb[0].mxu0
  %483 = vmatprep.mubr.bf16.mxu0 0
  %484 = vmatmul.mubr.bf16.gmra.mrb[0].mxu0 %v312
  %v485 = vpop.f32.mrb[0].mxu0
  %v486 = vadd.f32 %v102, %v485
  %v487 = vpop.f32.mrb[0].mxu0
  %v488 = vpop.f32.mrb[0].mxu0
  %v489 = vadd.f32 %v102, %v488
  %v490 = vpop.f32.mrb[0].mxu0
  %491 = vmatprep.mubr.bf16.mxu0 0
  %492 = vmatmul.mubr.bf16.gmra.mrb[0].mxu0 %v315
  %v493 = vpop.f32.mrb[0].mxu0
  %v494 = vadd.f32 %v102, %v493
  %v495 = vpop.f32.mrb[0].mxu0
  %v496 = vpop.f32.mrb[0].mxu0
  %v497 = vadd.f32 %v102, %v496
  %v498 = vpop.f32.mrb[0].mxu0
  %499 = vmatprep.mubr.bf16.mxu0 0
  %500 = vmatmul.mubr.bf16.gmra.mrb[0].mxu0 %v318
  %v501 = vpop.f32.mrb[0].mxu0
  %v502 = vadd.f32 %v102, %v501
  %v503 = vpop.f32.mrb[0].mxu0
  %v504 = vpop.f32.mrb[0].mxu0
  %v505 = vadd.f32 %v102, %v504
  %v506 = vpop.f32.mrb[0].mxu0
  %507 = vmatprep.mubr.bf16.mxu0 0
  %508 = vmatmul.mubr.bf16.gmra.mrb[0].mxu0 %v321
  %v509 = vpop.f32.mrb[0].mxu0
  %v510 = vadd.f32 %v102, %v509
  %v511 = vpop.f32.mrb[0].mxu0
  %v512 = vpop.f32.mrb[0].mxu0
  %v513 = vadd.f32 %v102, %v512
  %v514 = vpop.f32.mrb[0].mxu0
  %515 = vmatprep.mubr.bf16.mxu0 0
  %516 = vmatmul.mubr.bf16.gmra.mrb[0].mxu0 %v324
  %v517 = vpop.f32.mrb[0].mxu0
  %v518 = vadd.f32 %v102, %v517
  %v519 = vpop.f32.mrb[0].mxu0
  %v520 = vpop.f32.mrb[0].mxu0
  %v521 = vadd.f32 %v102, %v520
  %v522 = vpop.f32.mrb[0].mxu0
  %523 = vmatprep.mubr.bf16.mxu0 0
  %524 = vmatmul.mubr.bf16.gmra.mrb[0].mxu0 %v327
  %v525 = vpop.f32.mrb[0].mxu0
  %v526 = vadd.f32 %v102, %v525
  %v527 = vpop.f32.mrb[0].mxu0
  %v528 = vpop.f32.mrb[0].mxu0
  %v529 = vadd.f32 %v102, %v528
  %v530 = vpop.f32.mrb[0].mxu0
  %531 = vmatprep.mubr.bf16.mxu0 0
  %532 = vmatmul.mubr.bf16.gmra.mrb[0].mxu0 %v330
  %v533 = vpop.f32.mrb[0].mxu0
  %v534 = vadd.f32 %v102, %v533
  %v535 = vpop.f32.mrb[0].mxu0
  %v536 = vpop.f32.mrb[0].mxu0
  %v537 = vadd.f32 %v102, %v536
  %v538 = vpop.f32.mrb[0].mxu0
  %539 = vmatprep.mubr.bf16.mxu0 0
  %540 = vmatmul.mubr.bf16.gmra.mrb[0].mxu0 %v333
  %v541 = vpop.f32.mrb[0].mxu0
  %v542 = vadd.f32 %v102, %v541
  %v543 = vpop.f32.mrb[0].mxu0
  %v544 = vpop.f32.mrb[0].mxu0
  %v545 = vadd.f32 %v102, %v544
  %v546 = vpop.f32.mrb[0].mxu0
  %547 = vmatprep.mubr.bf16.mxu0 0
  %548 = vmatmul.mubr.bf16.gmra.mrb[0].mxu0 %v336
  %v549 = vpop.f32.mrb[0].mxu0
  %v550 = vadd.f32 %v102, %v549
  %v551 = vpop.f32.mrb[0].mxu0
  %v552 = vpop.f32.mrb[0].mxu0
  %v553 = vadd.f32 %v102, %v552
  %v554 = vpop.f32.mrb[0].mxu0
  %555 = vmatprep.mubr.bf16.mxu0 0
  %556 = vmatmul.mubr.bf16.gmra.mrb[0].mxu0 %v339
  %v557 = vpop.f32.mrb[0].mxu0
  %v558 = vadd.f32 %v102, %v557
  %v559 = vpop.f32.mrb[0].mxu0
  %v560 = vpop.f32.mrb[0].mxu0
  %v561 = vadd.f32 %v102, %v560
  %v562 = vpop.f32.mrb[0].mxu0
  %563 = vmatprep.mubr.bf16.mxu0 0
  %564 = vmatmul.mubr.bf16.gmra.mrb[0].mxu0 %v342
  %v565 = vpop.f32.mrb[0].mxu0
  %v566 = vadd.f32 %v102, %v565
  %v567 = vpop.f32.mrb[0].mxu0
  %v568 = vpop.f32.mrb[0].mxu0
  %v569 = vadd.f32 %v102, %v568
  %v570 = vpop.f32.mrb[0].mxu0
  %571 = vmatprep.mubr.bf16.mxu0 0
  %572 = vmatmul.mubr.bf16.gmra.mrb[0].mxu0 %v345
  %v573 = vpop.f32.mrb[0].mxu0
  %v574 = vadd.f32 %v102, %v573
  %v575 = vpop.f32.mrb[0].mxu0
  %v576 = vpop.f32.mrb[0].mxu0
  %v577 = vadd.f32 %v102, %v576
  %v578 = vpop.f32.mrb[0].mxu0
  %579 = vmatprep.mubr.bf16.mxu0 0
  %580 = vmatmul.mubr.bf16.gmra.mrb[0].mxu0 %v348
  %v581 = vpop.f32.mrb[0].mxu0
  %v582 = vadd.f32 %v102, %v581
  %v583 = vpop.f32.mrb[0].mxu0
  %v584 = vpop.f32.mrb[0].mxu0
  %v585 = vadd.f32 %v102, %v584
  %v586 = vpop.f32.mrb[0].mxu0
  %587 = vmatprep.mubr.bf16.mxu0 0
  %588 = vmatmul.mubr.bf16.gmra.mrb[0].mxu0 %v351
  %v589 = vpop.f32.mrb[0].mxu0
  %v590 = vadd.f32 %v102, %v589
  %v591 = vpop.f32.mrb[0].mxu0
  %v592 = vpop.f32.mrb[0].mxu0
  %v593 = vadd.f32 %v102, %v592
  %v594 = vpop.f32.mrb[0].mxu0
  %595 = vmatprep.mubr.bf16.mxu0 0
  %596 = vmatmul.mubr.bf16.gmra.mrb[0].mxu0 %v354
  %v597 = vpop.f32.mrb[0].mxu0
  %v598 = vadd.f32 %v102, %v597
  %v599 = vpop.f32.mrb[0].mxu0
  %v600 = vpop.f32.mrb[0].mxu0
  %v601 = vadd.f32 %v102, %v600
  %v602 = vpop.f32.mrb[0].mxu0
  %603 = vmatprep.mubr.bf16.mxu0 0
  %604 = vmatmul.mubr.bf16.gmra.mrb[0].mxu0 %v357
  %v605 = vpop.f32.mrb[0].mxu0
  %v606 = vadd.f32 %v102, %v605
  %v607 = vpop.f32.mrb[0].mxu0
  %v608 = vpop.f32.mrb[0].mxu0
  %v609 = vadd.f32 %v102, %v608
  %v610 = vpop.f32.mrb[0].mxu0
  %611 = vmatprep.mubr.bf16.mxu0 0
  %612 = vmatmul.mubr.bf16.gmra.mrb[0].mxu0 %v360
  %v613 = vpop.f32.mrb[0].mxu0
  %v614 = vadd.f32 %v102, %v613
  %v615 = vpop.f32.mrb[0].mxu0
  %v616 = vpop.f32.mrb[0].mxu0
  %v617 = vadd.f32 %v102, %v616
  %v618 = vpop.f32.mrb[0].mxu0
  %619 = vmatprep.mubr.bf16.mxu0 0
  %620 = vmatmul.mubr.bf16.gmra.mrb[0].mxu0 %v363
  %v621 = vpop.f32.mrb[0].mxu0
  %v622 = vadd.f32 %v102, %v621
  %v623 = vpop.f32.mrb[0].mxu0
  %v624 = vpop.f32.mrb[0].mxu0
  %v625 = vadd.f32 %v102, %v624
  %v626 = vpop.f32.mrb[0].mxu0
  %627 = vmatprep.mubr.bf16.mxu0 0
  %628 = vmatmul.mubr.bf16.gmra.mrb[0].mxu0 %v366
  %v629 = vpop.f32.mrb[0].mxu0
  %v630 = vadd.f32 %v102, %v629
  %v631 = vpop.f32.mrb[0].mxu0
  %v632 = vpop.f32.mrb[0].mxu0
  %v633 = vadd.f32 %v102, %v632
  %v634 = vpop.f32.mrb[0].mxu0
  %635 = vmatprep.mubr.bf16.mxu0 0
  %636 = vmatmul.mubr.bf16.gmra.mrb[0].mxu0 %v369
  %v637 = vpop.f32.mrb[0].mxu0
  %v638 = vadd.f32 %v102, %v637
  %v639 = vpop.f32.mrb[0].mxu0
  %v640 = vpop.f32.mrb[0].mxu0
  %v641 = vadd.f32 %v102, %v640
  %v642 = vpop.f32.mrb[0].mxu0
  %643 = vmatprep.mubr.bf16.mxu0 0
  %644 = vmatmul.mubr.bf16.gmra.mrb[0].mxu0 %v372
  %v645 = vpop.f32.mrb[0].mxu0
  %v646 = vadd.f32 %v102, %v645
  %v647 = vpop.f32.mrb[0].mxu0
  %v648 = vpop.f32.mrb[0].mxu0
  %v649 = vadd.f32 %v102, %v648
  %v650 = vpop.f32.mrb[0].mxu0
  %651 = vmatprep.mubr.bf16.mxu0 0
  %652 = vmatmul.mubr.bf16.gmra.mrb[0].mxu0 %v375
  %v653 = vpop.f32.mrb[0].mxu0
  %v654 = vadd.f32 %v102, %v653
  %v655 = vpop.f32.mrb[0].mxu0
  %v656 = vpop.f32.mrb[0].mxu0
  %v657 = vadd.f32 %v102, %v656
  %v658 = vpop.f32.mrb[0].mxu0
  %659 = vmatprep.mubr.bf16.mxu0 0
  %660 = vmatmul.mubr.bf16.gmra.mrb[0].mxu0 %v378
  %v661 = vpop.f32.mrb[0].mxu0
  %v662 = vadd.f32 %v102, %v661
  %v663 = vpop.f32.mrb[0].mxu0
  %v664 = vpop.f32.mrb[0].mxu0
  %v665 = vadd.f32 %v102, %v664
  %v666 = vpop.f32.mrb[0].mxu0
  %667 = vmatprep.mubr.bf16.mxu0 0
  %668 = vmatmul.mubr.bf16.gmra.mrb[0].mxu0 %v381
  %v669 = vpop.f32.mrb[0].mxu0
  %v670 = vadd.f32 %v102, %v669
  %v671 = vpop.f32.mrb[0].mxu0
  %v672 = vpop.f32.mrb[0].mxu0
  %v673 = vadd.f32 %v102, %v672
  %v674 = vpop.f32.mrb[0].mxu0
  %675 = vmatprep.mubr.bf16.mxu0 0
  %676 = vmatmul.mubr.bf16.gmra.mrb[0].mxu0 %v384
  %v677 = vpop.f32.mrb[0].mxu0
  %v678 = vadd.f32 %v102, %v677
  %v679 = vpop.f32.mrb[0].mxu0
  %v680 = vpop.f32.mrb[0].mxu0
  %v681 = vadd.f32 %v102, %v680
  %v682 = vpop.f32.mrb[0].mxu0
  %683 = vmatprep.mubr.bf16.mxu0 0
  %684 = vmatmul.mubr.bf16.gmra.mrb[0].mxu0 %v387
  %v685 = vpop.f32.mrb[0].mxu0
  %v686 = vadd.f32 %v102, %v685
  %v687 = vpop.f32.mrb[0].mxu0
  %v688 = vpop.f32.mrb[0].mxu0
  %v689 = vadd.f32 %v102, %v688
  %v690 = vpop.f32.mrb[0].mxu0
  %691 = vmatprep.mubr.bf16.mxu0 0
  %692 = vmatmul.mubr.bf16.gmra.mrb[0].mxu0 %v390
  %v693 = vpop.f32.mrb[0].mxu0
  %v694 = vadd.f32 %v102, %v693
  %v695 = vpop.f32.mrb[0].mxu0
  %v696 = vpop.f32.mrb[0].mxu0
  %v697 = vadd.f32 %v102, %v696
  %v698 = vpop.f32.mrb[0].mxu0
  %699 = vmatprep.mubr.bf16.mxu0 0
  %700 = vmatmul.mubr.bf16.gmra.mrb[0].mxu0 %v393
  %v701 = vpop.f32.mrb[0].mxu0
  %v702 = vadd.f32 %v102, %v701
  %v703 = vpop.f32.mrb[0].mxu0
  %v704 = vpop.f32.mrb[0].mxu0
  %v705 = vadd.f32 %v102, %v704
  %v706 = vpop.f32.mrb[0].mxu0
  %707 = vmatprep.mubr.bf16.mxu0 0
  %708 = vmatmul.mubr.bf16.gmra.mrb[0].mxu0 %v396
  %v709 = vpop.f32.mrb[0].mxu0
  %v710 = vadd.f32 %v102, %v709
  %v711 = vpop.f32.mrb[0].mxu0
  %v712 = vpop.f32.mrb[0].mxu0
  %v713 = vadd.f32 %v102, %v712
  %v714 = vpop.f32.mrb[0].mxu0
  %715 = vmatprep.mubr.bf16.mxu0 0
  %716 = vmatmul.mubr.bf16.gmra.mrb[0].mxu0 %v399
  %v717 = vpop.f32.mrb[0].mxu0
  %v718 = vadd.f32 %v102, %v717
  %v719 = vpop.f32.mrb[0].mxu0
  %v720 = vpop.f32.mrb[0].mxu0
  %v721 = vadd.f32 %v102, %v720
  %v722 = vpop.f32.mrb[0].mxu0
  %723 = vmatprep.mubr.bf16.mxu0 0
  %724 = vmatmul.mubr.bf16.gmra.mrb[0].mxu0 %v402
  %v725 = vpop.f32.mrb[0].mxu0
  %v726 = vadd.f32 %v102, %v725
  %v727 = vpop.f32.mrb[0].mxu0
  %v728 = vpop.f32.mrb[0].mxu0
  %v729 = vadd.f32 %v102, %v728
  %v730 = vpop.f32.mrb[0].mxu0
  %731 = vdwg.mxu0
  %v732 = vmax.f32 %v446, 0.0
  %v733 = vmax.f32 %v449, 0.0
  %v734 = vmax.f32 %v454, 0.0
  %v735 = vmax.f32 %v457, 0.0
  %v736 = vmax.f32 %v462, 0.0
  %v737 = vmax.f32 %v465, 0.0
  %v738 = vmax.f32 %v470, 0.0
  %v739 = vmax.f32 %v473, 0.0
  %v740 = vmax.f32 %v478, 0.0
  %v741 = vmax.f32 %v481, 0.0
  %v742 = vmax.f32 %v486, 0.0
  %v743 = vmax.f32 %v489, 0.0
  %v744 = vmax.f32 %v494, 0.0
  %v745 = vmax.f32 %v497, 0.0
  %v746 = vmax.f32 %v502, 0.0
  %v747 = vmax.f32 %v505, 0.0
  %v748 = vmax.f32 %v510, 0.0
  %v749 = vmax.f32 %v513, 0.0
  %v750 = vmax.f32 %v518, 0.0
  %v751 = vmax.f32 %v521, 0.0
  %v752 = vmax.f32 %v526, 0.0
  %v753 = vmax.f32 %v529, 0.0
  %v754 = vmax.f32 %v534, 0.0
  %v755 = vmax.f32 %v537, 0.0
  %v756 = vmax.f32 %v542, 0.0
  %v757 = vmax.f32 %v545, 0.0
  %v758 = vmax.f32 %v550, 0.0
  %v759 = vmax.f32 %v553, 0.0
  %v760 = vmax.f32 %v558, 0.0
  %v761 = vmax.f32 %v561, 0.0
  %v762 = vmax.f32 %v566, 0.0
  %v763 = vmax.f32 %v569, 0.0
  %v764 = vmax.f32 %v574, 0.0
  %v765 = vmax.f32 %v577, 0.0
  %v766 = vmax.f32 %v582, 0.0
  %v767 = vmax.f32 %v585, 0.0
  %v768 = vmax.f32 %v590, 0.0
  %v769 = vmax.f32 %v593, 0.0
  %v770 = vmax.f32 %v598, 0.0
  %v771 = vmax.f32 %v601, 0.0
  %v772 = vmax.f32 %v606, 0.0
  %v773 = vmax.f32 %v609, 0.0
  %v774 = vmax.f32 %v614, 0.0
  %v775 = vmax.f32 %v617, 0.0
  %v776 = vmax.f32 %v622, 0.0
  %v777 = vmax.f32 %v625, 0.0
  %v778 = vmax.f32 %v630, 0.0
  %v779 = vmax.f32 %v633, 0.0
  %v780 = vmax.f32 %v638, 0.0
  %v781 = vmax.f32 %v641, 0.0
  %v782 = vmax.f32 %v646, 0.0
  %v783 = vmax.f32 %v649, 0.0
  %v784 = vmax.f32 %v654, 0.0
  %v785 = vmax.f32 %v657, 0.0
  %v786 = vmax.f32 %v662, 0.0
  %v787 = vmax.f32 %v665, 0.0
  %v788 = vmax.f32 %v670, 0.0
  %v789 = vmax.f32 %v673, 0.0
  %v790 = vmax.f32 %v678, 0.0
  %v791 = vmax.f32 %v681, 0.0
  %v792 = vmax.f32 %v686, 0.0
  %v793 = vmax.f32 %v689, 0.0
  %v794 = vmax.f32 %v694, 0.0
  %v795 = vmax.f32 %v697, 0.0
  %v796 = vmax.f32 %v702, 0.0
  %v797 = vmax.f32 %v705, 0.0
  %v798 = vmax.f32 %v710, 0.0
  %v799 = vmax.f32 %v713, 0.0
  %v800 = vmax.f32 %v718, 0.0
  %v801 = vmax.f32 %v721, 0.0
  %v802 = vmax.f32 %v726, 0.0
  %v803 = vmax.f32 %v729, 0.0
  %v804 = vld [vmem:[%s3] sm:$0xf]
  %v805 = vpack.c.bf16 %v733, %v732
  %v806 = vpack.c.bf16 %v735, %v734
  %v807 = vpack.c.bf16 %v737, %v736
  %v808 = vpack.c.bf16 %v739, %v738
  %v809 = vpack.c.bf16 %v741, %v740
  %v810 = vpack.c.bf16 %v743, %v742
  %v811 = vpack.c.bf16 %v745, %v744
  %v812 = vpack.c.bf16 %v747, %v746
  %v813 = vpack.c.bf16 %v749, %v748
  %v814 = vpack.c.bf16 %v751, %v750
  %v815 = vpack.c.bf16 %v753, %v752
  %v816 = vpack.c.bf16 %v755, %v754
  %v817 = vpack.c.bf16 %v757, %v756
  %v818 = vpack.c.bf16 %v759, %v758
  %v819 = vpack.c.bf16 %v761, %v760
  %v820 = vpack.c.bf16 %v763, %v762
  %v821 = vpack.c.bf16 %v765, %v764
  %v822 = vpack.c.bf16 %v767, %v766
  %v823 = vpack.c.bf16 %v769, %v768
  %v824 = vpack.c.bf16 %v771, %v770
  %v825 = vpack.c.bf16 %v773, %v772
  %v826 = vpack.c.bf16 %v775, %v774
  %v827 = vpack.c.bf16 %v777, %v776
  %v828 = vpack.c.bf16 %v779, %v778
  %v829 = vpack.c.bf16 %v781, %v780
  %v830 = vpack.c.bf16 %v783, %v782
  %v831 = vpack.c.bf16 %v785, %v784
  %v832 = vpack.c.bf16 %v787, %v786
  %v833 = vpack.c.bf16 %v789, %v788
  %v834 = vpack.c.bf16 %v791, %v790
  %v835 = vpack.c.bf16 %v793, %v792
  %v836 = vpack.c.bf16 %v795, %v794
  %v837 = vpack.c.bf16 %v797, %v796
  %v838 = vpack.c.bf16 %v799, %v798
  %v839 = vpack.c.bf16 %v801, %v800
  %v840 = vpack.c.bf16 %v803, %v802
  %v841 = vld [vmem:[%s4] sm:$0x7f]
  %843 = vset.pattern.permute.xlu0 0
  %844 = vperm.xlu0 %843, %v841
  %v845 = vpop.permute.xlu0 %844
  %vm847 = vcmask 64512
  %v849 = vsel %vm847, %v804, 0
  %v852 = vsel %vm847, %v805, 0
  %v855 = vsel %vm847, %v806, 0
  %v858 = vsel %vm847, %v807, 0
  %v861 = vsel %vm847, %v808, 0
  %v864 = vsel %vm847, %v809, 0
  %v867 = vsel %vm847, %v810, 0
  %v870 = vsel %vm847, %v811, 0
  %v873 = vsel %vm847, %v812, 0
  %v876 = vsel %vm847, %v813, 0
  %v879 = vsel %vm847, %v814, 0
  %v882 = vsel %vm847, %v815, 0
  %v885 = vsel %vm847, %v816, 0
  %v888 = vsel %vm847, %v817, 0
  %v891 = vsel %vm847, %v818, 0
  %v894 = vsel %vm847, %v819, 0
  %v897 = vsel %vm847, %v820, 0
  %v900 = vsel %vm847, %v821, 0
  %v903 = vsel %vm847, %v822, 0
  %v906 = vsel %vm847, %v823, 0
  %v909 = vsel %vm847, %v824, 0
  %v912 = vsel %vm847, %v825, 0
  %v915 = vsel %vm847, %v826, 0
  %v918 = vsel %vm847, %v827, 0
  %v921 = vsel %vm847, %v828, 0
  %v924 = vsel %vm847, %v829, 0
  %v927 = vsel %vm847, %v830, 0
  %v930 = vsel %vm847, %v831, 0
  %v933 = vsel %vm847, %v832, 0
  %v936 = vsel %vm847, %v833, 0
  %v939 = vsel %vm847, %v834, 0
  %v942 = vsel %vm847, %v835, 0
  %v945 = vsel %vm847, %v836, 0
  %v948 = vsel %vm847, %v837, 0
  %v951 = vsel %vm847, %v838, 0
  %v954 = vsel %vm847, %v839, 0
  %v957 = vsel %vm847, %v840, 0
  %959 = vmatprep.subr.bf16.mxu0 0
  %960 = vmatpush1.bf16.xpose.msra.mxu0 %v852
  %961 = vmatprep.subr.bf16.mxu0 0
  %962 = vmatpush1.bf16.xpose.msra.mxu0 %v855
  %963 = vmatprep.subr.bf16.mxu0 0
  %964 = vmatpush1.bf16.xpose.msra.mxu0 %v858
  %965 = vmatprep.subr.bf16.mxu0 0
  %966 = vmatpush1.bf16.xpose.msra.mxu0 %v861
  %967 = vmatprep.subr.bf16.mxu0 0
  %968 = vmatpush1.bf16.xpose.msra.mxu0 %v864
  %969 = vmatprep.subr.bf16.mxu0 0
  %970 = vmatpush1.bf16.xpose.msra.mxu0 %v867
  %971 = vmatprep.subr.bf16.mxu0 0
  %972 = vmatpush1.bf16.xpose.msra.mxu0 %v870
  %973 = vmatprep.subr.bf16.mxu0 0
  %974 = vmatpush1.bf16.xpose.msra.mxu0 %v873
  %975 = vmatprep.subr.bf16.mxu0 0
  %976 = vmatpush1.bf16.xpose.msra.mxu0 %v876
  %977 = vmatprep.subr.bf16.mxu0 0
  %978 = vmatpush1.bf16.xpose.msra.mxu0 %v879
  %979 = vmatprep.subr.bf16.mxu0 0
  %980 = vmatpush1.bf16.xpose.msra.mxu0 %v882
  %981 = vmatprep.subr.bf16.mxu0 0
  %982 = vmatpush1.bf16.xpose.msra.mxu0 %v885
  %983 = vmatprep.subr.bf16.mxu0 0
  %984 = vmatpush1.bf16.xpose.msra.mxu0 %v888
  %985 = vmatprep.subr.bf16.mxu0 0
  %986 = vmatpush1.bf16.xpose.msra.mxu0 %v891
  %987 = vmatprep.subr.bf16.mxu0 0
  %988 = vmatpush1.bf16.xpose.msra.mxu0 %v894
  %989 = vmatprep.subr.bf16.mxu0 0
  %990 = vmatpush1.bf16.xpose.msra.mxu0 %v897
  %991 = vmatprep.mubr.bf16.mxu0 0
  %992 = vmatmul.mubr.bf16.gmra.mrb[0].mxu0 %v849
  %v993 = vpop.f32.mrb[0].mxu0
  %v994 = vadd.f32 %v845, %v993
  %v995 = vpop.f32.mrb[0].mxu0
  %v996 = vadd.f32 %v845, %v995
  %v997 = vpop.f32.mrb[0].mxu0
  %v998 = vpop.f32.mrb[0].mxu0
  %999 = vdwg.mxu0
  %1000 = vmatprep.subr.bf16.mxu0 0
  %1001 = vmatpush1.bf16.xpose.msra.mxu0 %v900
  %1002 = vmatprep.subr.bf16.mxu0 0
  %1003 = vmatpush1.bf16.xpose.msra.mxu0 %v903
  %1004 = vmatprep.subr.bf16.mxu0 0
  %1005 = vmatpush1.bf16.xpose.msra.mxu0 %v906
  %1006 = vmatprep.subr.bf16.mxu0 0
  %1007 = vmatpush1.bf16.xpose.msra.mxu0 %v909
  %1008 = vmatprep.subr.bf16.mxu0 0
  %1009 = vmatpush1.bf16.xpose.msra.mxu0 %v912
  %1010 = vmatprep.subr.bf16.mxu0 0
  %1011 = vmatpush1.bf16.xpose.msra.mxu0 %v915
  %1012 = vmatprep.subr.bf16.mxu0 0
  %1013 = vmatpush1.bf16.xpose.msra.mxu0 %v918
  %1014 = vmatprep.subr.bf16.mxu0 0
  %1015 = vmatpush1.bf16.xpose.msra.mxu0 %v921
  %1016 = vmatprep.subr.bf16.mxu0 0
  %1017 = vmatpush1.bf16.xpose.msra.mxu0 %v924
  %1018 = vmatprep.subr.bf16.mxu0 0
  %1019 = vmatpush1.bf16.xpose.msra.mxu0 %v927
  %1020 = vmatprep.subr.bf16.mxu0 0
  %1021 = vmatpush1.bf16.xpose.msra.mxu0 %v930
  %1022 = vmatprep.subr.bf16.mxu0 0
  %1023 = vmatpush1.bf16.xpose.msra.mxu0 %v933
  %1024 = vmatprep.subr.bf16.mxu0 0
  %1025 = vmatpush1.bf16.xpose.msra.mxu0 %v936
  %1026 = vmatprep.subr.bf16.mxu0 0
  %1027 = vmatpush1.bf16.xpose.msra.mxu0 %v939
  %1028 = vmatprep.subr.bf16.mxu0 0
  %1029 = vmatpush1.bf16.xpose.msra.mxu0 %v942
  %1030 = vmatprep.subr.bf16.mxu0 0
  %1031 = vmatpush1.bf16.xpose.msra.mxu0 %v945
  %1032 = vmatprep.mubr.bf16.mxu0 0
  %1033 = vmatmul.mubr.bf16.gmra.mrb[0].mxu0 %v849
  %v1034 = vpop.f32.mrb[0].mxu0
  %v1035 = vadd.f32 %v845, %v1034
  %v1036 = vpop.f32.mrb[0].mxu0
  %v1037 = vadd.f32 %v845, %v1036
  %v1038 = vpop.f32.mrb[0].mxu0
  %v1039 = vpop.f32.mrb[0].mxu0
  %1040 = vdwg.mxu0
  %1041 = vmatprep.subr.bf16.mxu0 0
  %1042 = vmatpush1.bf16.xpose.msra.mxu0 %v948
  %1043 = vmatprep.subr.bf16.mxu0 0
  %1044 = vmatpush1.bf16.xpose.msra.mxu0 %v951
  %1045 = vmatprep.subr.bf16.mxu0 0
  %1046 = vmatpush1.bf16.xpose.msra.mxu0 %v954
  %1047 = vmatprep.subr.bf16.mxu0 0
  %1048 = vmatpush1.bf16.xpose.msra.mxu0 %v957
  %1049 = vmatprep.subr.bf16.mxu0 0
  %1050 = vmatpush1.bf16.xpose.msra.mxu0 0
  %1051 = vmatprep.subr.bf16.mxu0 0
  %1052 = vmatpush1.bf16.xpose.msra.mxu0 0
  %1053 = vmatprep.subr.bf16.mxu0 0
  %1054 = vmatpush1.bf16.xpose.msra.mxu0 0
  %1055 = vmatprep.subr.bf16.mxu0 0
  %1056 = vmatpush1.bf16.xpose.msra.mxu0 0
  %1057 = vmatprep.subr.bf16.mxu0 0
  %1058 = vmatpush1.bf16.xpose.msra.mxu0 0
  %1059 = vmatprep.subr.bf16.mxu0 0
  %1060 = vmatpush1.bf16.xpose.msra.mxu0 0
  %1061 = vmatprep.subr.bf16.mxu0 0
  %1062 = vmatpush1.bf16.xpose.msra.mxu0 0
  %1063 = vmatprep.subr.bf16.mxu0 0
  %1064 = vmatpush1.bf16.xpose.msra.mxu0 0
  %1065 = vmatprep.subr.bf16.mxu0 0
  %1066 = vmatpush1.bf16.xpose.msra.mxu0 0
  %1067 = vmatprep.subr.bf16.mxu0 0
  %1068 = vmatpush1.bf16.xpose.msra.mxu0 0
  %1069 = vmatprep.subr.bf16.mxu0 0
  %1070 = vmatpush1.bf16.xpose.msra.mxu0 0
  %1071 = vmatprep.subr.bf16.mxu0 0
  %1072 = vmatpush1.bf16.xpose.msra.mxu0 0
  %1073 = vmatprep.mubr.bf16.mxu0 0
  %1074 = vmatmul.mubr.bf16.gmra.mrb[0].mxu0 %v849
  %v1075 = vpop.f32.mrb[0].mxu0
  %v1076 = vadd.f32 %v845, %v1075
  %v1077 = vpop.f32.mrb[0].mxu0
  %v1078 = vpop.f32.mrb[0].mxu0
  %v1079 = vpop.f32.mrb[0].mxu0
  %1080 = vdwg.mxu0
  %1081 = vst [vmem:[%s5] sm:$0x7f] %v994
  %1082 = vst [vmem:[%s5 + $0x8] sm:$0x7f] %v996
  %1083 = vst [vmem:[%s5 + $0x10] sm:$0x7f] %v1035
  %1084 = vst [vmem:[%s5 + $0x18] sm:$0x7f] %v1037
  %vm1085 = vcmask 522240
  %1086 = vst.msk [vmem:[%s5 + $0x20] sm:$0x7f] %vm1085, %v1076
  // Predicated region
  $region22: #{single_sub_tree_seg_forward.4} parent=0 // pred_check
    _
  $region23: #{single_sub_tree_seg_forward.4} parent=0 // pred_check_branch
    %1088 = sbr.rel (0) target = $region25
  $region24: #{single_sub_tree_seg_forward.4} parent=0 // pred_region
    _
  $region25: #{single_sub_tree_seg_forward.4} parent=0 // pred_fallthru
    _
  // Predicated region
  $region26: #{single_sub_tree_seg_forward.4} parent=0 // pred_check
    _
  $region27: #{single_sub_tree_seg_forward.4} parent=0 // pred_check_branch
    %1090 = sbr.rel (0) target = $region29
  $region28: #{single_sub_tree_seg_forward.4} parent=0 // pred_region
    _
  $region29: #{single_sub_tree_seg_forward.4} parent=0 // pred_fallthru
    _

// kernel: single_sub_tree_seg_forward.5
$region0: #{single_sub_tree_seg_forward.5}
  #allocation0 [shape = 'u32[]', space=smem, size = 0x4, offset = 0x4, fixed_abs, tag = 'smem constant byte address 0x4 - core index']
  #allocation1 [shape = 'u32[144,128]{1,0:T(1,128)}', space=vmem, size = 0x12000, scoped, tag = 'internal scratch']
  %s0 = inlined_call_operand.vmem [shape: f32[7,24,24], index: 0, kind: input, shape index: {}]
  %s1 = inlined_call_operand.vmem [shape: f32[7,16,24], index: 1, kind: input, shape index: {}]
  %s2 = inlined_call_operand.vmem [shape: f32[7,24,16], index: 2, kind: input, shape index: {}]
  %s3 = inlined_call_operand.vmem [shape: f32[7,16,16], index: 3, kind: output, shape index: {}]
  %s4 = sld [smem:[#allocation0]]
  $region22: #{single_sub_tree_seg_forward.5} parent=0
    _
  %s6 = ssub.s32 1, %s4
  %s7 = scalar_select 0, %s6, %s4
  // Predicated region
  $region2: #{single_sub_tree_seg_forward.5} parent=0 // pred_check
    _
  $region3: #{single_sub_tree_seg_forward.5} parent=0 // pred_check_branch
    %9 = sbr.rel (0) target = $region5
  $region4: #{single_sub_tree_seg_forward.5} parent=0 // pred_region
    _
  $region5: #{single_sub_tree_seg_forward.5} parent=0 // pred_fallthru
    _
  // Predicated region
  $region6: #{single_sub_tree_seg_forward.5} parent=0 // pred_check
    _
  $region7: #{single_sub_tree_seg_forward.5} parent=0 // pred_check_branch
    %11 = sbr.rel (0) target = $region9
  $region8: #{single_sub_tree_seg_forward.5} parent=0 // pred_region
    _
  $region9: #{single_sub_tree_seg_forward.5} parent=0 // pred_fallthru
    _
  // Predicated region
  $region10: #{single_sub_tree_seg_forward.5} parent=0 // pred_check
    _
  $region11: #{single_sub_tree_seg_forward.5} parent=0 // pred_check_branch
    %13 = sbr.rel (0) target = $region13
  $region12: #{single_sub_tree_seg_forward.5} parent=0 // pred_region
    _
  $region13: #{single_sub_tree_seg_forward.5} parent=0 // pred_fallthru
    _
  %v14 = vld [vmem:[%s0] sm:$0xff]
  %v15 = vld [vmem:[%s0 + $0x8] sm:$0xff]
  %v16 = vld [vmem:[%s0 + $0x10] sm:$0xff]
  %v17 = vld [vmem:[%s0 + $0x18] sm:$0xff]
  %v18 = vld [vmem:[%s0 + $0x20] sm:$0xff]
  %v19 = vld [vmem:[%s0 + $0x28] sm:$0xff]
  %v20 = vld [vmem:[%s0 + $0x30] sm:$0xff]
  %v21 = vld [vmem:[%s0 + $0x38] sm:$0xff]
  %v22 = vld [vmem:[%s0 + $0x40] sm:$0xff]
  %v23 = vld [vmem:[%s0 + $0x48] sm:$0xff]
  %v24 = vld [vmem:[%s0 + $0x50] sm:$0xff]
  %v25 = vld [vmem:[%s0 + $0x58] sm:$0xff]
  %v26 = vld [vmem:[%s0 + $0x60] sm:$0xff]
  %v27 = vld [vmem:[%s0 + $0x68] sm:$0xff]
  %v28 = vld [vmem:[%s0 + $0x70] sm:$0xff]
  %v29 = vld [vmem:[%s0 + $0x78] sm:$0xff]
  %v30 = vld [vmem:[%s0 + $0x80] sm:$0xff]
  %v31 = vld [vmem:[%s0 + $0x88] sm:$0xff]
  %v32 = vld [vmem:[%s0 + $0x90] sm:$0xff]
  %v33 = vld [vmem:[%s0 + $0x98] sm:$0xff]
  %v34 = vld [vmem:[%s0 + $0xa0] sm:$0xff]
  %v35 = vld [vmem:[%s2] sm:$0xff]
  %v36 = vld [vmem:[%s2 + $0x8] sm:$0xff]
  %v37 = vld [vmem:[%s2 + $0x10] sm:$0xff]
  %v38 = vld [vmem:[%s2 + $0x18] sm:$0xff]
  %v39 = vld [vmem:[%s2 + $0x20] sm:$0xff]
  %v40 = vld [vmem:[%s2 + $0x28] sm:$0xff]
  %v41 = vld [vmem:[%s2 + $0x30] sm:$0xff]
  %v42 = vld [vmem:[%s2 + $0x38] sm:$0xff]
  %v43 = vld [vmem:[%s2 + $0x40] sm:$0xff]
  %v44 = vld [vmem:[%s2 + $0x48] sm:$0xff]
  %v45 = vld [vmem:[%s2 + $0x50] sm:$0xff]
  %v46 = vld [vmem:[%s2 + $0x58] sm:$0xff]
  %v47 = vld [vmem:[%s2 + $0x60] sm:$0xff]
  %v48 = vld [vmem:[%s2 + $0x68] sm:$0xff]
  %v49 = vld [vmem:[%s2 + $0x70] sm:$0xff]
  %v50 = vld [vmem:[%s2 + $0x78] sm:$0xff]
  %v51 = vld [vmem:[%s2 + $0x80] sm:$0xff]
  %v52 = vld [vmem:[%s2 + $0x88] sm:$0xff]
  %v53 = vld [vmem:[%s2 + $0x90] sm:$0xff]
  %v54 = vld [vmem:[%s2 + $0x98] sm:$0xff]
  %v55 = vld [vmem:[%s2 + $0xa0] sm:$0xff]
  %vm56 = vcmask 195584
  %v58 = vsel %vm56, %v14, 0
  %v61 = vsel %vm56, %v15, 0
  %v64 = vsel %vm56, %v16, 0
  %66 = vmatprep.subr.mxu0 0.0
  %67 = vmatpush1.msra.mxu0 %v35
  %68 = vmatprep.subr.mxu0 0.0
  %69 = vmatpush1.msra.mxu0 %v36
  %70 = vmatprep.subr.mxu0 0.0
  %71 = vmatpush1.msra.mxu0 %v37
  %72 = vmatprep.subr.mxu0 0.0
  %73 = vmatpush1.msra.mxu0 0.0
  %74 = vmatprep.subr.mxu0 0.0
  %75 = vmatpush1.msra.mxu0 0.0
  %76 = vmatprep.subr.mxu0 0.0
  %77 = vmatpush1.msra.mxu0 0.0
  %78 = vmatprep.subr.mxu0 0.0
  %79 = vmatpush1.msra.mxu0 0.0
  %80 = vmatprep.subr.mxu0 0.0
  %81 = vmatpush1.msra.mxu0 0.0
  %82 = vmatprep.subr.mxu0 0.0
  %83 = vmatpush1.msra.mxu0 0.0
  %84 = vmatprep.subr.mxu0 0.0
  %85 = vmatpush1.msra.mxu0 0.0
  %86 = vmatprep.subr.mxu0 0.0
  %87 = vmatpush1.msra.mxu0 0.0
  %88 = vmatprep.subr.mxu0 0.0
  %89 = vmatpush1.msra.mxu0 0.0
  %90 = vmatprep.subr.mxu0 0.0
  %91 = vmatpush1.msra.mxu0 0.0
  %92 = vmatprep.subr.mxu0 0.0
  %93 = vmatpush1.msra.mxu0 0.0
  %94 = vmatprep.subr.mxu0 0.0
  %95 = vmatpush1.msra.mxu0 0.0
  %96 = vmatprep.subr.mxu0 0.0
  %97 = vmatpush1.msra.mxu0 0.0
  %98 = vmatprep.subr.mxu0 0.0
  %99 = vmatpush1.msra.mxu0 0.0
  %100 = vmatprep.subr.mxu0 0.0
  %101 = vmatpush1.msra.mxu0 0.0
  %102 = vmatprep.subr.mxu0 0.0
  %103 = vmatpush1.msra.mxu0 0.0
  %104 = vmatprep.subr.mxu0 0.0
  %105 = vmatpush1.msra.mxu0 0.0
  %106 = vmatprep.subr.mxu0 0.0
  %107 = vmatpush1.msra.mxu0 0.0
  %108 = vmatprep.subr.mxu0 0.0
  %109 = vmatpush1.msra.mxu0 0.0
  %110 = vmatprep.subr.mxu0 0.0
  %111 = vmatpush1.msra.mxu0 0.0
  %112 = vmatprep.subr.mxu0 0.0
  %113 = vmatpush1.msra.mxu0 0.0
  %114 = vmatprep.subr.mxu0 0.0
  %115 = vmatpush1.msra.mxu0 0.0
  %116 = vmatprep.subr.mxu0 0.0
  %117 = vmatpush1.msra.mxu0 0.0
  %118 = vmatprep.subr.mxu0 0.0
  %119 = vmatpush1.msra.mxu0 0.0
  %120 = vmatprep.subr.mxu0 0.0
  %121 = vmatpush1.msra.mxu0 0.0
  %122 = vmatprep.subr.mxu0 0.0
  %123 = vmatpush1.msra.mxu0 0.0
  %124 = vmatprep.subr.mxu0 0.0
  %125 = vmatpush1.msra.mxu0 0.0
  %126 = vmatprep.subr.mxu0 0.0
  %127 = vmatpush1.msra.mxu0 0.0
  %128 = vmatprep.subr.mxu0 0.0
  %129 = vmatpush1.msra.mxu0 0.0
  %130 = vmatprep.mubr.f32.mxu0 0.0
  %131 = vmatmul.mubr.f32.gmra.mrb[0].mxu0 %v58
  %v132 = vpop.f32.mrb[0].mxu0
  %v133 = vadd.f32 0.0, %v132
  %v134 = vpop.f32.mrb[0].mxu0
  %135 = vmatprep.mubr.f32.mxu0 0.0
  %136 = vmatmul.mubr.f32.gmra.mrb[0].mxu0 %v61
  %v137 = vpop.f32.mrb[0].mxu0
  %v138 = vadd.f32 0.0, %v137
  %v139 = vpop.f32.mrb[0].mxu0
  %140 = vmatprep.mubr.f32.mxu0 0.0
  %141 = vmatmul.mubr.f32.gmra.mrb[0].mxu0 %v64
  %v142 = vpop.f32.mrb[0].mxu0
  %v143 = vadd.f32 0.0, %v142
  %v144 = vpop.f32.mrb[0].mxu0
  %145 = vdwg.mxu0
  %v147 = vsel %vm56, %v17, 0
  %v150 = vsel %vm56, %v18, 0
  %v153 = vsel %vm56, %v19, 0
  %155 = vmatprep.subr.mxu0 0.0
  %156 = vmatpush1.msra.mxu0 %v38
  %157 = vmatprep.subr.mxu0 0.0
  %158 = vmatpush1.msra.mxu0 %v39
  %159 = vmatprep.subr.mxu0 0.0
  %160 = vmatpush1.msra.mxu0 %v40
  %161 = vmatprep.subr.mxu0 0.0
  %162 = vmatpush1.msra.mxu0 0.0
  %163 = vmatprep.subr.mxu0 0.0
  %164 = vmatpush1.msra.mxu0 0.0
  %165 = vmatprep.subr.mxu0 0.0
  %166 = vmatpush1.msra.mxu0 0.0
  %167 = vmatprep.subr.mxu0 0.0
  %168 = vmatpush1.msra.mxu0 0.0
  %169 = vmatprep.subr.mxu0 0.0
  %170 = vmatpush1.msra.mxu0 0.0
  %171 = vmatprep.subr.mxu0 0.0
  %172 = vmatpush1.msra.mxu0 0.0
  %173 = vmatprep.subr.mxu0 0.0
  %174 = vmatpush1.msra.mxu0 0.0
  %175 = vmatprep.subr.mxu0 0.0
  %176 = vmatpush1.msra.mxu0 0.0
  %177 = vmatprep.subr.mxu0 0.0
  %178 = vmatpush1.msra.mxu0 0.0
  %179 = vmatprep.subr.mxu0 0.0
  %180 = vmatpush1.msra.mxu0 0.0
  %181 = vmatprep.subr.mxu0 0.0
  %182 = vmatpush1.msra.mxu0 0.0
  %183 = vmatprep.subr.mxu0 0.0
  %184 = vmatpush1.msra.mxu0 0.0
  %185 = vmatprep.subr.mxu0 0.0
  %186 = vmatpush1.msra.mxu0 0.0
  %187 = vmatprep.subr.mxu0 0.0
  %188 = vmatpush1.msra.mxu0 0.0
  %189 = vmatprep.subr.mxu0 0.0
  %190 = vmatpush1.msra.mxu0 0.0
  %191 = vmatprep.subr.mxu0 0.0
  %192 = vmatpush1.msra.mxu0 0.0
  %193 = vmatprep.subr.mxu0 0.0
  %194 = vmatpush1.msra.mxu0 0.0
  %195 = vmatprep.subr.mxu0 0.0
  %196 = vmatpush1.msra.mxu0 0.0
  %197 = vmatprep.subr.mxu0 0.0
  %198 = vmatpush1.msra.mxu0 0.0
  %199 = vmatprep.subr.mxu0 0.0
  %200 = vmatpush1.msra.mxu0 0.0
  %201 = vmatprep.subr.mxu0 0.0
  %202 = vmatpush1.msra.mxu0 0.0
  %203 = vmatprep.subr.mxu0 0.0
  %204 = vmatpush1.msra.mxu0 0.0
  %205 = vmatprep.subr.mxu0 0.0
  %206 = vmatpush1.msra.mxu0 0.0
  %207 = vmatprep.subr.mxu0 0.0
  %208 = vmatpush1.msra.mxu0 0.0
  %209 = vmatprep.subr.mxu0 0.0
  %210 = vmatpush1.msra.mxu0 0.0
  %211 = vmatprep.subr.mxu0 0.0
  %212 = vmatpush1.msra.mxu0 0.0
  %213 = vmatprep.subr.mxu0 0.0
  %214 = vmatpush1.msra.mxu0 0.0
  %215 = vmatprep.subr.mxu0 0.0
  %216 = vmatpush1.msra.mxu0 0.0
  %217 = vmatprep.subr.mxu0 0.0
  %218 = vmatpush1.msra.mxu0 0.0
  %219 = vmatprep.mubr.f32.mxu0 0.0
  %220 = vmatmul.mubr.f32.gmra.mrb[0].mxu0 %v147
  %v221 = vpop.f32.mrb[0].mxu0
  %v222 = vadd.f32 0.0, %v221
  %v223 = vpop.f32.mrb[0].mxu0
  %224 = vmatprep.mubr.f32.mxu0 0.0
  %225 = vmatmul.mubr.f32.gmra.mrb[0].mxu0 %v150
  %v226 = vpop.f32.mrb[0].mxu0
  %v227 = vadd.f32 0.0, %v226
  %v228 = vpop.f32.mrb[0].mxu0
  %229 = vmatprep.mubr.f32.mxu0 0.0
  %230 = vmatmul.mubr.f32.gmra.mrb[0].mxu0 %v153
  %v231 = vpop.f32.mrb[0].mxu0
  %v232 = vadd.f32 0.0, %v231
  %v233 = vpop.f32.mrb[0].mxu0
  %234 = vdwg.mxu0
  %v236 = vsel %vm56, %v20, 0
  %v239 = vsel %vm56, %v21, 0
  %v242 = vsel %vm56, %v22, 0
  %244 = vmatprep.subr.mxu0 0.0
  %245 = vmatpush1.msra.mxu0 %v41
  %246 = vmatprep.subr.mxu0 0.0
  %247 = vmatpush1.msra.mxu0 %v42
  %248 = vmatprep.subr.mxu0 0.0
  %249 = vmatpush1.msra.mxu0 %v43
  %250 = vmatprep.subr.mxu0 0.0
  %251 = vmatpush1.msra.mxu0 0.0
  %252 = vmatprep.subr.mxu0 0.0
  %253 = vmatpush1.msra.mxu0 0.0
  %254 = vmatprep.subr.mxu0 0.0
  %255 = vmatpush1.msra.mxu0 0.0
  %256 = vmatprep.subr.mxu0 0.0
  %257 = vmatpush1.msra.mxu0 0.0
  %258 = vmatprep.subr.mxu0 0.0
  %259 = vmatpush1.msra.mxu0 0.0
  %260 = vmatprep.subr.mxu0 0.0
  %261 = vmatpush1.msra.mxu0 0.0
  %262 = vmatprep.subr.mxu0 0.0
  %263 = vmatpush1.msra.mxu0 0.0
  %264 = vmatprep.subr.mxu0 0.0
  %265 = vmatpush1.msra.mxu0 0.0
  %266 = vmatprep.subr.mxu0 0.0
  %267 = vmatpush1.msra.mxu0 0.0
  %268 = vmatprep.subr.mxu0 0.0
  %269 = vmatpush1.msra.mxu0 0.0
  %270 = vmatprep.subr.mxu0 0.0
  %271 = vmatpush1.msra.mxu0 0.0
  %272 = vmatprep.subr.mxu0 0.0
  %273 = vmatpush1.msra.mxu0 0.0
  %274 = vmatprep.subr.mxu0 0.0
  %275 = vmatpush1.msra.mxu0 0.0
  %276 = vmatprep.subr.mxu0 0.0
  %277 = vmatpush1.msra.mxu0 0.0
  %278 = vmatprep.subr.mxu0 0.0
  %279 = vmatpush1.msra.mxu0 0.0
  %280 = vmatprep.subr.mxu0 0.0
  %281 = vmatpush1.msra.mxu0 0.0
  %282 = vmatprep.subr.mxu0 0.0
  %283 = vmatpush1.msra.mxu0 0.0
  %284 = vmatprep.subr.mxu0 0.0
  %285 = vmatpush1.msra.mxu0 0.0
  %286 = vmatprep.subr.mxu0 0.0
  %287 = vmatpush1.msra.mxu0 0.0
  %288 = vmatprep.subr.mxu0 0.0
  %289 = vmatpush1.msra.mxu0 0.0
  %290 = vmatprep.subr.mxu0 0.0
  %291 = vmatpush1.msra.mxu0 0.0
  %292 = vmatprep.subr.mxu0 0.0
  %293 = vmatpush1.msra.mxu0 0.0
  %294 = vmatprep.subr.mxu0 0.0
  %295 = vmatpush1.msra.mxu0 0.0
  %296 = vmatprep.subr.mxu0 0.0
  %297 = vmatpush1.msra.mxu0 0.0
  %298 = vmatprep.subr.mxu0 0.0
  %299 = vmatpush1.msra.mxu0 0.0
  %300 = vmatprep.subr.mxu0 0.0
  %301 = vmatpush1.msra.mxu0 0.0
  %302 = vmatprep.subr.mxu0 0.0
  %303 = vmatpush1.msra.mxu0 0.0
  %304 = vmatprep.subr.mxu0 0.0
  %305 = vmatpush1.msra.mxu0 0.0
  %306 = vmatprep.subr.mxu0 0.0
  %307 = vmatpush1.msra.mxu0 0.0
  %308 = vmatprep.mubr.f32.mxu0 0.0
  %309 = vmatmul.mubr.f32.gmra.mrb[0].mxu0 %v236
  %v310 = vpop.f32.mrb[0].mxu0
  %v311 = vadd.f32 0.0, %v310
  %v312 = vpop.f32.mrb[0].mxu0
  %313 = vmatprep.mubr.f32.mxu0 0.0
  %314 = vmatmul.mubr.f32.gmra.mrb[0].mxu0 %v239
  %v315 = vpop.f32.mrb[0].mxu0
  %v316 = vadd.f32 0.0, %v315
  %v317 = vpop.f32.mrb[0].mxu0
  %318 = vmatprep.mubr.f32.mxu0 0.0
  %319 = vmatmul.mubr.f32.gmra.mrb[0].mxu0 %v242
  %v320 = vpop.f32.mrb[0].mxu0
  %v321 = vadd.f32 0.0, %v320
  %v322 = vpop.f32.mrb[0].mxu0
  %323 = vdwg.mxu0
  %v325 = vsel %vm56, %v23, 0
  %v328 = vsel %vm56, %v24, 0
  %v331 = vsel %vm56, %v25, 0
  %333 = vmatprep.subr.mxu0 0.0
  %334 = vmatpush1.msra.mxu0 %v44
  %335 = vmatprep.subr.mxu0 0.0
  %336 = vmatpush1.msra.mxu0 %v45
  %337 = vmatprep.subr.mxu0 0.0
  %338 = vmatpush1.msra.mxu0 %v46
  %339 = vmatprep.subr.mxu0 0.0
  %340 = vmatpush1.msra.mxu0 0.0
  %341 = vmatprep.subr.mxu0 0.0
  %342 = vmatpush1.msra.mxu0 0.0
  %343 = vmatprep.subr.mxu0 0.0
  %344 = vmatpush1.msra.mxu0 0.0
  %345 = vmatprep.subr.mxu0 0.0
  %346 = vmatpush1.msra.mxu0 0.0
  %347 = vmatprep.subr.mxu0 0.0
  %348 = vmatpush1.msra.mxu0 0.0
  %349 = vmatprep.subr.mxu0 0.0
  %350 = vmatpush1.msra.mxu0 0.0
  %351 = vmatprep.subr.mxu0 0.0
  %352 = vmatpush1.msra.mxu0 0.0
  %353 = vmatprep.subr.mxu0 0.0
  %354 = vmatpush1.msra.mxu0 0.0
  %355 = vmatprep.subr.mxu0 0.0
  %356 = vmatpush1.msra.mxu0 0.0
  %357 = vmatprep.subr.mxu0 0.0
  %358 = vmatpush1.msra.mxu0 0.0
  %359 = vmatprep.subr.mxu0 0.0
  %360 = vmatpush1.msra.mxu0 0.0
  %361 = vmatprep.subr.mxu0 0.0
  %362 = vmatpush1.msra.mxu0 0.0
  %363 = vmatprep.subr.mxu0 0.0
  %364 = vmatpush1.msra.mxu0 0.0
  %365 = vmatprep.subr.mxu0 0.0
  %366 = vmatpush1.msra.mxu0 0.0
  %367 = vmatprep.subr.mxu0 0.0
  %368 = vmatpush1.msra.mxu0 0.0
  %369 = vmatprep.subr.mxu0 0.0
  %370 = vmatpush1.msra.mxu0 0.0
  %371 = vmatprep.subr.mxu0 0.0
  %372 = vmatpush1.msra.mxu0 0.0
  %373 = vmatprep.subr.mxu0 0.0
  %374 = vmatpush1.msra.mxu0 0.0
  %375 = vmatprep.subr.mxu0 0.0
  %376 = vmatpush1.msra.mxu0 0.0
  %377 = vmatprep.subr.mxu0 0.0
  %378 = vmatpush1.msra.mxu0 0.0
  %379 = vmatprep.subr.mxu0 0.0
  %380 = vmatpush1.msra.mxu0 0.0
  %381 = vmatprep.subr.mxu0 0.0
  %382 = vmatpush1.msra.mxu0 0.0
  %383 = vmatprep.subr.mxu0 0.0
  %384 = vmatpush1.msra.mxu0 0.0
  %385 = vmatprep.subr.mxu0 0.0
  %386 = vmatpush1.msra.mxu0 0.0
  %387 = vmatprep.subr.mxu0 0.0
  %388 = vmatpush1.msra.mxu0 0.0
  %389 = vmatprep.subr.mxu0 0.0
  %390 = vmatpush1.msra.mxu0 0.0
  %391 = vmatprep.subr.mxu0 0.0
  %392 = vmatpush1.msra.mxu0 0.0
  %393 = vmatprep.subr.mxu0 0.0
  %394 = vmatpush1.msra.mxu0 0.0
  %395 = vmatprep.subr.mxu0 0.0
  %396 = vmatpush1.msra.mxu0 0.0
  %397 = vmatprep.mubr.f32.mxu0 0.0
  %398 = vmatmul.mubr.f32.gmra.mrb[0].mxu0 %v325
  %v399 = vpop.f32.mrb[0].mxu0
  %v400 = vadd.f32 0.0, %v399
  %v401 = vpop.f32.mrb[0].mxu0
  %402 = vmatprep.mubr.f32.mxu0 0.0
  %403 = vmatmul.mubr.f32.gmra.mrb[0].mxu0 %v328
  %v404 = vpop.f32.mrb[0].mxu0
  %v405 = vadd.f32 0.0, %v404
  %v406 = vpop.f32.mrb[0].mxu0
  %407 = vmatprep.mubr.f32.mxu0 0.0
  %408 = vmatmul.mubr.f32.gmra.mrb[0].mxu0 %v331
  %v409 = vpop.f32.mrb[0].mxu0
  %v410 = vadd.f32 0.0, %v409
  %v411 = vpop.f32.mrb[0].mxu0
  %412 = vdwg.mxu0
  %v414 = vsel %vm56, %v26, 0
  %v417 = vsel %vm56, %v27, 0
  %v420 = vsel %vm56, %v28, 0
  %422 = vmatprep.subr.mxu0 0.0
  %423 = vmatpush1.msra.mxu0 %v47
  %424 = vmatprep.subr.mxu0 0.0
  %425 = vmatpush1.msra.mxu0 %v48
  %426 = vmatprep.subr.mxu0 0.0
  %427 = vmatpush1.msra.mxu0 %v49
  %428 = vmatprep.subr.mxu0 0.0
  %429 = vmatpush1.msra.mxu0 0.0
  %430 = vmatprep.subr.mxu0 0.0
  %431 = vmatpush1.msra.mxu0 0.0
  %432 = vmatprep.subr.mxu0 0.0
  %433 = vmatpush1.msra.mxu0 0.0
  %434 = vmatprep.subr.mxu0 0.0
  %435 = vmatpush1.msra.mxu0 0.0
  %436 = vmatprep.subr.mxu0 0.0
  %437 = vmatpush1.msra.mxu0 0.0
  %438 = vmatprep.subr.mxu0 0.0
  %439 = vmatpush1.msra.mxu0 0.0
  %440 = vmatprep.subr.mxu0 0.0
  %441 = vmatpush1.msra.mxu0 0.0
  %442 = vmatprep.subr.mxu0 0.0
  %443 = vmatpush1.msra.mxu0 0.0
  %444 = vmatprep.subr.mxu0 0.0
  %445 = vmatpush1.msra.mxu0 0.0
  %446 = vmatprep.subr.mxu0 0.0
  %447 = vmatpush1.msra.mxu0 0.0
  %448 = vmatprep.subr.mxu0 0.0
  %449 = vmatpush1.msra.mxu0 0.0
  %450 = vmatprep.subr.mxu0 0.0
  %451 = vmatpush1.msra.mxu0 0.0
  %452 = vmatprep.subr.mxu0 0.0
  %453 = vmatpush1.msra.mxu0 0.0
  %454 = vmatprep.subr.mxu0 0.0
  %455 = vmatpush1.msra.mxu0 0.0
  %456 = vmatprep.subr.mxu0 0.0
  %457 = vmatpush1.msra.mxu0 0.0
  %458 = vmatprep.subr.mxu0 0.0
  %459 = vmatpush1.msra.mxu0 0.0
  %460 = vmatprep.subr.mxu0 0.0
  %461 = vmatpush1.msra.mxu0 0.0
  %462 = vmatprep.subr.mxu0 0.0
  %463 = vmatpush1.msra.mxu0 0.0
  %464 = vmatprep.subr.mxu0 0.0
  %465 = vmatpush1.msra.mxu0 0.0
  %466 = vmatprep.subr.mxu0 0.0
  %467 = vmatpush1.msra.mxu0 0.0
  %468 = vmatprep.subr.mxu0 0.0
  %469 = vmatpush1.msra.mxu0 0.0
  %470 = vmatprep.subr.mxu0 0.0
  %471 = vmatpush1.msra.mxu0 0.0
  %472 = vmatprep.subr.mxu0 0.0
  %473 = vmatpush1.msra.mxu0 0.0
  %474 = vmatprep.subr.mxu0 0.0
  %475 = vmatpush1.msra.mxu0 0.0
  %476 = vmatprep.subr.mxu0 0.0
  %477 = vmatpush1.msra.mxu0 0.0
  %478 = vmatprep.subr.mxu0 0.0
  %479 = vmatpush1.msra.mxu0 0.0
  %480 = vmatprep.subr.mxu0 0.0
  %481 = vmatpush1.msra.mxu0 0.0
  %482 = vmatprep.subr.mxu0 0.0
  %483 = vmatpush1.msra.mxu0 0.0
  %484 = vmatprep.subr.mxu0 0.0
  %485 = vmatpush1.msra.mxu0 0.0
  %486 = vmatprep.mubr.f32.mxu0 0.0
  %487 = vmatmul.mubr.f32.gmra.mrb[0].mxu0 %v414
  %v488 = vpop.f32.mrb[0].mxu0
  %v489 = vadd.f32 0.0, %v488
  %v490 = vpop.f32.mrb[0].mxu0
  %491 = vmatprep.mubr.f32.mxu0 0.0
  %492 = vmatmul.mubr.f32.gmra.mrb[0].mxu0 %v417
  %v493 = vpop.f32.mrb[0].mxu0
  %v494 = vadd.f32 0.0, %v493
  %v495 = vpop.f32.mrb[0].mxu0
  %496 = vmatprep.mubr.f32.mxu0 0.0
  %497 = vmatmul.mubr.f32.gmra.mrb[0].mxu0 %v420
  %v498 = vpop.f32.mrb[0].mxu0
  %v499 = vadd.f32 0.0, %v498
  %v500 = vpop.f32.mrb[0].mxu0
  %501 = vdwg.mxu0
  %v503 = vsel %vm56, %v29, 0
  %v506 = vsel %vm56, %v30, 0
  %v509 = vsel %vm56, %v31, 0
  %511 = vmatprep.subr.mxu0 0.0
  %512 = vmatpush1.msra.mxu0 %v50
  %513 = vmatprep.subr.mxu0 0.0
  %514 = vmatpush1.msra.mxu0 %v51
  %515 = vmatprep.subr.mxu0 0.0
  %516 = vmatpush1.msra.mxu0 %v52
  %517 = vmatprep.subr.mxu0 0.0
  %518 = vmatpush1.msra.mxu0 0.0
  %519 = vmatprep.subr.mxu0 0.0
  %520 = vmatpush1.msra.mxu0 0.0
  %521 = vmatprep.subr.mxu0 0.0
  %522 = vmatpush1.msra.mxu0 0.0
  %523 = vmatprep.subr.mxu0 0.0
  %524 = vmatpush1.msra.mxu0 0.0
  %525 = vmatprep.subr.mxu0 0.0
  %526 = vmatpush1.msra.mxu0 0.0
  %527 = vmatprep.subr.mxu0 0.0
  %528 = vmatpush1.msra.mxu0 0.0
  %529 = vmatprep.subr.mxu0 0.0
  %530 = vmatpush1.msra.mxu0 0.0
  %531 = vmatprep.subr.mxu0 0.0
  %532 = vmatpush1.msra.mxu0 0.0
  %533 = vmatprep.subr.mxu0 0.0
  %534 = vmatpush1.msra.mxu0 0.0
  %535 = vmatprep.subr.mxu0 0.0
  %536 = vmatpush1.msra.mxu0 0.0
  %537 = vmatprep.subr.mxu0 0.0
  %538 = vmatpush1.msra.mxu0 0.0
  %539 = vmatprep.subr.mxu0 0.0
  %540 = vmatpush1.msra.mxu0 0.0
  %541 = vmatprep.subr.mxu0 0.0
  %542 = vmatpush1.msra.mxu0 0.0
  %543 = vmatprep.subr.mxu0 0.0
  %544 = vmatpush1.msra.mxu0 0.0
  %545 = vmatprep.subr.mxu0 0.0
  %546 = vmatpush1.msra.mxu0 0.0
  %547 = vmatprep.subr.mxu0 0.0
  %548 = vmatpush1.msra.mxu0 0.0
  %549 = vmatprep.subr.mxu0 0.0
  %550 = vmatpush1.msra.mxu0 0.0
  %551 = vmatprep.subr.mxu0 0.0
  %552 = vmatpush1.msra.mxu0 0.0
  %553 = vmatprep.subr.mxu0 0.0
  %554 = vmatpush1.msra.mxu0 0.0
  %555 = vmatprep.subr.mxu0 0.0
  %556 = vmatpush1.msra.mxu0 0.0
  %557 = vmatprep.subr.mxu0 0.0
  %558 = vmatpush1.msra.mxu0 0.0
  %559 = vmatprep.subr.mxu0 0.0
  %560 = vmatpush1.msra.mxu0 0.0
  %561 = vmatprep.subr.mxu0 0.0
  %562 = vmatpush1.msra.mxu0 0.0
  %563 = vmatprep.subr.mxu0 0.0
  %564 = vmatpush1.msra.mxu0 0.0
  %565 = vmatprep.subr.mxu0 0.0
  %566 = vmatpush1.msra.mxu0 0.0
  %567 = vmatprep.subr.mxu0 0.0
  %568 = vmatpush1.msra.mxu0 0.0
  %569 = vmatprep.subr.mxu0 0.0
  %570 = vmatpush1.msra.mxu0 0.0
  %571 = vmatprep.subr.mxu0 0.0
  %572 = vmatpush1.msra.mxu0 0.0
  %573 = vmatprep.subr.mxu0 0.0
  %574 = vmatpush1.msra.mxu0 0.0
  %575 = vmatprep.mubr.f32.mxu0 0.0
  %576 = vmatmul.mubr.f32.gmra.mrb[0].mxu0 %v503
  %v577 = vpop.f32.mrb[0].mxu0
  %v578 = vadd.f32 0.0, %v577
  %v579 = vpop.f32.mrb[0].mxu0
  %580 = vmatprep.mubr.f32.mxu0 0.0
  %581 = vmatmul.mubr.f32.gmra.mrb[0].mxu0 %v506
  %v582 = vpop.f32.mrb[0].mxu0
  %v583 = vadd.f32 0.0, %v582
  %v584 = vpop.f32.mrb[0].mxu0
  %585 = vmatprep.mubr.f32.mxu0 0.0
  %586 = vmatmul.mubr.f32.gmra.mrb[0].mxu0 %v509
  %v587 = vpop.f32.mrb[0].mxu0
  %v588 = vadd.f32 0.0, %v587
  %v589 = vpop.f32.mrb[0].mxu0
  %590 = vdwg.mxu0
  %v592 = vsel %vm56, %v32, 0
  %v595 = vsel %vm56, %v33, 0
  %v598 = vsel %vm56, %v34, 0
  %600 = vmatprep.subr.mxu0 0.0
  %601 = vmatpush1.msra.mxu0 %v53
  %602 = vmatprep.subr.mxu0 0.0
  %603 = vmatpush1.msra.mxu0 %v54
  %604 = vmatprep.subr.mxu0 0.0
  %605 = vmatpush1.msra.mxu0 %v55
  %606 = vmatprep.subr.mxu0 0.0
  %607 = vmatpush1.msra.mxu0 0.0
  %608 = vmatprep.subr.mxu0 0.0
  %609 = vmatpush1.msra.mxu0 0.0
  %610 = vmatprep.subr.mxu0 0.0
  %611 = vmatpush1.msra.mxu0 0.0
  %612 = vmatprep.subr.mxu0 0.0
  %613 = vmatpush1.msra.mxu0 0.0
  %614 = vmatprep.subr.mxu0 0.0
  %615 = vmatpush1.msra.mxu0 0.0
  %616 = vmatprep.subr.mxu0 0.0
  %617 = vmatpush1.msra.mxu0 0.0
  %618 = vmatprep.subr.mxu0 0.0
  %619 = vmatpush1.msra.mxu0 0.0
  %620 = vmatprep.subr.mxu0 0.0
  %621 = vmatpush1.msra.mxu0 0.0
  %622 = vmatprep.subr.mxu0 0.0
  %623 = vmatpush1.msra.mxu0 0.0
  %624 = vmatprep.subr.mxu0 0.0
  %625 = vmatpush1.msra.mxu0 0.0
  %626 = vmatprep.subr.mxu0 0.0
  %627 = vmatpush1.msra.mxu0 0.0
  %628 = vmatprep.subr.mxu0 0.0
  %629 = vmatpush1.msra.mxu0 0.0
  %630 = vmatprep.subr.mxu0 0.0
  %631 = vmatpush1.msra.mxu0 0.0
  %632 = vmatprep.subr.mxu0 0.0
  %633 = vmatpush1.msra.mxu0 0.0
  %634 = vmatprep.subr.mxu0 0.0
  %635 = vmatpush1.msra.mxu0 0.0
  %636 = vmatprep.subr.mxu0 0.0
  %637 = vmatpush1.msra.mxu0 0.0
  %638 = vmatprep.subr.mxu0 0.0
  %639 = vmatpush1.msra.mxu0 0.0
  %640 = vmatprep.subr.mxu0 0.0
  %641 = vmatpush1.msra.mxu0 0.0
  %642 = vmatprep.subr.mxu0 0.0
  %643 = vmatpush1.msra.mxu0 0.0
  %644 = vmatprep.subr.mxu0 0.0
  %645 = vmatpush1.msra.mxu0 0.0
  %646 = vmatprep.subr.mxu0 0.0
  %647 = vmatpush1.msra.mxu0 0.0
  %648 = vmatprep.subr.mxu0 0.0
  %649 = vmatpush1.msra.mxu0 0.0
  %650 = vmatprep.subr.mxu0 0.0
  %651 = vmatpush1.msra.mxu0 0.0
  %652 = vmatprep.subr.mxu0 0.0
  %653 = vmatpush1.msra.mxu0 0.0
  %654 = vmatprep.subr.mxu0 0.0
  %655 = vmatpush1.msra.mxu0 0.0
  %656 = vmatprep.subr.mxu0 0.0
  %657 = vmatpush1.msra.mxu0 0.0
  %658 = vmatprep.subr.mxu0 0.0
  %659 = vmatpush1.msra.mxu0 0.0
  %660 = vmatprep.subr.mxu0 0.0
  %661 = vmatpush1.msra.mxu0 0.0
  %662 = vmatprep.subr.mxu0 0.0
  %663 = vmatpush1.msra.mxu0 0.0
  %664 = vmatprep.mubr.f32.mxu0 0.0
  %665 = vmatmul.mubr.f32.gmra.mrb[0].mxu0 %v592
  %v666 = vpop.f32.mrb[0].mxu0
  %v667 = vadd.f32 0.0, %v666
  %v668 = vpop.f32.mrb[0].mxu0
  %669 = vmatprep.mubr.f32.mxu0 0.0
  %670 = vmatmul.mubr.f32.gmra.mrb[0].mxu0 %v595
  %v671 = vpop.f32.mrb[0].mxu0
  %v672 = vadd.f32 0.0, %v671
  %v673 = vpop.f32.mrb[0].mxu0
  %674 = vmatprep.mubr.f32.mxu0 0.0
  %675 = vmatmul.mubr.f32.gmra.mrb[0].mxu0 %v598
  %v676 = vpop.f32.mrb[0].mxu0
  %v677 = vadd.f32 0.0, %v676
  %v678 = vpop.f32.mrb[0].mxu0
  %679 = vdwg.mxu0
  %v680 = vld [vmem:[%s1] sm:$0xff]
  %v681 = vld [vmem:[%s1 + $0x8] sm:$0xff]
  %v682 = vld [vmem:[%s1 + $0x10] sm:$0xff]
  %v683 = vld [vmem:[%s1 + $0x18] sm:$0xff]
  %v684 = vld [vmem:[%s1 + $0x20] sm:$0xff]
  %v685 = vld [vmem:[%s1 + $0x28] sm:$0xff]
  %v686 = vld [vmem:[%s1 + $0x30] sm:$0xff]
  %v687 = vld [vmem:[%s1 + $0x38] sm:$0xff]
  %v688 = vld [vmem:[%s1 + $0x40] sm:$0xff]
  %v689 = vld [vmem:[%s1 + $0x48] sm:$0xff]
  %v690 = vld [vmem:[%s1 + $0x50] sm:$0xff]
  %v691 = vld [vmem:[%s1 + $0x58] sm:$0xff]
  %v692 = vld [vmem:[%s1 + $0x60] sm:$0xff]
  %v693 = vld [vmem:[%s1 + $0x68] sm:$0xff]
  %v695 = vsel %vm56, %v680, 0
  %v698 = vsel %vm56, %v681, 0
  %700 = vmatprep.subr.mxu0 0.0
  %701 = vmatpush1.msra.mxu0 %v133
  %702 = vmatprep.subr.mxu0 0.0
  %703 = vmatpush1.msra.mxu0 %v138
  %704 = vmatprep.subr.mxu0 0.0
  %705 = vmatpush1.msra.mxu0 %v143
  %706 = vmatprep.subr.mxu0 0.0
  %707 = vmatpush1.msra.mxu0 0.0
  %708 = vmatprep.subr.mxu0 0.0
  %709 = vmatpush1.msra.mxu0 0.0
  %710 = vmatprep.subr.mxu0 0.0
  %711 = vmatpush1.msra.mxu0 0.0
  %712 = vmatprep.subr.mxu0 0.0
  %713 = vmatpush1.msra.mxu0 0.0
  %714 = vmatprep.subr.mxu0 0.0
  %715 = vmatpush1.msra.mxu0 0.0
  %716 = vmatprep.subr.mxu0 0.0
  %717 = vmatpush1.msra.mxu0 0.0
  %718 = vmatprep.subr.mxu0 0.0
  %719 = vmatpush1.msra.mxu0 0.0
  %720 = vmatprep.subr.mxu0 0.0
  %721 = vmatpush1.msra.mxu0 0.0
  %722 = vmatprep.subr.mxu0 0.0
  %723 = vmatpush1.msra.mxu0 0.0
  %724 = vmatprep.subr.mxu0 0.0
  %725 = vmatpush1.msra.mxu0 0.0
  %726 = vmatprep.subr.mxu0 0.0
  %727 = vmatpush1.msra.mxu0 0.0
  %728 = vmatprep.subr.mxu0 0.0
  %729 = vmatpush1.msra.mxu0 0.0
  %730 = vmatprep.subr.mxu0 0.0
  %731 = vmatpush1.msra.mxu0 0.0
  %732 = vmatprep.subr.mxu0 0.0
  %733 = vmatpush1.msra.mxu0 0.0
  %734 = vmatprep.subr.mxu0 0.0
  %735 = vmatpush1.msra.mxu0 0.0
  %736 = vmatprep.subr.mxu0 0.0
  %737 = vmatpush1.msra.mxu0 0.0
  %738 = vmatprep.subr.mxu0 0.0
  %739 = vmatpush1.msra.mxu0 0.0
  %740 = vmatprep.subr.mxu0 0.0
  %741 = vmatpush1.msra.mxu0 0.0
  %742 = vmatprep.subr.mxu0 0.0
  %743 = vmatpush1.msra.mxu0 0.0
  %744 = vmatprep.subr.mxu0 0.0
  %745 = vmatpush1.msra.mxu0 0.0
  %746 = vmatprep.subr.mxu0 0.0
  %747 = vmatpush1.msra.mxu0 0.0
  %748 = vmatprep.subr.mxu0 0.0
  %749 = vmatpush1.msra.mxu0 0.0
  %750 = vmatprep.subr.mxu0 0.0
  %751 = vmatpush1.msra.mxu0 0.0
  %752 = vmatprep.subr.mxu0 0.0
  %753 = vmatpush1.msra.mxu0 0.0
  %754 = vmatprep.subr.mxu0 0.0
  %755 = vmatpush1.msra.mxu0 0.0
  %756 = vmatprep.subr.mxu0 0.0
  %757 = vmatpush1.msra.mxu0 0.0
  %758 = vmatprep.subr.mxu0 0.0
  %759 = vmatpush1.msra.mxu0 0.0
  %760 = vmatprep.subr.mxu0 0.0
  %761 = vmatpush1.msra.mxu0 0.0
  %762 = vmatprep.subr.mxu0 0.0
  %763 = vmatpush1.msra.mxu0 0.0
  %764 = vmatprep.mubr.f32.mxu0 0.0
  %765 = vmatmul.mubr.f32.gmra.mrb[0].mxu0 %v695
  %v766 = vpop.f32.mrb[0].mxu0
  %v767 = vadd.f32 0.0, %v766
  %v768 = vpop.f32.mrb[0].mxu0
  %769 = vmatprep.mubr.f32.mxu0 0.0
  %770 = vmatmul.mubr.f32.gmra.mrb[0].mxu0 %v698
  %v771 = vpop.f32.mrb[0].mxu0
  %v772 = vadd.f32 0.0, %v771
  %v773 = vpop.f32.mrb[0].mxu0
  %774 = vdwg.mxu0
  %v776 = vsel %vm56, %v682, 0
  %v779 = vsel %vm56, %v683, 0
  %781 = vmatprep.subr.mxu0 0.0
  %782 = vmatpush1.msra.mxu0 %v222
  %783 = vmatprep.subr.mxu0 0.0
  %784 = vmatpush1.msra.mxu0 %v227
  %785 = vmatprep.subr.mxu0 0.0
  %786 = vmatpush1.msra.mxu0 %v232
  %787 = vmatprep.subr.mxu0 0.0
  %788 = vmatpush1.msra.mxu0 0.0
  %789 = vmatprep.subr.mxu0 0.0
  %790 = vmatpush1.msra.mxu0 0.0
  %791 = vmatprep.subr.mxu0 0.0
  %792 = vmatpush1.msra.mxu0 0.0
  %793 = vmatprep.subr.mxu0 0.0
  %794 = vmatpush1.msra.mxu0 0.0
  %795 = vmatprep.subr.mxu0 0.0
  %796 = vmatpush1.msra.mxu0 0.0
  %797 = vmatprep.subr.mxu0 0.0
  %798 = vmatpush1.msra.mxu0 0.0
  %799 = vmatprep.subr.mxu0 0.0
  %800 = vmatpush1.msra.mxu0 0.0
  %801 = vmatprep.subr.mxu0 0.0
  %802 = vmatpush1.msra.mxu0 0.0
  %803 = vmatprep.subr.mxu0 0.0
  %804 = vmatpush1.msra.mxu0 0.0
  %805 = vmatprep.subr.mxu0 0.0
  %806 = vmatpush1.msra.mxu0 0.0
  %807 = vmatprep.subr.mxu0 0.0
  %808 = vmatpush1.msra.mxu0 0.0
  %809 = vmatprep.subr.mxu0 0.0
  %810 = vmatpush1.msra.mxu0 0.0
  %811 = vmatprep.subr.mxu0 0.0
  %812 = vmatpush1.msra.mxu0 0.0
  %813 = vmatprep.subr.mxu0 0.0
  %814 = vmatpush1.msra.mxu0 0.0
  %815 = vmatprep.subr.mxu0 0.0
  %816 = vmatpush1.msra.mxu0 0.0
  %817 = vmatprep.subr.mxu0 0.0
  %818 = vmatpush1.msra.mxu0 0.0
  %819 = vmatprep.subr.mxu0 0.0
  %820 = vmatpush1.msra.mxu0 0.0
  %821 = vmatprep.subr.mxu0 0.0
  %822 = vmatpush1.msra.mxu0 0.0
  %823 = vmatprep.subr.mxu0 0.0
  %824 = vmatpush1.msra.mxu0 0.0
  %825 = vmatprep.subr.mxu0 0.0
  %826 = vmatpush1.msra.mxu0 0.0
  %827 = vmatprep.subr.mxu0 0.0
  %828 = vmatpush1.msra.mxu0 0.0
  %829 = vmatprep.subr.mxu0 0.0
  %830 = vmatpush1.msra.mxu0 0.0
  %831 = vmatprep.subr.mxu0 0.0
  %832 = vmatpush1.msra.mxu0 0.0
  %833 = vmatprep.subr.mxu0 0.0
  %834 = vmatpush1.msra.mxu0 0.0
  %835 = vmatprep.subr.mxu0 0.0
  %836 = vmatpush1.msra.mxu0 0.0
  %837 = vmatprep.subr.mxu0 0.0
  %838 = vmatpush1.msra.mxu0 0.0
  %839 = vmatprep.subr.mxu0 0.0
  %840 = vmatpush1.msra.mxu0 0.0
  %841 = vmatprep.subr.mxu0 0.0
  %842 = vmatpush1.msra.mxu0 0.0
  %843 = vmatprep.subr.mxu0 0.0
  %844 = vmatpush1.msra.mxu0 0.0
  %845 = vmatprep.mubr.f32.mxu0 0.0
  %846 = vmatmul.mubr.f32.gmra.mrb[0].mxu0 %v776
  %v847 = vpop.f32.mrb[0].mxu0
  %v848 = vadd.f32 0.0, %v847
  %v849 = vpop.f32.mrb[0].mxu0
  %850 = vmatprep.mubr.f32.mxu0 0.0
  %851 = vmatmul.mubr.f32.gmra.mrb[0].mxu0 %v779
  %v852 = vpop.f32.mrb[0].mxu0
  %v853 = vadd.f32 0.0, %v852
  %v854 = vpop.f32.mrb[0].mxu0
  %855 = vdwg.mxu0
  %v857 = vsel %vm56, %v684, 0
  %v860 = vsel %vm56, %v685, 0
  %862 = vmatprep.subr.mxu0 0.0
  %863 = vmatpush1.msra.mxu0 %v311
  %864 = vmatprep.subr.mxu0 0.0
  %865 = vmatpush1.msra.mxu0 %v316
  %866 = vmatprep.subr.mxu0 0.0
  %867 = vmatpush1.msra.mxu0 %v321
  %868 = vmatprep.subr.mxu0 0.0
  %869 = vmatpush1.msra.mxu0 0.0
  %870 = vmatprep.subr.mxu0 0.0
  %871 = vmatpush1.msra.mxu0 0.0
  %872 = vmatprep.subr.mxu0 0.0
  %873 = vmatpush1.msra.mxu0 0.0
  %874 = vmatprep.subr.mxu0 0.0
  %875 = vmatpush1.msra.mxu0 0.0
  %876 = vmatprep.subr.mxu0 0.0
  %877 = vmatpush1.msra.mxu0 0.0
  %878 = vmatprep.subr.mxu0 0.0
  %879 = vmatpush1.msra.mxu0 0.0
  %880 = vmatprep.subr.mxu0 0.0
  %881 = vmatpush1.msra.mxu0 0.0
  %882 = vmatprep.subr.mxu0 0.0
  %883 = vmatpush1.msra.mxu0 0.0
  %884 = vmatprep.subr.mxu0 0.0
  %885 = vmatpush1.msra.mxu0 0.0
  %886 = vmatprep.subr.mxu0 0.0
  %887 = vmatpush1.msra.mxu0 0.0
  %888 = vmatprep.subr.mxu0 0.0
  %889 = vmatpush1.msra.mxu0 0.0
  %890 = vmatprep.subr.mxu0 0.0
  %891 = vmatpush1.msra.mxu0 0.0
  %892 = vmatprep.subr.mxu0 0.0
  %893 = vmatpush1.msra.mxu0 0.0
  %894 = vmatprep.subr.mxu0 0.0
  %895 = vmatpush1.msra.mxu0 0.0
  %896 = vmatprep.subr.mxu0 0.0
  %897 = vmatpush1.msra.mxu0 0.0
  %898 = vmatprep.subr.mxu0 0.0
  %899 = vmatpush1.msra.mxu0 0.0
  %900 = vmatprep.subr.mxu0 0.0
  %901 = vmatpush1.msra.mxu0 0.0
  %902 = vmatprep.subr.mxu0 0.0
  %903 = vmatpush1.msra.mxu0 0.0
  %904 = vmatprep.subr.mxu0 0.0
  %905 = vmatpush1.msra.mxu0 0.0
  %906 = vmatprep.subr.mxu0 0.0
  %907 = vmatpush1.msra.mxu0 0.0
  %908 = vmatprep.subr.mxu0 0.0
  %909 = vmatpush1.msra.mxu0 0.0
  %910 = vmatprep.subr.mxu0 0.0
  %911 = vmatpush1.msra.mxu0 0.0
  %912 = vmatprep.subr.mxu0 0.0
  %913 = vmatpush1.msra.mxu0 0.0
  %914 = vmatprep.subr.mxu0 0.0
  %915 = vmatpush1.msra.mxu0 0.0
  %916 = vmatprep.subr.mxu0 0.0
  %917 = vmatpush1.msra.mxu0 0.0
  %918 = vmatprep.subr.mxu0 0.0
  %919 = vmatpush1.msra.mxu0 0.0
  %920 = vmatprep.subr.mxu0 0.0
  %921 = vmatpush1.msra.mxu0 0.0
  %922 = vmatprep.subr.mxu0 0.0
  %923 = vmatpush1.msra.mxu0 0.0
  %924 = vmatprep.subr.mxu0 0.0
  %925 = vmatpush1.msra.mxu0 0.0
  %926 = vmatprep.mubr.f32.mxu0 0.0
  %927 = vmatmul.mubr.f32.gmra.mrb[0].mxu0 %v857
  %v928 = vpop.f32.mrb[0].mxu0
  %v929 = vadd.f32 0.0, %v928
  %v930 = vpop.f32.mrb[0].mxu0
  %931 = vmatprep.mubr.f32.mxu0 0.0
  %932 = vmatmul.mubr.f32.gmra.mrb[0].mxu0 %v860
  %v933 = vpop.f32.mrb[0].mxu0
  %v934 = vadd.f32 0.0, %v933
  %v935 = vpop.f32.mrb[0].mxu0
  %936 = vdwg.mxu0
  %v938 = vsel %vm56, %v686, 0
  %v941 = vsel %vm56, %v687, 0
  %943 = vmatprep.subr.mxu0 0.0
  %944 = vmatpush1.msra.mxu0 %v400
  %945 = vmatprep.subr.mxu0 0.0
  %946 = vmatpush1.msra.mxu0 %v405
  %947 = vmatprep.subr.mxu0 0.0
  %948 = vmatpush1.msra.mxu0 %v410
  %949 = vmatprep.subr.mxu0 0.0
  %950 = vmatpush1.msra.mxu0 0.0
  %951 = vmatprep.subr.mxu0 0.0
  %952 = vmatpush1.msra.mxu0 0.0
  %953 = vmatprep.subr.mxu0 0.0
  %954 = vmatpush1.msra.mxu0 0.0
  %955 = vmatprep.subr.mxu0 0.0
  %956 = vmatpush1.msra.mxu0 0.0
  %957 = vmatprep.subr.mxu0 0.0
  %958 = vmatpush1.msra.mxu0 0.0
  %959 = vmatprep.subr.mxu0 0.0
  %960 = vmatpush1.msra.mxu0 0.0
  %961 = vmatprep.subr.mxu0 0.0
  %962 = vmatpush1.msra.mxu0 0.0
  %963 = vmatprep.subr.mxu0 0.0
  %964 = vmatpush1.msra.mxu0 0.0
  %965 = vmatprep.subr.mxu0 0.0
  %966 = vmatpush1.msra.mxu0 0.0
  %967 = vmatprep.subr.mxu0 0.0
  %968 = vmatpush1.msra.mxu0 0.0
  %969 = vmatprep.subr.mxu0 0.0
  %970 = vmatpush1.msra.mxu0 0.0
  %971 = vmatprep.subr.mxu0 0.0
  %972 = vmatpush1.msra.mxu0 0.0
  %973 = vmatprep.subr.mxu0 0.0
  %974 = vmatpush1.msra.mxu0 0.0
  %975 = vmatprep.subr.mxu0 0.0
  %976 = vmatpush1.msra.mxu0 0.0
  %977 = vmatprep.subr.mxu0 0.0
  %978 = vmatpush1.msra.mxu0 0.0
  %979 = vmatprep.subr.mxu0 0.0
  %980 = vmatpush1.msra.mxu0 0.0
  %981 = vmatprep.subr.mxu0 0.0
  %982 = vmatpush1.msra.mxu0 0.0
  %983 = vmatprep.subr.mxu0 0.0
  %984 = vmatpush1.msra.mxu0 0.0
  %985 = vmatprep.subr.mxu0 0.0
  %986 = vmatpush1.msra.mxu0 0.0
  %987 = vmatprep.subr.mxu0 0.0
  %988 = vmatpush1.msra.mxu0 0.0
  %989 = vmatprep.subr.mxu0 0.0
  %990 = vmatpush1.msra.mxu0 0.0
  %991 = vmatprep.subr.mxu0 0.0
  %992 = vmatpush1.msra.mxu0 0.0
  %993 = vmatprep.subr.mxu0 0.0
  %994 = vmatpush1.msra.mxu0 0.0
  %995 = vmatprep.subr.mxu0 0.0
  %996 = vmatpush1.msra.mxu0 0.0
  %997 = vmatprep.subr.mxu0 0.0
  %998 = vmatpush1.msra.mxu0 0.0
  %999 = vmatprep.subr.mxu0 0.0
  %1000 = vmatpush1.msra.mxu0 0.0
  %1001 = vmatprep.subr.mxu0 0.0
  %1002 = vmatpush1.msra.mxu0 0.0
  %1003 = vmatprep.subr.mxu0 0.0
  %1004 = vmatpush1.msra.mxu0 0.0
  %1005 = vmatprep.subr.mxu0 0.0
  %1006 = vmatpush1.msra.mxu0 0.0
  %1007 = vmatprep.mubr.f32.mxu0 0.0
  %1008 = vmatmul.mubr.f32.gmra.mrb[0].mxu0 %v938
  %v1009 = vpop.f32.mrb[0].mxu0
  %v1010 = vadd.f32 0.0, %v1009
  %v1011 = vpop.f32.mrb[0].mxu0
  %1012 = vmatprep.mubr.f32.mxu0 0.0
  %1013 = vmatmul.mubr.f32.gmra.mrb[0].mxu0 %v941
  %v1014 = vpop.f32.mrb[0].mxu0
  %v1015 = vadd.f32 0.0, %v1014
  %v1016 = vpop.f32.mrb[0].mxu0
  %1017 = vdwg.mxu0
  %v1019 = vsel %vm56, %v688, 0
  %v1022 = vsel %vm56, %v689, 0
  %1024 = vmatprep.subr.mxu0 0.0
  %1025 = vmatpush1.msra.mxu0 %v489
  %1026 = vmatprep.subr.mxu0 0.0
  %1027 = vmatpush1.msra.mxu0 %v494
  %1028 = vmatprep.subr.mxu0 0.0
  %1029 = vmatpush1.msra.mxu0 %v499
  %1030 = vmatprep.subr.mxu0 0.0
  %1031 = vmatpush1.msra.mxu0 0.0
  %1032 = vmatprep.subr.mxu0 0.0
  %1033 = vmatpush1.msra.mxu0 0.0
  %1034 = vmatprep.subr.mxu0 0.0
  %1035 = vmatpush1.msra.mxu0 0.0
  %1036 = vmatprep.subr.mxu0 0.0
  %1037 = vmatpush1.msra.mxu0 0.0
  %1038 = vmatprep.subr.mxu0 0.0
  %1039 = vmatpush1.msra.mxu0 0.0
  %1040 = vmatprep.subr.mxu0 0.0
  %1041 = vmatpush1.msra.mxu0 0.0
  %1042 = vmatprep.subr.mxu0 0.0
  %1043 = vmatpush1.msra.mxu0 0.0
  %1044 = vmatprep.subr.mxu0 0.0
  %1045 = vmatpush1.msra.mxu0 0.0
  %1046 = vmatprep.subr.mxu0 0.0
  %1047 = vmatpush1.msra.mxu0 0.0
  %1048 = vmatprep.subr.mxu0 0.0
  %1049 = vmatpush1.msra.mxu0 0.0
  %1050 = vmatprep.subr.mxu0 0.0
  %1051 = vmatpush1.msra.mxu0 0.0
  %1052 = vmatprep.subr.mxu0 0.0
  %1053 = vmatpush1.msra.mxu0 0.0
  %1054 = vmatprep.subr.mxu0 0.0
  %1055 = vmatpush1.msra.mxu0 0.0
  %1056 = vmatprep.subr.mxu0 0.0
  %1057 = vmatpush1.msra.mxu0 0.0
  %1058 = vmatprep.subr.mxu0 0.0
  %1059 = vmatpush1.msra.mxu0 0.0
  %1060 = vmatprep.subr.mxu0 0.0
  %1061 = vmatpush1.msra.mxu0 0.0
  %1062 = vmatprep.subr.mxu0 0.0
  %1063 = vmatpush1.msra.mxu0 0.0
  %1064 = vmatprep.subr.mxu0 0.0
  %1065 = vmatpush1.msra.mxu0 0.0
  %1066 = vmatprep.subr.mxu0 0.0
  %1067 = vmatpush1.msra.mxu0 0.0
  %1068 = vmatprep.subr.mxu0 0.0
  %1069 = vmatpush1.msra.mxu0 0.0
  %1070 = vmatprep.subr.mxu0 0.0
  %1071 = vmatpush1.msra.mxu0 0.0
  %1072 = vmatprep.subr.mxu0 0.0
  %1073 = vmatpush1.msra.mxu0 0.0
  %1074 = vmatprep.subr.mxu0 0.0
  %1075 = vmatpush1.msra.mxu0 0.0
  %1076 = vmatprep.subr.mxu0 0.0
  %1077 = vmatpush1.msra.mxu0 0.0
  %1078 = vmatprep.subr.mxu0 0.0
  %1079 = vmatpush1.msra.mxu0 0.0
  %1080 = vmatprep.subr.mxu0 0.0
  %1081 = vmatpush1.msra.mxu0 0.0
  %1082 = vmatprep.subr.mxu0 0.0
  %1083 = vmatpush1.msra.mxu0 0.0
  %1084 = vmatprep.subr.mxu0 0.0
  %1085 = vmatpush1.msra.mxu0 0.0
  %1086 = vmatprep.subr.mxu0 0.0
  %1087 = vmatpush1.msra.mxu0 0.0
  %1088 = vmatprep.mubr.f32.mxu0 0.0
  %1089 = vmatmul.mubr.f32.gmra.mrb[0].mxu0 %v1019
  %v1090 = vpop.f32.mrb[0].mxu0
  %v1091 = vadd.f32 0.0, %v1090
  %v1092 = vpop.f32.mrb[0].mxu0
  %1093 = vmatprep.mubr.f32.mxu0 0.0
  %1094 = vmatmul.mubr.f32.gmra.mrb[0].mxu0 %v1022
  %v1095 = vpop.f32.mrb[0].mxu0
  %v1096 = vadd.f32 0.0, %v1095
  %v1097 = vpop.f32.mrb[0].mxu0
  %1098 = vdwg.mxu0
  %v1100 = vsel %vm56, %v690, 0
  %v1103 = vsel %vm56, %v691, 0
  %1105 = vmatprep.subr.mxu0 0.0
  %1106 = vmatpush1.msra.mxu0 %v578
  %1107 = vmatprep.subr.mxu0 0.0
  %1108 = vmatpush1.msra.mxu0 %v583
  %1109 = vmatprep.subr.mxu0 0.0
  %1110 = vmatpush1.msra.mxu0 %v588
  %1111 = vmatprep.subr.mxu0 0.0
  %1112 = vmatpush1.msra.mxu0 0.0
  %1113 = vmatprep.subr.mxu0 0.0
  %1114 = vmatpush1.msra.mxu0 0.0
  %1115 = vmatprep.subr.mxu0 0.0
  %1116 = vmatpush1.msra.mxu0 0.0
  %1117 = vmatprep.subr.mxu0 0.0
  %1118 = vmatpush1.msra.mxu0 0.0
  %1119 = vmatprep.subr.mxu0 0.0
  %1120 = vmatpush1.msra.mxu0 0.0
  %1121 = vmatprep.subr.mxu0 0.0
  %1122 = vmatpush1.msra.mxu0 0.0
  %1123 = vmatprep.subr.mxu0 0.0
  %1124 = vmatpush1.msra.mxu0 0.0
  %1125 = vmatprep.subr.mxu0 0.0
  %1126 = vmatpush1.msra.mxu0 0.0
  %1127 = vmatprep.subr.mxu0 0.0
  %1128 = vmatpush1.msra.mxu0 0.0
  %1129 = vmatprep.subr.mxu0 0.0
  %1130 = vmatpush1.msra.mxu0 0.0
  %1131 = vmatprep.subr.mxu0 0.0
  %1132 = vmatpush1.msra.mxu0 0.0
  %1133 = vmatprep.subr.mxu0 0.0
  %1134 = vmatpush1.msra.mxu0 0.0
  %1135 = vmatprep.subr.mxu0 0.0
  %1136 = vmatpush1.msra.mxu0 0.0
  %1137 = vmatprep.subr.mxu0 0.0
  %1138 = vmatpush1.msra.mxu0 0.0
  %1139 = vmatprep.subr.mxu0 0.0
  %1140 = vmatpush1.msra.mxu0 0.0
  %1141 = vmatprep.subr.mxu0 0.0
  %1142 = vmatpush1.msra.mxu0 0.0
  %1143 = vmatprep.subr.mxu0 0.0
  %1144 = vmatpush1.msra.mxu0 0.0
  %1145 = vmatprep.subr.mxu0 0.0
  %1146 = vmatpush1.msra.mxu0 0.0
  %1147 = vmatprep.subr.mxu0 0.0
  %1148 = vmatpush1.msra.mxu0 0.0
  %1149 = vmatprep.subr.mxu0 0.0
  %1150 = vmatpush1.msra.mxu0 0.0
  %1151 = vmatprep.subr.mxu0 0.0
  %1152 = vmatpush1.msra.mxu0 0.0
  %1153 = vmatprep.subr.mxu0 0.0
  %1154 = vmatpush1.msra.mxu0 0.0
  %1155 = vmatprep.subr.mxu0 0.0
  %1156 = vmatpush1.msra.mxu0 0.0
  %1157 = vmatprep.subr.mxu0 0.0
  %1158 = vmatpush1.msra.mxu0 0.0
  %1159 = vmatprep.subr.mxu0 0.0
  %1160 = vmatpush1.msra.mxu0 0.0
  %1161 = vmatprep.subr.mxu0 0.0
  %1162 = vmatpush1.msra.mxu0 0.0
  %1163 = vmatprep.subr.mxu0 0.0
  %1164 = vmatpush1.msra.mxu0 0.0
  %1165 = vmatprep.subr.mxu0 0.0
  %1166 = vmatpush1.msra.mxu0 0.0
  %1167 = vmatprep.subr.mxu0 0.0
  %1168 = vmatpush1.msra.mxu0 0.0
  %1169 = vmatprep.mubr.f32.mxu0 0.0
  %1170 = vmatmul.mubr.f32.gmra.mrb[0].mxu0 %v1100
  %v1171 = vpop.f32.mrb[0].mxu0
  %v1172 = vadd.f32 0.0, %v1171
  %v1173 = vpop.f32.mrb[0].mxu0
  %1174 = vmatprep.mubr.f32.mxu0 0.0
  %1175 = vmatmul.mubr.f32.gmra.mrb[0].mxu0 %v1103
  %v1176 = vpop.f32.mrb[0].mxu0
  %v1177 = vadd.f32 0.0, %v1176
  %v1178 = vpop.f32.mrb[0].mxu0
  %1179 = vdwg.mxu0
  %v1181 = vsel %vm56, %v692, 0
  %v1184 = vsel %vm56, %v693, 0
  %1186 = vmatprep.subr.mxu0 0.0
  %1187 = vmatpush1.msra.mxu0 %v667
  %1188 = vmatprep.subr.mxu0 0.0
  %1189 = vmatpush1.msra.mxu0 %v672
  %1190 = vmatprep.subr.mxu0 0.0
  %1191 = vmatpush1.msra.mxu0 %v677
  %1192 = vmatprep.subr.mxu0 0.0
  %1193 = vmatpush1.msra.mxu0 0.0
  %1194 = vmatprep.subr.mxu0 0.0
  %1195 = vmatpush1.msra.mxu0 0.0
  %1196 = vmatprep.subr.mxu0 0.0
  %1197 = vmatpush1.msra.mxu0 0.0
  %1198 = vmatprep.subr.mxu0 0.0
  %1199 = vmatpush1.msra.mxu0 0.0
  %1200 = vmatprep.subr.mxu0 0.0
  %1201 = vmatpush1.msra.mxu0 0.0
  %1202 = vmatprep.subr.mxu0 0.0
  %1203 = vmatpush1.msra.mxu0 0.0
  %1204 = vmatprep.subr.mxu0 0.0
  %1205 = vmatpush1.msra.mxu0 0.0
  %1206 = vmatprep.subr.mxu0 0.0
  %1207 = vmatpush1.msra.mxu0 0.0
  %1208 = vmatprep.subr.mxu0 0.0
  %1209 = vmatpush1.msra.mxu0 0.0
  %1210 = vmatprep.subr.mxu0 0.0
  %1211 = vmatpush1.msra.mxu0 0.0
  %1212 = vmatprep.subr.mxu0 0.0
  %1213 = vmatpush1.msra.mxu0 0.0
  %1214 = vmatprep.subr.mxu0 0.0
  %1215 = vmatpush1.msra.mxu0 0.0
  %1216 = vmatprep.subr.mxu0 0.0
  %1217 = vmatpush1.msra.mxu0 0.0
  %1218 = vmatprep.subr.mxu0 0.0
  %1219 = vmatpush1.msra.mxu0 0.0
  %1220 = vmatprep.subr.mxu0 0.0
  %1221 = vmatpush1.msra.mxu0 0.0
  %1222 = vmatprep.subr.mxu0 0.0
  %1223 = vmatpush1.msra.mxu0 0.0
  %1224 = vmatprep.subr.mxu0 0.0
  %1225 = vmatpush1.msra.mxu0 0.0
  %1226 = vmatprep.subr.mxu0 0.0
  %1227 = vmatpush1.msra.mxu0 0.0
  %1228 = vmatprep.subr.mxu0 0.0
  %1229 = vmatpush1.msra.mxu0 0.0
  %1230 = vmatprep.subr.mxu0 0.0
  %1231 = vmatpush1.msra.mxu0 0.0
  %1232 = vmatprep.subr.mxu0 0.0
  %1233 = vmatpush1.msra.mxu0 0.0
  %1234 = vmatprep.subr.mxu0 0.0
  %1235 = vmatpush1.msra.mxu0 0.0
  %1236 = vmatprep.subr.mxu0 0.0
  %1237 = vmatpush1.msra.mxu0 0.0
  %1238 = vmatprep.subr.mxu0 0.0
  %1239 = vmatpush1.msra.mxu0 0.0
  %1240 = vmatprep.subr.mxu0 0.0
  %1241 = vmatpush1.msra.mxu0 0.0
  %1242 = vmatprep.subr.mxu0 0.0
  %1243 = vmatpush1.msra.mxu0 0.0
  %1244 = vmatprep.subr.mxu0 0.0
  %1245 = vmatpush1.msra.mxu0 0.0
  %1246 = vmatprep.subr.mxu0 0.0
  %1247 = vmatpush1.msra.mxu0 0.0
  %1248 = vmatprep.subr.mxu0 0.0
  %1249 = vmatpush1.msra.mxu0 0.0
  %1250 = vmatprep.mubr.f32.mxu0 0.0
  %1251 = vmatmul.mubr.f32.gmra.mrb[0].mxu0 %v1181
  %v1252 = vpop.f32.mrb[0].mxu0
  %v1253 = vadd.f32 0.0, %v1252
  %v1254 = vpop.f32.mrb[0].mxu0
  %1255 = vmatprep.mubr.f32.mxu0 0.0
  %1256 = vmatmul.mubr.f32.gmra.mrb[0].mxu0 %v1184
  %v1257 = vpop.f32.mrb[0].mxu0
  %v1258 = vadd.f32 0.0, %v1257
  %v1259 = vpop.f32.mrb[0].mxu0
  %1260 = vdwg.mxu0
  %vm1261 = vcmask 130048
  %1262 = vst.msk [vmem:[%s3] sm:$0xff] %vm1261, %v767
  %1263 = vst.msk [vmem:[%s3 + $0x8] sm:$0xff] %vm1261, %v772
  %1264 = vst.msk [vmem:[%s3 + $0x10] sm:$0xff] %vm1261, %v848
  %1265 = vst.msk [vmem:[%s3 + $0x18] sm:$0xff] %vm1261, %v853
  %1266 = vst.msk [vmem:[%s3 + $0x20] sm:$0xff] %vm1261, %v929
  %1267 = vst.msk [vmem:[%s3 + $0x28] sm:$0xff] %vm1261, %v934
  %1268 = vst.msk [vmem:[%s3 + $0x30] sm:$0xff] %vm1261, %v1010
  %1269 = vst.msk [vmem:[%s3 + $0x38] sm:$0xff] %vm1261, %v1015
  %1270 = vst.msk [vmem:[%s3 + $0x40] sm:$0xff] %vm1261, %v1091
  %1271 = vst.msk [vmem:[%s3 + $0x48] sm:$0xff] %vm1261, %v1096
  %1272 = vst.msk [vmem:[%s3 + $0x50] sm:$0xff] %vm1261, %v1172
  %1273 = vst.msk [vmem:[%s3 + $0x58] sm:$0xff] %vm1261, %v1177
  %1274 = vst.msk [vmem:[%s3 + $0x60] sm:$0xff] %vm1261, %v1253
  %1275 = vst.msk [vmem:[%s3 + $0x68] sm:$0xff] %vm1261, %v1258
  // Predicated region
  $region14: #{single_sub_tree_seg_forward.5} parent=0 // pred_check
    _
  $region15: #{single_sub_tree_seg_forward.5} parent=0 // pred_check_branch
    %1277 = sbr.rel (0) target = $region17
  $region16: #{single_sub_tree_seg_forward.5} parent=0 // pred_region
    _
  $region17: #{single_sub_tree_seg_forward.5} parent=0 // pred_fallthru
    _
  // Predicated region
  $region18: #{single_sub_tree_seg_forward.5} parent=0 // pred_check
    _
  $region19: #{single_sub_tree_seg_forward.5} parent=0 // pred_check_branch
    %1279 = sbr.rel (0) target = $region21
  $region20: #{single_sub_tree_seg_forward.5} parent=0 // pred_region
    _
  $region21: #{single_sub_tree_seg_forward.5} parent=0 // pred_fallthru
    _

</llo_original>
